<compile_context>
chip_gen: v7x
topology: tpu7x:2x2x1
jax: 0.10.0
libtpu: 0.0.40
codegen_flags: <defaults>
</compile_context>

<pallas_src>
import functools
import math

import jax
import jax.numpy as jnp
from jax.experimental import pallas as pl
from jax.experimental.pallas import tpu as pltpu

CFG = dict(vocab=1000, hidden=128, layers=2, heads=4, head_dim=32,
           intermediate=512, max_pos=64, num_classes=4)

LANE = 128  # lane width; classifier output padded to this for unmasked stores


# ------------------------------ kernel helpers ------------------------------


def _gelu(y):
    # TODO(synk): HF BERT uses exact erf-GELU; tanh approximation used for
    # Mosaic-safe lowering (EUP tanh), ~1e-3-level relative error vs erf.
    return 0.5 * y * (1.0 + jnp.tanh(0.7978845608028654 * (y + 0.044715 * y * y * y)))


def _layernorm(y, g, b, eps=1e-12):
    mu = jnp.mean(y, axis=-1, keepdims=True)
    var = jnp.mean((y - mu) ** 2, axis=-1, keepdims=True)
    inv = jax.lax.rsqrt(var + eps)
    return (y - mu) * inv * g + b


# ------------------------------ Pallas kernels ------------------------------


def _emb_ln_kernel(x_ref, g_ref, b_ref, o_ref):
    x = x_ref[...].astype(jnp.float32)
    o_ref[...] = _layernorm(x, g_ref[...], b_ref[...]).astype(o_ref.dtype)


def _attn_block_kernel(x_ref, bias_ref, qkv_w_ref, qkv_b_ref, o_w_ref, o_b_ref,
                       g_ref, b_ref, o_ref, *, heads, head_dim, hidden):
    """Fused: QKV proj -> per-head attention -> out proj -> +residual -> LN.

    Processes one batch element per grid step; all heads handled in-kernel via
    static lane slices of the packed (S, 3H) QKV activation (no transposes).
    """
    x = x_ref[0].astype(jnp.float32)                       # (S, H)
    qkv = jnp.dot(x, qkv_w_ref[...],
                  preferred_element_type=jnp.float32) + qkv_b_ref[...]  # (S, 3H)
    scale = 1.0 / math.sqrt(head_dim)
    bias = bias_ref[0]                                     # (1, S_k), broadcast over q

    # Accumulate residual + out-proj bias, then add per-head contributions
    # ctx_h @ o_w[h*D:(h+1)*D, :] -- avoids concatenating heads across lanes.
    acc = x + o_b_ref[...]                                 # (S, H)
    for h in range(heads):
        lo = h * head_dim
        q = qkv[:, lo:lo + head_dim]                               # (S, D)
        k = qkv[:, hidden + lo:hidden + lo + head_dim]             # (S, D)
        v = qkv[:, 2 * hidden + lo:2 * hidden + lo + head_dim]     # (S, D)
        s = jax.lax.dot_general(q, k, (((1,), (1,)), ((), ())),
                                preferred_element_type=jnp.float32) * scale
        s = s + bias
        s = s - jnp.max(s, axis=-1, keepdims=True)
        p = jnp.exp(s)
        p = p * pl.reciprocal(jnp.sum(p, axis=-1, keepdims=True), approx=True)
        ctx = jnp.dot(p, v, preferred_element_type=jnp.float32)    # (S, D)
        acc = acc + jnp.dot(ctx, o_w_ref[lo:lo + head_dim, :],
                            preferred_element_type=jnp.float32)
    o_ref[0] = _layernorm(acc, g_ref[...], b_ref[...]).astype(o_ref.dtype)


def _ffn_block_kernel(x_ref, i_w_ref, i_b_ref, f_w_ref, f_b_ref,
                      g_ref, b_ref, o_ref):
    """Fused: intermediate matmul + GELU + output matmul + residual + LN."""
    x = x_ref[...].astype(jnp.float32)
    inter = jnp.dot(x, i_w_ref[...],
                    preferred_element_type=jnp.float32) + i_b_ref[...]
    inter = _gelu(inter)
    y = jnp.dot(inter, f_w_ref[...],
                preferred_element_type=jnp.float32) + f_b_ref[...] + x
    o_ref[...] = _layernorm(y, g_ref[...], b_ref[...]).astype(o_ref.dtype)


def _head_kernel(cls_ref, pw_ref, pb_ref, ow_ref, ob_ref, o_ref):
    """Fused pooler (tanh(Linear)) + classifier; output padded to 128 lanes."""
    cls = cls_ref[...].astype(jnp.float32)
    pooled = jnp.tanh(jnp.dot(cls, pw_ref[...],
                              preferred_element_type=jnp.float32) + pb_ref[...])
    logits = jnp.dot(pooled, ow_ref[...],
                     preferred_element_type=jnp.float32) + ob_ref[...]
    o_ref[...] = logits.astype(o_ref.dtype)


# ------------------------------ kernel wrappers -----------------------------


def embed_layernorm(x2d, g, b):
    rows, h = x2d.shape
    bm = rows  # toy size; tile rows at >=256 (parallel axis) when scaling up
    return pl.pallas_call(
        _emb_ln_kernel,
        out_shape=jax.ShapeDtypeStruct((rows, h), x2d.dtype),
        grid=(pl.cdiv(rows, bm),),
        in_specs=[pl.BlockSpec((bm, h), lambda i: (i, 0)),
                  pl.BlockSpec((1, h), lambda i: (0, 0)),
                  pl.BlockSpec((1, h), lambda i: (0, 0))],
        out_specs=pl.BlockSpec((bm, h), lambda i: (i, 0)),
        compiler_params=pltpu.CompilerParams(dimension_semantics=("parallel",)),
    )(x2d, g, b)


def attention_block(x, bias, p, cfg):
    B, S, H = x.shape
    nH, D = cfg["heads"], cfg["head_dim"]
    kern = functools.partial(_attn_block_kernel, heads=nH, head_dim=D, hidden=H)
    return pl.pallas_call(
        kern,
        out_shape=jax.ShapeDtypeStruct((B, S, H), x.dtype),
        grid=(B,),
        in_specs=[pl.BlockSpec((1, S, H), lambda b: (b, 0, 0)),
                  pl.BlockSpec((1, 1, S), lambda b: (b, 0, 0)),
                  pl.BlockSpec((H, 3 * H), lambda b: (0, 0)),
                  pl.BlockSpec((1, 3 * H), lambda b: (0, 0)),
                  pl.BlockSpec((H, H), lambda b: (0, 0)),
                  pl.BlockSpec((1, H), lambda b: (0, 0)),
                  pl.BlockSpec((1, H), lambda b: (0, 0)),
                  pl.BlockSpec((1, H), lambda b: (0, 0))],
        out_specs=pl.BlockSpec((1, S, H), lambda b: (b, 0, 0)),
        compiler_params=pltpu.CompilerParams(dimension_semantics=("parallel",)),
    )(x, bias, p["qkv_w"], p["qkv_b"], p["o_w"], p["o_b"],
      p["ln1_g"], p["ln1_b"])


def ffn_block(x2d, p):
    rows, H = x2d.shape
    I = p["i_w"].shape[1]
    bm = rows  # toy size; tile rows (parallel) + K/N dims when scaling to v7x
    return pl.pallas_call(
        _ffn_block_kernel,
        out_shape=jax.ShapeDtypeStruct((rows, H), x2d.dtype),
        grid=(pl.cdiv(rows, bm),),
        in_specs=[pl.BlockSpec((bm, H), lambda i: (i, 0)),
                  pl.BlockSpec((H, I), lambda i: (0, 0)),
                  pl.BlockSpec((1, I), lambda i: (0, 0)),
                  pl.BlockSpec((I, H), lambda i: (0, 0)),
                  pl.BlockSpec((1, H), lambda i: (0, 0)),
                  pl.BlockSpec((1, H), lambda i: (0, 0)),
                  pl.BlockSpec((1, H), lambda i: (0, 0))],
        out_specs=pl.BlockSpec((bm, H), lambda i: (i, 0)),
        compiler_params=pltpu.CompilerParams(dimension_semantics=("parallel",)),
    )(x2d, p["i_w"], p["i_b"], p["f_w"], p["f_b"], p["ln2_g"], p["ln2_b"])


def pooler_classifier(cls, pw, pb, ow_pad, ob_pad):
    B, H = cls.shape
    P = ow_pad.shape[1]
    return pl.pallas_call(
        _head_kernel,
        out_shape=jax.ShapeDtypeStruct((B, P), cls.dtype),
        grid=(1,),
        in_specs=[pl.BlockSpec((B, H), lambda i: (0, 0)),
                  pl.BlockSpec((H, H), lambda i: (0, 0)),
                  pl.BlockSpec((1, H), lambda i: (0, 0)),
                  pl.BlockSpec((H, P), lambda i: (0, 0)),
                  pl.BlockSpec((1, P), lambda i: (0, 0))],
        out_specs=pl.BlockSpec((B, P), lambda i: (0, 0)),
        compiler_params=pltpu.CompilerParams(dimension_semantics=("parallel",)),
    )(cls, pw, pb, ow_pad, ob_pad)


# ------------------------------- model glue ---------------------------------


def init_params(key, cfg):
    H, I, V, P = cfg["hidden"], cfg["intermediate"], cfg["vocab"], cfg["max_pos"]
    nC = cfg["num_classes"]
    keys = iter(jax.random.split(key, 8 + 4 * cfg["layers"]))

    def w(shape):
        return jax.random.normal(next(keys), shape, jnp.float32) * 0.02

    out_w = w((H, nC))
    params = {
        "word_emb": w((V, H)),
        "pos_emb": w((P, H)),
        "type_emb": w((2, H)),
        "emb_ln_g": jnp.ones((1, H), jnp.float32),
        "emb_ln_b": jnp.zeros((1, H), jnp.float32),
        "layers": [],
        "pooler_w": w((H, H)),
        "pooler_b": jnp.zeros((1, H), jnp.float32),
        # classifier weight/bias padded to a lane-dense (H, 128) slab; real
        # logits live in the first num_classes columns.
        "out_w_pad": jnp.pad(out_w, ((0, 0), (0, LANE - nC))),
        "out_b_pad": jnp.zeros((1, LANE), jnp.float32),
    }
    for _ in range(cfg["layers"]):
        params["layers"].append({
            # Q/K/V projections packed into one (H, 3H) weight.
            "qkv_w": w((H, 3 * H)),
            "qkv_b": jnp.zeros((1, 3 * H), jnp.float32),
            "o_w": w((H, H)), "o_b": jnp.zeros((1, H), jnp.float32),
            "ln1_g": jnp.ones((1, H), jnp.float32),
            "ln1_b": jnp.zeros((1, H), jnp.float32),
            "i_w": w((H, I)), "i_b": jnp.zeros((1, I), jnp.float32),
            "f_w": w((I, H)), "f_b": jnp.zeros((1, H), jnp.float32),
            "ln2_g": jnp.ones((1, H), jnp.float32),
            "ln2_b": jnp.zeros((1, H), jnp.float32),
        })
    return params


def bert_forward(params, ids, mask, token_type_ids, cfg):
    """Replicates BERT.forward(ids, mask, token_type_ids) -> (B, num_classes)."""
    B, S = ids.shape
    H = cfg["hidden"]
    nC = cfg["num_classes"]
    # Embedding gathers stay in plain JAX (glue); everything else is Pallas.
    pos = jnp.arange(S)
    emb = (params["word_emb"][ids]
           + params["pos_emb"][pos][None, :, :]
           + params["type_emb"][token_type_ids])
    x2d = embed_layernorm(emb.reshape(B * S, H),
                          params["emb_ln_g"], params["emb_ln_b"])
    x = x2d.reshape(B, S, H)
    # extended attention mask: additive bias over key positions, (B, 1, S)
    bias = ((1.0 - mask.astype(jnp.float32)) * -10000.0)[:, None, :]
    for lp in params["layers"]:
        h1 = attention_block(x, bias, lp, cfg)          # (B, S, H)
        h2 = ffn_block(h1.reshape(B * S, H), lp)        # (B*S, H)
        x = h2.reshape(B, S, H)
    # pooler: tanh(Linear(hidden[:, 0, :])) == o2 of HF BertModel, then head.
    cls = x[:, 0, :]
    logits_pad = pooler_classifier(cls, params["pooler_w"], params["pooler_b"],
                                   params["out_w_pad"], params["out_b_pad"])
    return logits_pad[:, :nC]


# ---------------------------------- main -------------------------------------

if __name__ == "__main__":
    B, S = 2, 16
    key = jax.random.PRNGKey(0)
    k_param, k_ids, k_type = jax.random.split(key, 3)

    params = init_params(k_param, CFG)

    ids = jax.random.randint(k_ids, (B, S), 0, CFG["vocab"], dtype=jnp.int32)
    mask = jnp.concatenate(
        [jnp.ones((B, S - 4), jnp.int32), jnp.zeros((B, 4), jnp.int32)], axis=1)
    token_type_ids = jax.random.randint(k_type, (B, S), 0, 2, dtype=jnp.int32)

    fwd = jax.jit(functools.partial(bert_forward, cfg=CFG))
    logits = fwd(params, ids, mask, token_type_ids)
    jax.block_until_ready(logits)
    assert logits.shape == (B, CFG["num_classes"])
    print("KERNEL_OK")
</pallas_src>

<mosaic_0001>
module attributes {stable_mosaic.version = 11 : i64} {
  func.func @_ffn_block_kernel(%arg0: i32, %arg1: memref<32x128xf32, #tpu.memory_space<vmem>>, %arg2: memref<128x512xf32, #tpu.memory_space<vmem>>, %arg3: memref<1x512xf32, #tpu.memory_space<vmem>>, %arg4: memref<512x128xf32, #tpu.memory_space<vmem>>, %arg5: memref<1x128xf32, #tpu.memory_space<vmem>>, %arg6: memref<1x128xf32, #tpu.memory_space<vmem>>, %arg7: memref<1x128xf32, #tpu.memory_space<vmem>>, %arg8: memref<32x128xf32, #tpu.memory_space<vmem>>) attributes {dimension_semantics = [#tpu.dimension_semantics<parallel>], iteration_bounds = array<i64: 1>, scalar_prefetch = 0 : i64, scratch_operands = 0 : i64, tpu.core_type = #tpu.core_type<tc>, window_params = [{transform_indices = @transform_0, window_bounds = array<i64: 32, 128>}, {pipeline_mode = #tpu.pipeline_mode<synchronous>, transform_indices = @transform_1, window_bounds = array<i64: 128, 512>}, {pipeline_mode = #tpu.pipeline_mode<synchronous>, transform_indices = @transform_2, window_bounds = array<i64: 1, 512>}, {pipeline_mode = #tpu.pipeline_mode<synchronous>, transform_indices = @transform_3, window_bounds = array<i64: 512, 128>}, {pipeline_mode = #tpu.pipeline_mode<synchronous>, transform_indices = @transform_4, window_bounds = array<i64: 1, 128>}, {pipeline_mode = #tpu.pipeline_mode<synchronous>, transform_indices = @transform_5, window_bounds = array<i64: 1, 128>}, {pipeline_mode = #tpu.pipeline_mode<synchronous>, transform_indices = @transform_6, window_bounds = array<i64: 1, 128>}, {transform_indices = @transform_7, window_bounds = array<i64: 32, 128>}]} {
    %c0 = arith.constant 0 : index
    %c0_0 = arith.constant 0 : index
    %0 = vector.load %arg1[%c0, %c0_0] : memref<32x128xf32, #tpu.memory_space<vmem>>, vector<32x128xf32>
    %c0_1 = arith.constant 0 : index
    %c0_2 = arith.constant 0 : index
    %1 = vector.load %arg2[%c0_1, %c0_2] : memref<128x512xf32, #tpu.memory_space<vmem>>, vector<128x512xf32>
    %cst = arith.constant dense<0.000000e+00> : vector<32x512xf32>
    %2 = tpu.matmul %0, %1, %cst {dimension_numbers = #tpu.dot_dimension_numbers<[1], [0], [0], [1], [0, 0, 1, 1], [], []>} : vector<32x128xf32>, vector<128x512xf32>, vector<32x512xf32> -> vector<32x512xf32>
    %c0_3 = arith.constant 0 : index
    %c0_4 = arith.constant 0 : index
    %3 = vector.load %arg3[%c0_3, %c0_4] : memref<1x512xf32, #tpu.memory_space<vmem>>, vector<1x512xf32>
    %4 = vector.broadcast %3 : vector<1x512xf32> to vector<32x512xf32>
    %5 = arith.addf %2, %4 : vector<32x512xf32>
    %cst_5 = arith.constant 5.000000e-01 : f32
    %6 = vector.broadcast %cst_5 : f32 to vector<32x512xf32>
    %7 = arith.mulf %6, %5 : vector<32x512xf32>
    %cst_6 = arith.constant 4.471500e-02 : f32
    %8 = vector.broadcast %cst_6 : f32 to vector<32x512xf32>
    %9 = arith.mulf %8, %5 : vector<32x512xf32>
    %10 = arith.mulf %9, %5 : vector<32x512xf32>
    %11 = arith.mulf %10, %5 : vector<32x512xf32>
    %12 = arith.addf %5, %11 : vector<32x512xf32>
    %cst_7 = arith.constant 0.797884583 : f32
    %13 = vector.broadcast %cst_7 : f32 to vector<32x512xf32>
    %14 = arith.mulf %13, %12 : vector<32x512xf32>
    %15 = math.tanh %14 : vector<32x512xf32>
    %cst_8 = arith.constant 1.000000e+00 : f32
    %16 = vector.broadcast %cst_8 : f32 to vector<32x512xf32>
    %17 = arith.addf %16, %15 : vector<32x512xf32>
    %18 = arith.mulf %7, %17 : vector<32x512xf32>
    %c0_9 = arith.constant 0 : index
    %c0_10 = arith.constant 0 : index
    %19 = vector.load %arg4[%c0_9, %c0_10] : memref<512x128xf32, #tpu.memory_space<vmem>>, vector<512x128xf32>
    %cst_11 = arith.constant dense<0.000000e+00> : vector<32x128xf32>
    %20 = tpu.matmul %18, %19, %cst_11 {dimension_numbers = #tpu.dot_dimension_numbers<[1], [0], [0], [1], [0, 0, 1, 1], [], []>} : vector<32x512xf32>, vector<512x128xf32>, vector<32x128xf32> -> vector<32x128xf32>
    %c0_12 = arith.constant 0 : index
    %c0_13 = arith.constant 0 : index
    %21 = vector.load %arg5[%c0_12, %c0_13] : memref<1x128xf32, #tpu.memory_space<vmem>>, vector<1x128xf32>
    %22 = vector.broadcast %21 : vector<1x128xf32> to vector<32x128xf32>
    %23 = arith.addf %20, %22 : vector<32x128xf32>
    %24 = arith.addf %23, %0 : vector<32x128xf32>
    %c0_14 = arith.constant 0 : index
    %c0_15 = arith.constant 0 : index
    %25 = vector.load %arg6[%c0_14, %c0_15] : memref<1x128xf32, #tpu.memory_space<vmem>>, vector<1x128xf32>
    %c0_16 = arith.constant 0 : index
    %c0_17 = arith.constant 0 : index
    %26 = vector.load %arg7[%c0_16, %c0_17] : memref<1x128xf32, #tpu.memory_space<vmem>>, vector<1x128xf32>
    %cst_18 = arith.constant dense<0.000000e+00> : vector<32xf32>
    %27 = vector.multi_reduction <add>, %24, %cst_18 [1] : vector<32x128xf32> to vector<32xf32>
    %28 = vector.shape_cast %27 : vector<32xf32> to vector<32x1xf32>
    %cst_19 = arith.constant 1.280000e+02 : f32
    %29 = vector.broadcast %cst_19 : f32 to vector<32x1xf32>
    %30 = arith.divf %28, %29 : vector<32x1xf32>
    %31 = vector.broadcast %30 : vector<32x1xf32> to vector<32x128xf32>
    %32 = arith.subf %24, %31 : vector<32x128xf32>
    %33 = arith.mulf %32, %32 : vector<32x128xf32>
    %cst_20 = arith.constant dense<0.000000e+00> : vector<32xf32>
    %34 = vector.multi_reduction <add>, %33, %cst_20 [1] : vector<32x128xf32> to vector<32xf32>
    %35 = vector.shape_cast %34 : vector<32xf32> to vector<32x1xf32>
    %cst_21 = arith.constant 1.280000e+02 : f32
    %36 = vector.broadcast %cst_21 : f32 to vector<32x1xf32>
    %37 = arith.divf %35, %36 : vector<32x1xf32>
    %cst_22 = arith.constant 9.99999996E-13 : f32
    %38 = vector.broadcast %cst_22 : f32 to vector<32x1xf32>
    %39 = arith.addf %37, %38 : vector<32x1xf32>
    %40 = math.rsqrt %39 : vector<32x1xf32>
    %41 = vector.broadcast %30 : vector<32x1xf32> to vector<32x128xf32>
    %42 = arith.subf %24, %41 : vector<32x128xf32>
    %43 = vector.broadcast %40 : vector<32x1xf32> to vector<32x128xf32>
    %44 = arith.mulf %42, %43 : vector<32x128xf32>
    %45 = vector.broadcast %25 : vector<1x128xf32> to vector<32x128xf32>
    %46 = arith.mulf %44, %45 : vector<32x128xf32>
    %47 = vector.broadcast %26 : vector<1x128xf32> to vector<32x128xf32>
    %48 = arith.addf %46, %47 : vector<32x128xf32>
    %c0_23 = arith.constant 0 : index
    %c0_24 = arith.constant 0 : index
    %49 = vector.load %arg8[%c0_23, %c0_24] : memref<32x128xf32, #tpu.memory_space<vmem>>, vector<32x128xf32>
    tpu.vector_store %arg8[%c0_23, %c0_24], %48 {strides = array<i32>} : memref<32x128xf32, #tpu.memory_space<vmem>>, vector<32x128xf32>,
    return
  }
  func.func @transform_0(%arg0: i32) -> (i32, i32) {
    %c0_i32 = arith.constant 0 : i32
    %c0_i32_0 = arith.constant 0 : i32
    return %arg0, %c0_i32 : i32, i32
  }
  func.func @transform_1(%arg0: i32) -> (i32, i32) {
    %c0_i32 = arith.constant 0 : i32
    %c0_i32_0 = arith.constant 0 : i32
    %c0_i32_1 = arith.constant 0 : i32
    return %c0_i32, %c0_i32_0 : i32, i32
  }
  func.func @transform_2(%arg0: i32) -> (i32, i32) {
    %c0_i32 = arith.constant 0 : i32
    %c0_i32_0 = arith.constant 0 : i32
    %c0_i32_1 = arith.constant 0 : i32
    return %c0_i32, %c0_i32_0 : i32, i32
  }
  func.func @transform_3(%arg0: i32) -> (i32, i32) {
    %c0_i32 = arith.constant 0 : i32
    %c0_i32_0 = arith.constant 0 : i32
    %c0_i32_1 = arith.constant 0 : i32
    return %c0_i32, %c0_i32_0 : i32, i32
  }
  func.func @transform_4(%arg0: i32) -> (i32, i32) {
    %c0_i32 = arith.constant 0 : i32
    %c0_i32_0 = arith.constant 0 : i32
    %c0_i32_1 = arith.constant 0 : i32
    return %c0_i32, %c0_i32_0 : i32, i32
  }
  func.func @transform_5(%arg0: i32) -> (i32, i32) {
    %c0_i32 = arith.constant 0 : i32
    %c0_i32_0 = arith.constant 0 : i32
    %c0_i32_1 = arith.constant 0 : i32
    return %c0_i32, %c0_i32_0 : i32, i32
  }
  func.func @transform_6(%arg0: i32) -> (i32, i32) {
    %c0_i32 = arith.constant 0 : i32
    %c0_i32_0 = arith.constant 0 : i32
    %c0_i32_1 = arith.constant 0 : i32
    return %c0_i32, %c0_i32_0 : i32, i32
  }
  func.func @transform_7(%arg0: i32) -> (i32, i32) {
    %c0_i32 = arith.constant 0 : i32
    %c0_i32_0 = arith.constant 0 : i32
    return %arg0, %c0_i32 : i32, i32
  }
}

module attributes {stable_mosaic.version = 11 : i64} {
  func.func @_emb_ln_kernel(%arg0: i32, %arg1: memref<32x128xf32, #tpu.memory_space<vmem>>, %arg2: memref<1x128xf32, #tpu.memory_space<vmem>>, %arg3: memref<1x128xf32, #tpu.memory_space<vmem>>, %arg4: memref<32x128xf32, #tpu.memory_space<vmem>>) attributes {dimension_semantics = [#tpu.dimension_semantics<parallel>], iteration_bounds = array<i64: 1>, scalar_prefetch = 0 : i64, scratch_operands = 0 : i64, tpu.core_type = #tpu.core_type<tc>, window_params = [{transform_indices = @transform_0, window_bounds = array<i64: 32, 128>}, {pipeline_mode = #tpu.pipeline_mode<synchronous>, transform_indices = @transform_1, window_bounds = array<i64: 1, 128>}, {pipeline_mode = #tpu.pipeline_mode<synchronous>, transform_indices = @transform_2, window_bounds = array<i64: 1, 128>}, {transform_indices = @transform_3, window_bounds = array<i64: 32, 128>}]} {
    %c0 = arith.constant 0 : index
    %c0_0 = arith.constant 0 : index
    %0 = vector.load %arg1[%c0, %c0_0] : memref<32x128xf32, #tpu.memory_space<vmem>>, vector<32x128xf32>
    %c0_1 = arith.constant 0 : index
    %c0_2 = arith.constant 0 : index
    %1 = vector.load %arg2[%c0_1, %c0_2] : memref<1x128xf32, #tpu.memory_space<vmem>>, vector<1x128xf32>
    %c0_3 = arith.constant 0 : index
    %c0_4 = arith.constant 0 : index
    %2 = vector.load %arg3[%c0_3, %c0_4] : memref<1x128xf32, #tpu.memory_space<vmem>>, vector<1x128xf32>
    %cst = arith.constant dense<0.000000e+00> : vector<32xf32>
    %3 = vector.multi_reduction <add>, %0, %cst [1] : vector<32x128xf32> to vector<32xf32>
    %4 = vector.shape_cast %3 : vector<32xf32> to vector<32x1xf32>
    %cst_5 = arith.constant 1.280000e+02 : f32
    %5 = vector.broadcast %cst_5 : f32 to vector<32x1xf32>
    %6 = arith.divf %4, %5 : vector<32x1xf32>
    %7 = vector.broadcast %6 : vector<32x1xf32> to vector<32x128xf32>
    %8 = arith.subf %0, %7 : vector<32x128xf32>
    %9 = arith.mulf %8, %8 : vector<32x128xf32>
    %cst_6 = arith.constant dense<0.000000e+00> : vector<32xf32>
    %10 = vector.multi_reduction <add>, %9, %cst_6 [1] : vector<32x128xf32> to vector<32xf32>
    %11 = vector.shape_cast %10 : vector<32xf32> to vector<32x1xf32>
    %cst_7 = arith.constant 1.280000e+02 : f32
    %12 = vector.broadcast %cst_7 : f32 to vector<32x1xf32>
    %13 = arith.divf %11, %12 : vector<32x1xf32>
    %cst_8 = arith.constant 9.99999996E-13 : f32
    %14 = vector.broadcast %cst_8 : f32 to vector<32x1xf32>
    %15 = arith.addf %13, %14 : vector<32x1xf32>
    %16 = math.rsqrt %15 : vector<32x1xf32>
    %17 = vector.broadcast %6 : vector<32x1xf32> to vector<32x128xf32>
    %18 = arith.subf %0, %17 : vector<32x128xf32>
    %19 = vector.broadcast %16 : vector<32x1xf32> to vector<32x128xf32>
    %20 = arith.mulf %18, %19 : vector<32x128xf32>
    %21 = vector.broadcast %1 : vector<1x128xf32> to vector<32x128xf32>
    %22 = arith.mulf %20, %21 : vector<32x128xf32>
    %23 = vector.broadcast %2 : vector<1x128xf32> to vector<32x128xf32>
    %24 = arith.addf %22, %23 : vector<32x128xf32>
    %c0_9 = arith.constant 0 : index
    %c0_10 = arith.constant 0 : index
    %25 = vector.load %arg4[%c0_9, %c0_10] : memref<32x128xf32, #tpu.memory_space<vmem>>, vector<32x128xf32>
    tpu.vector_store %arg4[%c0_9, %c0_10], %24 {strides = array<i32>} : memref<32x128xf32, #tpu.memory_space<vmem>>, vector<32x128xf32>,
    return
  }
  func.func @transform_0(%arg0: i32) -> (i32, i32) {
    %c0_i32 = arith.constant 0 : i32
    %c0_i32_0 = arith.constant 0 : i32
    return %arg0, %c0_i32 : i32, i32
  }
  func.func @transform_1(%arg0: i32) -> (i32, i32) {
    %c0_i32 = arith.constant 0 : i32
    %c0_i32_0 = arith.constant 0 : i32
    %c0_i32_1 = arith.constant 0 : i32
    return %c0_i32, %c0_i32_0 : i32, i32
  }
  func.func @transform_2(%arg0: i32) -> (i32, i32) {
    %c0_i32 = arith.constant 0 : i32
    %c0_i32_0 = arith.constant 0 : i32
    %c0_i32_1 = arith.constant 0 : i32
    return %c0_i32, %c0_i32_0 : i32, i32
  }
  func.func @transform_3(%arg0: i32) -> (i32, i32) {
    %c0_i32 = arith.constant 0 : i32
    %c0_i32_0 = arith.constant 0 : i32
    return %arg0, %c0_i32 : i32, i32
  }
}

module attributes {stable_mosaic.version = 11 : i64} {
  func.func @_attn_block_kernel(%arg0: i32, %arg1: memref<1x16x128xf32, #tpu.memory_space<vmem>>, %arg2: memref<1x1x16xf32, #tpu.memory_space<vmem>>, %arg3: memref<128x384xf32, #tpu.memory_space<vmem>>, %arg4: memref<1x384xf32, #tpu.memory_space<vmem>>, %arg5: memref<128x128xf32, #tpu.memory_space<vmem>>, %arg6: memref<1x128xf32, #tpu.memory_space<vmem>>, %arg7: memref<1x128xf32, #tpu.memory_space<vmem>>, %arg8: memref<1x128xf32, #tpu.memory_space<vmem>>, %arg9: memref<1x16x128xf32, #tpu.memory_space<vmem>>) attributes {dimension_semantics = [#tpu.dimension_semantics<parallel>], iteration_bounds = array<i64: 2>, scalar_prefetch = 0 : i64, scratch_operands = 0 : i64, tpu.core_type = #tpu.core_type<tc>, window_params = [{transform_indices = @transform_0, window_bounds = array<i64: 1, 16, 128>}, {transform_indices = @transform_1, window_bounds = array<i64: 1, 1, 16>}, {pipeline_mode = #tpu.pipeline_mode<synchronous>, transform_indices = @transform_2, window_bounds = array<i64: 128, 384>}, {pipeline_mode = #tpu.pipeline_mode<synchronous>, transform_indices = @transform_3, window_bounds = array<i64: 1, 384>}, {pipeline_mode = #tpu.pipeline_mode<synchronous>, transform_indices = @transform_4, window_bounds = array<i64: 128, 128>}, {pipeline_mode = #tpu.pipeline_mode<synchronous>, transform_indices = @transform_5, window_bounds = array<i64: 1, 128>}, {pipeline_mode = #tpu.pipeline_mode<synchronous>, transform_indices = @transform_6, window_bounds = array<i64: 1, 128>}, {pipeline_mode = #tpu.pipeline_mode<synchronous>, transform_indices = @transform_7, window_bounds = array<i64: 1, 128>}, {transform_indices = @transform_8, window_bounds = array<i64: 1, 16, 128>}]} {
    %c0 = arith.constant 0 : index
    %c0_0 = arith.constant 0 : index
    %c0_1 = arith.constant 0 : index
    %0 = vector.load %arg1[%c0, %c0_0, %c0_1] : memref<1x16x128xf32, #tpu.memory_space<vmem>>, vector<1x16x128xf32>
    %1 = vector.shape_cast %0 : vector<1x16x128xf32> to vector<16x128xf32>
    %c0_2 = arith.constant 0 : index
    %c0_3 = arith.constant 0 : index
    %2 = vector.load %arg3[%c0_2, %c0_3] : memref<128x384xf32, #tpu.memory_space<vmem>>, vector<128x384xf32>
    %cst = arith.constant dense<0.000000e+00> : vector<16x384xf32>
    %3 = tpu.matmul %1, %2, %cst {dimension_numbers = #tpu.dot_dimension_numbers<[1], [0], [0], [1], [0, 0, 1, 1], [], []>} : vector<16x128xf32>, vector<128x384xf32>, vector<16x384xf32> -> vector<16x384xf32>
    %c0_4 = arith.constant 0 : index
    %c0_5 = arith.constant 0 : index
    %4 = vector.load %arg4[%c0_4, %c0_5] : memref<1x384xf32, #tpu.memory_space<vmem>>, vector<1x384xf32>
    %5 = vector.broadcast %4 : vector<1x384xf32> to vector<16x384xf32>
    %6 = arith.addf %3, %5 : vector<16x384xf32>
    %c0_6 = arith.constant 0 : index
    %c0_7 = arith.constant 0 : index
    %c0_8 = arith.constant 0 : index
    %7 = vector.load %arg2[%c0_6, %c0_7, %c0_8] : memref<1x1x16xf32, #tpu.memory_space<vmem>>, vector<1x1x16xf32>
    %8 = vector.shape_cast %7 : vector<1x1x16xf32> to vector<1x16xf32>
    %c0_9 = arith.constant 0 : index
    %c0_10 = arith.constant 0 : index
    %9 = vector.load %arg6[%c0_9, %c0_10] : memref<1x128xf32, #tpu.memory_space<vmem>>, vector<1x128xf32>
    %10 = vector.broadcast %9 : vector<1x128xf32> to vector<16x128xf32>
    %11 = arith.addf %1, %10 : vector<16x128xf32>
    %12 = vector.extract_strided_slice %6 {offsets = [0, 0], sizes = [16, 32], strides = [1, 1]} : vector<16x384xf32> to vector<16x32xf32>
    %13 = vector.extract_strided_slice %6 {offsets = [0, 128], sizes = [16, 32], strides = [1, 1]} : vector<16x384xf32> to vector<16x32xf32>
    %14 = vector.extract_strided_slice %6 {offsets = [0, 256], sizes = [16, 32], strides = [1, 1]} : vector<16x384xf32> to vector<16x32xf32>
    %cst_11 = arith.constant dense<0.000000e+00> : vector<16x16xf32>
    %15 = tpu.matmul %12, %13, %cst_11 {dimension_numbers = #tpu.dot_dimension_numbers<[1], [1], [0], [0], [0, 0, 1, 0], [], []>} : vector<16x32xf32>, vector<16x32xf32>, vector<16x16xf32> -> vector<16x16xf32>
    %cst_12 = arith.constant 0.176776692 : f32
    %16 = vector.broadcast %cst_12 : f32 to vector<16x16xf32>
    %17 = arith.mulf %15, %16 : vector<16x16xf32>
    %18 = vector.broadcast %8 : vector<1x16xf32> to vector<16x16xf32>
    %19 = arith.addf %17, %18 : vector<16x16xf32>
    %cst_13 = arith.constant dense<0xFF800000> : vector<16xf32>
    %20 = vector.multi_reduction <maximumf>, %19, %cst_13 [1] : vector<16x16xf32> to vector<16xf32>
    %21 = vector.shape_cast %20 : vector<16xf32> to vector<16x1xf32>
    %22 = vector.broadcast %21 : vector<16x1xf32> to vector<16x16xf32>
    %23 = arith.subf %19, %22 : vector<16x16xf32>
    %24 = math.exp %23 : vector<16x16xf32>
    %cst_14 = arith.constant dense<0.000000e+00> : vector<16xf32>
    %25 = vector.multi_reduction <add>, %24, %cst_14 [1] : vector<16x16xf32> to vector<16xf32>
    %26 = vector.shape_cast %25 : vector<16xf32> to vector<16x1xf32>
    %27 = tpu.reciprocal %26 {approx = true} : vector<16x1xf32> -> vector<16x1xf32>
    %28 = vector.broadcast %27 : vector<16x1xf32> to vector<16x16xf32>
    %29 = arith.mulf %24, %28 : vector<16x16xf32>
    %cst_15 = arith.constant dense<0.000000e+00> : vector<16x32xf32>
    %30 = tpu.matmul %29, %14, %cst_15 {dimension_numbers = #tpu.dot_dimension_numbers<[1], [0], [0], [1], [0, 0, 1, 1], [], []>} : vector<16x16xf32>, vector<16x32xf32>, vector<16x32xf32> -> vector<16x32xf32>
    %c0_16 = arith.constant 0 : index
    %c0_17 = arith.constant 0 : index
    %31 = vector.load %arg5[%c0_16, %c0_17] : memref<128x128xf32, #tpu.memory_space<vmem>>, vector<32x128xf32>
    %cst_18 = arith.constant dense<0.000000e+00> : vector<16x128xf32>
    %32 = tpu.matmul %30, %31, %cst_18 {dimension_numbers = #tpu.dot_dimension_numbers<[1], [0], [0], [1], [0, 0, 1, 1], [], []>} : vector<16x32xf32>, vector<32x128xf32>, vector<16x128xf32> -> vector<16x128xf32>
    %33 = arith.addf %11, %32 : vector<16x128xf32>
    %34 = vector.extract_strided_slice %6 {offsets = [0, 32], sizes = [16, 32], strides = [1, 1]} : vector<16x384xf32> to vector<16x32xf32>
    %35 = vector.extract_strided_slice %6 {offsets = [0, 160], sizes = [16, 32], strides = [1, 1]} : vector<16x384xf32> to vector<16x32xf32>
    %36 = vector.extract_strided_slice %6 {offsets = [0, 288], sizes = [16, 32], strides = [1, 1]} : vector<16x384xf32> to vector<16x32xf32>
    %cst_19 = arith.constant dense<0.000000e+00> : vector<16x16xf32>
    %37 = tpu.matmul %34, %35, %cst_19 {dimension_numbers = #tpu.dot_dimension_numbers<[1], [1], [0], [0], [0, 0, 1, 0], [], []>} : vector<16x32xf32>, vector<16x32xf32>, vector<16x16xf32> -> vector<16x16xf32>
    %cst_20 = arith.constant 0.176776692 : f32
    %38 = vector.broadcast %cst_20 : f32 to vector<16x16xf32>
    %39 = arith.mulf %37, %38 : vector<16x16xf32>
    %40 = vector.broadcast %8 : vector<1x16xf32> to vector<16x16xf32>
    %41 = arith.addf %39, %40 : vector<16x16xf32>
    %cst_21 = arith.constant dense<0xFF800000> : vector<16xf32>
    %42 = vector.multi_reduction <maximumf>, %41, %cst_21 [1] : vector<16x16xf32> to vector<16xf32>
    %43 = vector.shape_cast %42 : vector<16xf32> to vector<16x1xf32>
    %44 = vector.broadcast %43 : vector<16x1xf32> to vector<16x16xf32>
    %45 = arith.subf %41, %44 : vector<16x16xf32>
    %46 = math.exp %45 : vector<16x16xf32>
    %cst_22 = arith.constant dense<0.000000e+00> : vector<16xf32>
    %47 = vector.multi_reduction <add>, %46, %cst_22 [1] : vector<16x16xf32> to vector<16xf32>
    %48 = vector.shape_cast %47 : vector<16xf32> to vector<16x1xf32>
    %49 = tpu.reciprocal %48 {approx = true} : vector<16x1xf32> -> vector<16x1xf32>
    %50 = vector.broadcast %49 : vector<16x1xf32> to vector<16x16xf32>
    %51 = arith.mulf %46, %50 : vector<16x16xf32>
    %cst_23 = arith.constant dense<0.000000e+00> : vector<16x32xf32>
    %52 = tpu.matmul %51, %36, %cst_23 {dimension_numbers = #tpu.dot_dimension_numbers<[1], [0], [0], [1], [0, 0, 1, 1], [], []>} : vector<16x16xf32>, vector<16x32xf32>, vector<16x32xf32> -> vector<16x32xf32>
    %c32 = arith.constant 32 : index
    %c0_24 = arith.constant 0 : index
    %53 = vector.load %arg5[%c32, %c0_24] : memref<128x128xf32, #tpu.memory_space<vmem>>, vector<32x128xf32>
    %cst_25 = arith.constant dense<0.000000e+00> : vector<16x128xf32>
    %54 = tpu.matmul %52, %53, %cst_25 {dimension_numbers = #tpu.dot_dimension_numbers<[1], [0], [0], [1], [0, 0, 1, 1], [], []>} : vector<16x32xf32>, vector<32x128xf32>, vector<16x128xf32> -> vector<16x128xf32>
    %55 = arith.addf %33, %54 : vector<16x128xf32>
    %56 = vector.extract_strided_slice %6 {offsets = [0, 64], sizes = [16, 32], strides = [1, 1]} : vector<16x384xf32> to vector<16x32xf32>
    %57 = vector.extract_strided_slice %6 {offsets = [0, 192], sizes = [16, 32], strides = [1, 1]} : vector<16x384xf32> to vector<16x32xf32>
    %58 = vector.extract_strided_slice %6 {offsets = [0, 320], sizes = [16, 32], strides = [1, 1]} : vector<16x384xf32> to vector<16x32xf32>
    %cst_26 = arith.constant dense<0.000000e+00> : vector<16x16xf32>
    %59 = tpu.matmul %56, %57, %cst_26 {dimension_numbers = #tpu.dot_dimension_numbers<[1], [1], [0], [0], [0, 0, 1, 0], [], []>} : vector<16x32xf32>, vector<16x32xf32>, vector<16x16xf32> -> vector<16x16xf32>
    %cst_27 = arith.constant 0.176776692 : f32
    %60 = vector.broadcast %cst_27 : f32 to vector<16x16xf32>
    %61 = arith.mulf %59, %60 : vector<16x16xf32>
    %62 = vector.broadcast %8 : vector<1x16xf32> to vector<16x16xf32>
    %63 = arith.addf %61, %62 : vector<16x16xf32>
    %cst_28 = arith.constant dense<0xFF800000> : vector<16xf32>
    %64 = vector.multi_reduction <maximumf>, %63, %cst_28 [1] : vector<16x16xf32> to vector<16xf32>
    %65 = vector.shape_cast %64 : vector<16xf32> to vector<16x1xf32>
    %66 = vector.broadcast %65 : vector<16x1xf32> to vector<16x16xf32>
    %67 = arith.subf %63, %66 : vector<16x16xf32>
    %68 = math.exp %67 : vector<16x16xf32>
    %cst_29 = arith.constant dense<0.000000e+00> : vector<16xf32>
    %69 = vector.multi_reduction <add>, %68, %cst_29 [1] : vector<16x16xf32> to vector<16xf32>
    %70 = vector.shape_cast %69 : vector<16xf32> to vector<16x1xf32>
    %71 = tpu.reciprocal %70 {approx = true} : vector<16x1xf32> -> vector<16x1xf32>
    %72 = vector.broadcast %71 : vector<16x1xf32> to vector<16x16xf32>
    %73 = arith.mulf %68, %72 : vector<16x16xf32>
    %cst_30 = arith.constant dense<0.000000e+00> : vector<16x32xf32>
    %74 = tpu.matmul %73, %58, %cst_30 {dimension_numbers = #tpu.dot_dimension_numbers<[1], [0], [0], [1], [0, 0, 1, 1], [], []>} : vector<16x16xf32>, vector<16x32xf32>, vector<16x32xf32> -> vector<16x32xf32>
    %c64 = arith.constant 64 : index
    %c0_31 = arith.constant 0 : index
    %75 = vector.load %arg5[%c64, %c0_31] : memref<128x128xf32, #tpu.memory_space<vmem>>, vector<32x128xf32>
    %cst_32 = arith.constant dense<0.000000e+00> : vector<16x128xf32>
    %76 = tpu.matmul %74, %75, %cst_32 {dimension_numbers = #tpu.dot_dimension_numbers<[1], [0], [0], [1], [0, 0, 1, 1], [], []>} : vector<16x32xf32>, vector<32x128xf32>, vector<16x128xf32> -> vector<16x128xf32>
    %77 = arith.addf %55, %76 : vector<16x128xf32>
    %78 = vector.extract_strided_slice %6 {offsets = [0, 96], sizes = [16, 32], strides = [1, 1]} : vector<16x384xf32> to vector<16x32xf32>
    %79 = vector.extract_strided_slice %6 {offsets = [0, 224], sizes = [16, 32], strides = [1, 1]} : vector<16x384xf32> to vector<16x32xf32>
    %80 = vector.extract_strided_slice %6 {offsets = [0, 352], sizes = [16, 32], strides = [1, 1]} : vector<16x384xf32> to vector<16x32xf32>
    %cst_33 = arith.constant dense<0.000000e+00> : vector<16x16xf32>
    %81 = tpu.matmul %78, %79, %cst_33 {dimension_numbers = #tpu.dot_dimension_numbers<[1], [1], [0], [0], [0, 0, 1, 0], [], []>} : vector<16x32xf32>, vector<16x32xf32>, vector<16x16xf32> -> vector<16x16xf32>
    %cst_34 = arith.constant 0.176776692 : f32
    %82 = vector.broadcast %cst_34 : f32 to vector<16x16xf32>
    %83 = arith.mulf %81, %82 : vector<16x16xf32>
    %84 = vector.broadcast %8 : vector<1x16xf32> to vector<16x16xf32>
    %85 = arith.addf %83, %84 : vector<16x16xf32>
    %cst_35 = arith.constant dense<0xFF800000> : vector<16xf32>
    %86 = vector.multi_reduction <maximumf>, %85, %cst_35 [1] : vector<16x16xf32> to vector<16xf32>
    %87 = vector.shape_cast %86 : vector<16xf32> to vector<16x1xf32>
    %88 = vector.broadcast %87 : vector<16x1xf32> to vector<16x16xf32>
    %89 = arith.subf %85, %88 : vector<16x16xf32>
    %90 = math.exp %89 : vector<16x16xf32>
    %cst_36 = arith.constant dense<0.000000e+00> : vector<16xf32>
    %91 = vector.multi_reduction <add>, %90, %cst_36 [1] : vector<16x16xf32> to vector<16xf32>
    %92 = vector.shape_cast %91 : vector<16xf32> to vector<16x1xf32>
    %93 = tpu.reciprocal %92 {approx = true} : vector<16x1xf32> -> vector<16x1xf32>
    %94 = vector.broadcast %93 : vector<16x1xf32> to vector<16x16xf32>
    %95 = arith.mulf %90, %94 : vector<16x16xf32>
    %cst_37 = arith.constant dense<0.000000e+00> : vector<16x32xf32>
    %96 = tpu.matmul %95, %80, %cst_37 {dimension_numbers = #tpu.dot_dimension_numbers<[1], [0], [0], [1], [0, 0, 1, 1], [], []>} : vector<16x16xf32>, vector<16x32xf32>, vector<16x32xf32> -> vector<16x32xf32>
    %c96 = arith.constant 96 : index
    %c0_38 = arith.constant 0 : index
    %97 = vector.load %arg5[%c96, %c0_38] : memref<128x128xf32, #tpu.memory_space<vmem>>, vector<32x128xf32>
    %cst_39 = arith.constant dense<0.000000e+00> : vector<16x128xf32>
    %98 = tpu.matmul %96, %97, %cst_39 {dimension_numbers = #tpu.dot_dimension_numbers<[1], [0], [0], [1], [0, 0, 1, 1], [], []>} : vector<16x32xf32>, vector<32x128xf32>, vector<16x128xf32> -> vector<16x128xf32>
    %99 = arith.addf %77, %98 : vector<16x128xf32>
    %c0_40 = arith.constant 0 : index
    %c0_41 = arith.constant 0 : index
    %100 = vector.load %arg7[%c0_40, %c0_41] : memref<1x128xf32, #tpu.memory_space<vmem>>, vector<1x128xf32>
    %c0_42 = arith.constant 0 : index
    %c0_43 = arith.constant 0 : index
    %101 = vector.load %arg8[%c0_42, %c0_43] : memref<1x128xf32, #tpu.memory_space<vmem>>, vector<1x128xf32>
    %cst_44 = arith.constant dense<0.000000e+00> : vector<16xf32>
    %102 = vector.multi_reduction <add>, %99, %cst_44 [1] : vector<16x128xf32> to vector<16xf32>
    %103 = vector.shape_cast %102 : vector<16xf32> to vector<16x1xf32>
    %cst_45 = arith.constant 1.280000e+02 : f32
    %104 = vector.broadcast %cst_45 : f32 to vector<16x1xf32>
    %105 = arith.divf %103, %104 : vector<16x1xf32>
    %106 = vector.broadcast %105 : vector<16x1xf32> to vector<16x128xf32>
    %107 = arith.subf %99, %106 : vector<16x128xf32>
    %108 = arith.mulf %107, %107 : vector<16x128xf32>
    %cst_46 = arith.constant dense<0.000000e+00> : vector<16xf32>
    %109 = vector.multi_reduction <add>, %108, %cst_46 [1] : vector<16x128xf32> to vector<16xf32>
    %110 = vector.shape_cast %109 : vector<16xf32> to vector<16x1xf32>
    %cst_47 = arith.constant 1.280000e+02 : f32
    %111 = vector.broadcast %cst_47 : f32 to vector<16x1xf32>
    %112 = arith.divf %110, %111 : vector<16x1xf32>
    %cst_48 = arith.constant 9.99999996E-13 : f32
    %113 = vector.broadcast %cst_48 : f32 to vector<16x1xf32>
    %114 = arith.addf %112, %113 : vector<16x1xf32>
    %115 = math.rsqrt %114 : vector<16x1xf32>
    %116 = vector.broadcast %105 : vector<16x1xf32> to vector<16x128xf32>
    %117 = arith.subf %99, %116 : vector<16x128xf32>
    %118 = vector.broadcast %115 : vector<16x1xf32> to vector<16x128xf32>
    %119 = arith.mulf %117, %118 : vector<16x128xf32>
    %120 = vector.broadcast %100 : vector<1x128xf32> to vector<16x128xf32>
    %121 = arith.mulf %119, %120 : vector<16x128xf32>
    %122 = vector.broadcast %101 : vector<1x128xf32> to vector<16x128xf32>
    %123 = arith.addf %121, %122 : vector<16x128xf32>
    %c0_49 = arith.constant 0 : index
    %c0_50 = arith.constant 0 : index
    %c0_51 = arith.constant 0 : index
    %124 = vector.load %arg9[%c0_49, %c0_50, %c0_51] : memref<1x16x128xf32, #tpu.memory_space<vmem>>, vector<1x16x128xf32>
    %125 = vector.shape_cast %124 : vector<1x16x128xf32> to vector<16x128xf32>
    %126 = vector.shape_cast %123 : vector<16x128xf32> to vector<1x16x128xf32>
    tpu.vector_store %arg9[%c0_49, %c0_50, %c0_51], %126 {strides = array<i32>} : memref<1x16x128xf32, #tpu.memory_space<vmem>>, vector<1x16x128xf32>,
    return
  }
  func.func @transform_0(%arg0: i32) -> (i32, i32, i32) {
    %c0_i32 = arith.constant 0 : i32
    %c0_i32_0 = arith.constant 0 : i32
    %c0_i32_1 = arith.constant 0 : i32
    return %arg0, %c0_i32, %c0_i32_0 : i32, i32, i32
  }
  func.func @transform_1(%arg0: i32) -> (i32, i32, i32) {
    %c0_i32 = arith.constant 0 : i32
    %c0_i32_0 = arith.constant 0 : i32
    %c0_i32_1 = arith.constant 0 : i32
    return %arg0, %c0_i32, %c0_i32_0 : i32, i32, i32
  }
  func.func @transform_2(%arg0: i32) -> (i32, i32) {
    %c0_i32 = arith.constant 0 : i32
    %c0_i32_0 = arith.constant 0 : i32
    %c0_i32_1 = arith.constant 0 : i32
    return %c0_i32, %c0_i32_0 : i32, i32
  }
  func.func @transform_3(%arg0: i32) -> (i32, i32) {
    %c0_i32 = arith.constant 0 : i32
    %c0_i32_0 = arith.constant 0 : i32
    %c0_i32_1 = arith.constant 0 : i32
    return %c0_i32, %c0_i32_0 : i32, i32
  }
  func.func @transform_4(%arg0: i32) -> (i32, i32) {
    %c0_i32 = arith.constant 0 : i32
    %c0_i32_0 = arith.constant 0 : i32
    %c0_i32_1 = arith.constant 0 : i32
    return %c0_i32, %c0_i32_0 : i32, i32
  }
  func.func @transform_5(%arg0: i32) -> (i32, i32) {
    %c0_i32 = arith.constant 0 : i32
    %c0_i32_0 = arith.constant 0 : i32
    %c0_i32_1 = arith.constant 0 : i32
    return %c0_i32, %c0_i32_0 : i32, i32
  }
  func.func @transform_6(%arg0: i32) -> (i32, i32) {
    %c0_i32 = arith.constant 0 : i32
    %c0_i32_0 = arith.constant 0 : i32
    %c0_i32_1 = arith.constant 0 : i32
    return %c0_i32, %c0_i32_0 : i32, i32
  }
  func.func @transform_7(%arg0: i32) -> (i32, i32) {
    %c0_i32 = arith.constant 0 : i32
    %c0_i32_0 = arith.constant 0 : i32
    %c0_i32_1 = arith.constant 0 : i32
    return %c0_i32, %c0_i32_0 : i32, i32
  }
  func.func @transform_8(%arg0: i32) -> (i32, i32, i32) {
    %c0_i32 = arith.constant 0 : i32
    %c0_i32_0 = arith.constant 0 : i32
    %c0_i32_1 = arith.constant 0 : i32
    return %arg0, %c0_i32, %c0_i32_0 : i32, i32, i32
  }
}

module attributes {stable_mosaic.version = 11 : i64} {
  func.func @_attn_block_kernel(%arg0: i32, %arg1: memref<1x16x128xf32, #tpu.memory_space<vmem>>, %arg2: memref<1x1x16xf32, #tpu.memory_space<vmem>>, %arg3: memref<128x384xf32, #tpu.memory_space<vmem>>, %arg4: memref<1x384xf32, #tpu.memory_space<vmem>>, %arg5: memref<128x128xf32, #tpu.memory_space<vmem>>, %arg6: memref<1x128xf32, #tpu.memory_space<vmem>>, %arg7: memref<1x128xf32, #tpu.memory_space<vmem>>, %arg8: memref<1x128xf32, #tpu.memory_space<vmem>>, %arg9: memref<1x16x128xf32, #tpu.memory_space<vmem>>) attributes {dimension_semantics = [#tpu.dimension_semantics<parallel>], iteration_bounds = array<i64: 2>, scalar_prefetch = 0 : i64, scratch_operands = 0 : i64, tpu.core_type = #tpu.core_type<tc>, window_params = [{transform_indices = @transform_0, window_bounds = array<i64: 1, 16, 128>}, {transform_indices = @transform_1, window_bounds = array<i64: 1, 1, 16>}, {pipeline_mode = #tpu.pipeline_mode<synchronous>, transform_indices = @transform_2, window_bounds = array<i64: 128, 384>}, {pipeline_mode = #tpu.pipeline_mode<synchronous>, transform_indices = @transform_3, window_bounds = array<i64: 1, 384>}, {pipeline_mode = #tpu.pipeline_mode<synchronous>, transform_indices = @transform_4, window_bounds = array<i64: 128, 128>}, {pipeline_mode = #tpu.pipeline_mode<synchronous>, transform_indices = @transform_5, window_bounds = array<i64: 1, 128>}, {pipeline_mode = #tpu.pipeline_mode<synchronous>, transform_indices = @transform_6, window_bounds = array<i64: 1, 128>}, {pipeline_mode = #tpu.pipeline_mode<synchronous>, transform_indices = @transform_7, window_bounds = array<i64: 1, 128>}, {transform_indices = @transform_8, window_bounds = array<i64: 1, 16, 128>}]} {
    %c0 = arith.constant 0 : index
    %c0_0 = arith.constant 0 : index
    %c0_1 = arith.constant 0 : index
    %0 = vector.load %arg1[%c0, %c0_0, %c0_1] : memref<1x16x128xf32, #tpu.memory_space<vmem>>, vector<1x16x128xf32>
    %1 = vector.shape_cast %0 : vector<1x16x128xf32> to vector<16x128xf32>
    %c0_2 = arith.constant 0 : index
    %c0_3 = arith.constant 0 : index
    %2 = vector.load %arg3[%c0_2, %c0_3] : memref<128x384xf32, #tpu.memory_space<vmem>>, vector<128x384xf32>
    %cst = arith.constant dense<0.000000e+00> : vector<16x384xf32>
    %3 = tpu.matmul %1, %2, %cst {dimension_numbers = #tpu.dot_dimension_numbers<[1], [0], [0], [1], [0, 0, 1, 1], [], []>} : vector<16x128xf32>, vector<128x384xf32>, vector<16x384xf32> -> vector<16x384xf32>
    %c0_4 = arith.constant 0 : index
    %c0_5 = arith.constant 0 : index
    %4 = vector.load %arg4[%c0_4, %c0_5] : memref<1x384xf32, #tpu.memory_space<vmem>>, vector<1x384xf32>
    %5 = vector.broadcast %4 : vector<1x384xf32> to vector<16x384xf32>
    %6 = arith.addf %3, %5 : vector<16x384xf32>
    %c0_6 = arith.constant 0 : index
    %c0_7 = arith.constant 0 : index
    %c0_8 = arith.constant 0 : index
    %7 = vector.load %arg2[%c0_6, %c0_7, %c0_8] : memref<1x1x16xf32, #tpu.memory_space<vmem>>, vector<1x1x16xf32>
    %8 = vector.shape_cast %7 : vector<1x1x16xf32> to vector<1x16xf32>
    %c0_9 = arith.constant 0 : index
    %c0_10 = arith.constant 0 : index
    %9 = vector.load %arg6[%c0_9, %c0_10] : memref<1x128xf32, #tpu.memory_space<vmem>>, vector<1x128xf32>
    %10 = vector.broadcast %9 : vector<1x128xf32> to vector<16x128xf32>
    %11 = arith.addf %1, %10 : vector<16x128xf32>
    %12 = vector.extract_strided_slice %6 {offsets = [0, 0], sizes = [16, 32], strides = [1, 1]} : vector<16x384xf32> to vector<16x32xf32>
    %13 = vector.extract_strided_slice %6 {offsets = [0, 128], sizes = [16, 32], strides = [1, 1]} : vector<16x384xf32> to vector<16x32xf32>
    %14 = vector.extract_strided_slice %6 {offsets = [0, 256], sizes = [16, 32], strides = [1, 1]} : vector<16x384xf32> to vector<16x32xf32>
    %cst_11 = arith.constant dense<0.000000e+00> : vector<16x16xf32>
    %15 = tpu.matmul %12, %13, %cst_11 {dimension_numbers = #tpu.dot_dimension_numbers<[1], [1], [0], [0], [0, 0, 1, 0], [], []>} : vector<16x32xf32>, vector<16x32xf32>, vector<16x16xf32> -> vector<16x16xf32>
    %cst_12 = arith.constant 0.176776692 : f32
    %16 = vector.broadcast %cst_12 : f32 to vector<16x16xf32>
    %17 = arith.mulf %15, %16 : vector<16x16xf32>
    %18 = vector.broadcast %8 : vector<1x16xf32> to vector<16x16xf32>
    %19 = arith.addf %17, %18 : vector<16x16xf32>
    %cst_13 = arith.constant dense<0xFF800000> : vector<16xf32>
    %20 = vector.multi_reduction <maximumf>, %19, %cst_13 [1] : vector<16x16xf32> to vector<16xf32>
    %21 = vector.shape_cast %20 : vector<16xf32> to vector<16x1xf32>
    %22 = vector.broadcast %21 : vector<16x1xf32> to vector<16x16xf32>
    %23 = arith.subf %19, %22 : vector<16x16xf32>
    %24 = math.exp %23 : vector<16x16xf32>
    %cst_14 = arith.constant dense<0.000000e+00> : vector<16xf32>
    %25 = vector.multi_reduction <add>, %24, %cst_14 [1] : vector<16x16xf32> to vector<16xf32>
    %26 = vector.shape_cast %25 : vector<16xf32> to vector<16x1xf32>
    %27 = tpu.reciprocal %26 {approx = true} : vector<16x1xf32> -> vector<16x1xf32>
    %28 = vector.broadcast %27 : vector<16x1xf32> to vector<16x16xf32>
    %29 = arith.mulf %24, %28 : vector<16x16xf32>
    %cst_15 = arith.constant dense<0.000000e+00> : vector<16x32xf32>
    %30 = tpu.matmul %29, %14, %cst_15 {dimension_numbers = #tpu.dot_dimension_numbers<[1], [0], [0], [1], [0, 0, 1, 1], [], []>} : vector<16x16xf32>, vector<16x32xf32>, vector<16x32xf32> -> vector<16x32xf32>
    %c0_16 = arith.constant 0 : index
    %c0_17 = arith.constant 0 : index
    %31 = vector.load %arg5[%c0_16, %c0_17] : memref<128x128xf32, #tpu.memory_space<vmem>>, vector<32x128xf32>
    %cst_18 = arith.constant dense<0.000000e+00> : vector<16x128xf32>
    %32 = tpu.matmul %30, %31, %cst_18 {dimension_numbers = #tpu.dot_dimension_numbers<[1], [0], [0], [1], [0, 0, 1, 1], [], []>} : vector<16x32xf32>, vector<32x128xf32>, vector<16x128xf32> -> vector<16x128xf32>
    %33 = arith.addf %11, %32 : vector<16x128xf32>
    %34 = vector.extract_strided_slice %6 {offsets = [0, 32], sizes = [16, 32], strides = [1, 1]} : vector<16x384xf32> to vector<16x32xf32>
    %35 = vector.extract_strided_slice %6 {offsets = [0, 160], sizes = [16, 32], strides = [1, 1]} : vector<16x384xf32> to vector<16x32xf32>
    %36 = vector.extract_strided_slice %6 {offsets = [0, 288], sizes = [16, 32], strides = [1, 1]} : vector<16x384xf32> to vector<16x32xf32>
    %cst_19 = arith.constant dense<0.000000e+00> : vector<16x16xf32>
    %37 = tpu.matmul %34, %35, %cst_19 {dimension_numbers = #tpu.dot_dimension_numbers<[1], [1], [0], [0], [0, 0, 1, 0], [], []>} : vector<16x32xf32>, vector<16x32xf32>, vector<16x16xf32> -> vector<16x16xf32>
    %cst_20 = arith.constant 0.176776692 : f32
    %38 = vector.broadcast %cst_20 : f32 to vector<16x16xf32>
    %39 = arith.mulf %37, %38 : vector<16x16xf32>
    %40 = vector.broadcast %8 : vector<1x16xf32> to vector<16x16xf32>
    %41 = arith.addf %39, %40 : vector<16x16xf32>
    %cst_21 = arith.constant dense<0xFF800000> : vector<16xf32>
    %42 = vector.multi_reduction <maximumf>, %41, %cst_21 [1] : vector<16x16xf32> to vector<16xf32>
    %43 = vector.shape_cast %42 : vector<16xf32> to vector<16x1xf32>
    %44 = vector.broadcast %43 : vector<16x1xf32> to vector<16x16xf32>
    %45 = arith.subf %41, %44 : vector<16x16xf32>
    %46 = math.exp %45 : vector<16x16xf32>
    %cst_22 = arith.constant dense<0.000000e+00> : vector<16xf32>
    %47 = vector.multi_reduction <add>, %46, %cst_22 [1] : vector<16x16xf32> to vector<16xf32>
    %48 = vector.shape_cast %47 : vector<16xf32> to vector<16x1xf32>
    %49 = tpu.reciprocal %48 {approx = true} : vector<16x1xf32> -> vector<16x1xf32>
    %50 = vector.broadcast %49 : vector<16x1xf32> to vector<16x16xf32>
    %51 = arith.mulf %46, %50 : vector<16x16xf32>
    %cst_23 = arith.constant dense<0.000000e+00> : vector<16x32xf32>
    %52 = tpu.matmul %51, %36, %cst_23 {dimension_numbers = #tpu.dot_dimension_numbers<[1], [0], [0], [1], [0, 0, 1, 1], [], []>} : vector<16x16xf32>, vector<16x32xf32>, vector<16x32xf32> -> vector<16x32xf32>
    %c32 = arith.constant 32 : index
    %c0_24 = arith.constant 0 : index
    %53 = vector.load %arg5[%c32, %c0_24] : memref<128x128xf32, #tpu.memory_space<vmem>>, vector<32x128xf32>
    %cst_25 = arith.constant dense<0.000000e+00> : vector<16x128xf32>
    %54 = tpu.matmul %52, %53, %cst_25 {dimension_numbers = #tpu.dot_dimension_numbers<[1], [0], [0], [1], [0, 0, 1, 1], [], []>} : vector<16x32xf32>, vector<32x128xf32>, vector<16x128xf32> -> vector<16x128xf32>
    %55 = arith.addf %33, %54 : vector<16x128xf32>
    %56 = vector.extract_strided_slice %6 {offsets = [0, 64], sizes = [16, 32], strides = [1, 1]} : vector<16x384xf32> to vector<16x32xf32>
    %57 = vector.extract_strided_slice %6 {offsets = [0, 192], sizes = [16, 32], strides = [1, 1]} : vector<16x384xf32> to vector<16x32xf32>
    %58 = vector.extract_strided_slice %6 {offsets = [0, 320], sizes = [16, 32], strides = [1, 1]} : vector<16x384xf32> to vector<16x32xf32>
    %cst_26 = arith.constant dense<0.000000e+00> : vector<16x16xf32>
    %59 = tpu.matmul %56, %57, %cst_26 {dimension_numbers = #tpu.dot_dimension_numbers<[1], [1], [0], [0], [0, 0, 1, 0], [], []>} : vector<16x32xf32>, vector<16x32xf32>, vector<16x16xf32> -> vector<16x16xf32>
    %cst_27 = arith.constant 0.176776692 : f32
    %60 = vector.broadcast %cst_27 : f32 to vector<16x16xf32>
    %61 = arith.mulf %59, %60 : vector<16x16xf32>
    %62 = vector.broadcast %8 : vector<1x16xf32> to vector<16x16xf32>
    %63 = arith.addf %61, %62 : vector<16x16xf32>
    %cst_28 = arith.constant dense<0xFF800000> : vector<16xf32>
    %64 = vector.multi_reduction <maximumf>, %63, %cst_28 [1] : vector<16x16xf32> to vector<16xf32>
    %65 = vector.shape_cast %64 : vector<16xf32> to vector<16x1xf32>
    %66 = vector.broadcast %65 : vector<16x1xf32> to vector<16x16xf32>
    %67 = arith.subf %63, %66 : vector<16x16xf32>
    %68 = math.exp %67 : vector<16x16xf32>
    %cst_29 = arith.constant dense<0.000000e+00> : vector<16xf32>
    %69 = vector.multi_reduction <add>, %68, %cst_29 [1] : vector<16x16xf32> to vector<16xf32>
    %70 = vector.shape_cast %69 : vector<16xf32> to vector<16x1xf32>
    %71 = tpu.reciprocal %70 {approx = true} : vector<16x1xf32> -> vector<16x1xf32>
    %72 = vector.broadcast %71 : vector<16x1xf32> to vector<16x16xf32>
    %73 = arith.mulf %68, %72 : vector<16x16xf32>
    %cst_30 = arith.constant dense<0.000000e+00> : vector<16x32xf32>
    %74 = tpu.matmul %73, %58, %cst_30 {dimension_numbers = #tpu.dot_dimension_numbers<[1], [0], [0], [1], [0, 0, 1, 1], [], []>} : vector<16x16xf32>, vector<16x32xf32>, vector<16x32xf32> -> vector<16x32xf32>
    %c64 = arith.constant 64 : index
    %c0_31 = arith.constant 0 : index
    %75 = vector.load %arg5[%c64, %c0_31] : memref<128x128xf32, #tpu.memory_space<vmem>>, vector<32x128xf32>
    %cst_32 = arith.constant dense<0.000000e+00> : vector<16x128xf32>
    %76 = tpu.matmul %74, %75, %cst_32 {dimension_numbers = #tpu.dot_dimension_numbers<[1], [0], [0], [1], [0, 0, 1, 1], [], []>} : vector<16x32xf32>, vector<32x128xf32>, vector<16x128xf32> -> vector<16x128xf32>
    %77 = arith.addf %55, %76 : vector<16x128xf32>
    %78 = vector.extract_strided_slice %6 {offsets = [0, 96], sizes = [16, 32], strides = [1, 1]} : vector<16x384xf32> to vector<16x32xf32>
    %79 = vector.extract_strided_slice %6 {offsets = [0, 224], sizes = [16, 32], strides = [1, 1]} : vector<16x384xf32> to vector<16x32xf32>
    %80 = vector.extract_strided_slice %6 {offsets = [0, 352], sizes = [16, 32], strides = [1, 1]} : vector<16x384xf32> to vector<16x32xf32>
    %cst_33 = arith.constant dense<0.000000e+00> : vector<16x16xf32>
    %81 = tpu.matmul %78, %79, %cst_33 {dimension_numbers = #tpu.dot_dimension_numbers<[1], [1], [0], [0], [0, 0, 1, 0], [], []>} : vector<16x32xf32>, vector<16x32xf32>, vector<16x16xf32> -> vector<16x16xf32>
    %cst_34 = arith.constant 0.176776692 : f32
    %82 = vector.broadcast %cst_34 : f32 to vector<16x16xf32>
    %83 = arith.mulf %81, %82 : vector<16x16xf32>
    %84 = vector.broadcast %8 : vector<1x16xf32> to vector<16x16xf32>
    %85 = arith.addf %83, %84 : vector<16x16xf32>
    %cst_35 = arith.constant dense<0xFF800000> : vector<16xf32>
    %86 = vector.multi_reduction <maximumf>, %85, %cst_35 [1] : vector<16x16xf32> to vector<16xf32>
    %87 = vector.shape_cast %86 : vector<16xf32> to vector<16x1xf32>
    %88 = vector.broadcast %87 : vector<16x1xf32> to vector<16x16xf32>
    %89 = arith.subf %85, %88 : vector<16x16xf32>
    %90 = math.exp %89 : vector<16x16xf32>
    %cst_36 = arith.constant dense<0.000000e+00> : vector<16xf32>
    %91 = vector.multi_reduction <add>, %90, %cst_36 [1] : vector<16x16xf32> to vector<16xf32>
    %92 = vector.shape_cast %91 : vector<16xf32> to vector<16x1xf32>
    %93 = tpu.reciprocal %92 {approx = true} : vector<16x1xf32> -> vector<16x1xf32>
    %94 = vector.broadcast %93 : vector<16x1xf32> to vector<16x16xf32>
    %95 = arith.mulf %90, %94 : vector<16x16xf32>
    %cst_37 = arith.constant dense<0.000000e+00> : vector<16x32xf32>
    %96 = tpu.matmul %95, %80, %cst_37 {dimension_numbers = #tpu.dot_dimension_numbers<[1], [0], [0], [1], [0, 0, 1, 1], [], []>} : vector<16x16xf32>, vector<16x32xf32>, vector<16x32xf32> -> vector<16x32xf32>
    %c96 = arith.constant 96 : index
    %c0_38 = arith.constant 0 : index
    %97 = vector.load %arg5[%c96, %c0_38] : memref<128x128xf32, #tpu.memory_space<vmem>>, vector<32x128xf32>
    %cst_39 = arith.constant dense<0.000000e+00> : vector<16x128xf32>
    %98 = tpu.matmul %96, %97, %cst_39 {dimension_numbers = #tpu.dot_dimension_numbers<[1], [0], [0], [1], [0, 0, 1, 1], [], []>} : vector<16x32xf32>, vector<32x128xf32>, vector<16x128xf32> -> vector<16x128xf32>
    %99 = arith.addf %77, %98 : vector<16x128xf32>
    %c0_40 = arith.constant 0 : index
    %c0_41 = arith.constant 0 : index
    %100 = vector.load %arg7[%c0_40, %c0_41] : memref<1x128xf32, #tpu.memory_space<vmem>>, vector<1x128xf32>
    %c0_42 = arith.constant 0 : index
    %c0_43 = arith.constant 0 : index
    %101 = vector.load %arg8[%c0_42, %c0_43] : memref<1x128xf32, #tpu.memory_space<vmem>>, vector<1x128xf32>
    %cst_44 = arith.constant dense<0.000000e+00> : vector<16xf32>
    %102 = vector.multi_reduction <add>, %99, %cst_44 [1] : vector<16x128xf32> to vector<16xf32>
    %103 = vector.shape_cast %102 : vector<16xf32> to vector<16x1xf32>
    %cst_45 = arith.constant 1.280000e+02 : f32
    %104 = vector.broadcast %cst_45 : f32 to vector<16x1xf32>
    %105 = arith.divf %103, %104 : vector<16x1xf32>
    %106 = vector.broadcast %105 : vector<16x1xf32> to vector<16x128xf32>
    %107 = arith.subf %99, %106 : vector<16x128xf32>
    %108 = arith.mulf %107, %107 : vector<16x128xf32>
    %cst_46 = arith.constant dense<0.000000e+00> : vector<16xf32>
    %109 = vector.multi_reduction <add>, %108, %cst_46 [1] : vector<16x128xf32> to vector<16xf32>
    %110 = vector.shape_cast %109 : vector<16xf32> to vector<16x1xf32>
    %cst_47 = arith.constant 1.280000e+02 : f32
    %111 = vector.broadcast %cst_47 : f32 to vector<16x1xf32>
    %112 = arith.divf %110, %111 : vector<16x1xf32>
    %cst_48 = arith.constant 9.99999996E-13 : f32
    %113 = vector.broadcast %cst_48 : f32 to vector<16x1xf32>
    %114 = arith.addf %112, %113 : vector<16x1xf32>
    %115 = math.rsqrt %114 : vector<16x1xf32>
    %116 = vector.broadcast %105 : vector<16x1xf32> to vector<16x128xf32>
    %117 = arith.subf %99, %116 : vector<16x128xf32>
    %118 = vector.broadcast %115 : vector<16x1xf32> to vector<16x128xf32>
    %119 = arith.mulf %117, %118 : vector<16x128xf32>
    %120 = vector.broadcast %100 : vector<1x128xf32> to vector<16x128xf32>
    %121 = arith.mulf %119, %120 : vector<16x128xf32>
    %122 = vector.broadcast %101 : vector<1x128xf32> to vector<16x128xf32>
    %123 = arith.addf %121, %122 : vector<16x128xf32>
    %c0_49 = arith.constant 0 : index
    %c0_50 = arith.constant 0 : index
    %c0_51 = arith.constant 0 : index
    %124 = vector.load %arg9[%c0_49, %c0_50, %c0_51] : memref<1x16x128xf32, #tpu.memory_space<vmem>>, vector<1x16x128xf32>
    %125 = vector.shape_cast %124 : vector<1x16x128xf32> to vector<16x128xf32>
    %126 = vector.shape_cast %123 : vector<16x128xf32> to vector<1x16x128xf32>
    tpu.vector_store %arg9[%c0_49, %c0_50, %c0_51], %126 {strides = array<i32>} : memref<1x16x128xf32, #tpu.memory_space<vmem>>, vector<1x16x128xf32>,
    return
  }
  func.func @transform_0(%arg0: i32) -> (i32, i32, i32) {
    %c0_i32 = arith.constant 0 : i32
    %c0_i32_0 = arith.constant 0 : i32
    %c0_i32_1 = arith.constant 0 : i32
    return %arg0, %c0_i32, %c0_i32_0 : i32, i32, i32
  }
  func.func @transform_1(%arg0: i32) -> (i32, i32, i32) {
    %c0_i32 = arith.constant 0 : i32
    %c0_i32_0 = arith.constant 0 : i32
    %c0_i32_1 = arith.constant 0 : i32
    return %arg0, %c0_i32, %c0_i32_0 : i32, i32, i32
  }
  func.func @transform_2(%arg0: i32) -> (i32, i32) {
    %c0_i32 = arith.constant 0 : i32
    %c0_i32_0 = arith.constant 0 : i32
    %c0_i32_1 = arith.constant 0 : i32
    return %c0_i32, %c0_i32_0 : i32, i32
  }
  func.func @transform_3(%arg0: i32) -> (i32, i32) {
    %c0_i32 = arith.constant 0 : i32
    %c0_i32_0 = arith.constant 0 : i32
    %c0_i32_1 = arith.constant 0 : i32
    return %c0_i32, %c0_i32_0 : i32, i32
  }
  func.func @transform_4(%arg0: i32) -> (i32, i32) {
    %c0_i32 = arith.constant 0 : i32
    %c0_i32_0 = arith.constant 0 : i32
    %c0_i32_1 = arith.constant 0 : i32
    return %c0_i32, %c0_i32_0 : i32, i32
  }
  func.func @transform_5(%arg0: i32) -> (i32, i32) {
    %c0_i32 = arith.constant 0 : i32
    %c0_i32_0 = arith.constant 0 : i32
    %c0_i32_1 = arith.constant 0 : i32
    return %c0_i32, %c0_i32_0 : i32, i32
  }
  func.func @transform_6(%arg0: i32) -> (i32, i32) {
    %c0_i32 = arith.constant 0 : i32
    %c0_i32_0 = arith.constant 0 : i32
    %c0_i32_1 = arith.constant 0 : i32
    return %c0_i32, %c0_i32_0 : i32, i32
  }
  func.func @transform_7(%arg0: i32) -> (i32, i32) {
    %c0_i32 = arith.constant 0 : i32
    %c0_i32_0 = arith.constant 0 : i32
    %c0_i32_1 = arith.constant 0 : i32
    return %c0_i32, %c0_i32_0 : i32, i32
  }
  func.func @transform_8(%arg0: i32) -> (i32, i32, i32) {
    %c0_i32 = arith.constant 0 : i32
    %c0_i32_0 = arith.constant 0 : i32
    %c0_i32_1 = arith.constant 0 : i32
    return %arg0, %c0_i32, %c0_i32_0 : i32, i32, i32
  }
}

module attributes {stable_mosaic.version = 11 : i64} {
  func.func @_head_kernel(%arg0: i32, %arg1: memref<2x128xf32, #tpu.memory_space<vmem>>, %arg2: memref<128x128xf32, #tpu.memory_space<vmem>>, %arg3: memref<1x128xf32, #tpu.memory_space<vmem>>, %arg4: memref<128x128xf32, #tpu.memory_space<vmem>>, %arg5: memref<1x128xf32, #tpu.memory_space<vmem>>, %arg6: memref<2x128xf32, #tpu.memory_space<vmem>>) attributes {dimension_semantics = [#tpu.dimension_semantics<parallel>], iteration_bounds = array<i64: 1>, scalar_prefetch = 0 : i64, scratch_operands = 0 : i64, tpu.core_type = #tpu.core_type<tc>, window_params = [{pipeline_mode = #tpu.pipeline_mode<synchronous>, transform_indices = @transform_0, window_bounds = array<i64: 2, 128>}, {pipeline_mode = #tpu.pipeline_mode<synchronous>, transform_indices = @transform_1, window_bounds = array<i64: 128, 128>}, {pipeline_mode = #tpu.pipeline_mode<synchronous>, transform_indices = @transform_2, window_bounds = array<i64: 1, 128>}, {pipeline_mode = #tpu.pipeline_mode<synchronous>, transform_indices = @transform_3, window_bounds = array<i64: 128, 128>}, {pipeline_mode = #tpu.pipeline_mode<synchronous>, transform_indices = @transform_4, window_bounds = array<i64: 1, 128>}, {pipeline_mode = #tpu.pipeline_mode<synchronous>, transform_indices = @transform_5, window_bounds = array<i64: 2, 128>}]} {
    %c0 = arith.constant 0 : index
    %c0_0 = arith.constant 0 : index
    %0 = vector.load %arg1[%c0, %c0_0] : memref<2x128xf32, #tpu.memory_space<vmem>>, vector<2x128xf32>
    %c0_1 = arith.constant 0 : index
    %c0_2 = arith.constant 0 : index
    %1 = vector.load %arg2[%c0_1, %c0_2] : memref<128x128xf32, #tpu.memory_space<vmem>>, vector<128x128xf32>
    %cst = arith.constant dense<0.000000e+00> : vector<2x128xf32>
    %2 = tpu.matmul %0, %1, %cst {dimension_numbers = #tpu.dot_dimension_numbers<[1], [0], [0], [1], [0, 0, 1, 1], [], []>} : vector<2x128xf32>, vector<128x128xf32>, vector<2x128xf32> -> vector<2x128xf32>
    %c0_3 = arith.constant 0 : index
    %c0_4 = arith.constant 0 : index
    %3 = vector.load %arg3[%c0_3, %c0_4] : memref<1x128xf32, #tpu.memory_space<vmem>>, vector<1x128xf32>
    %4 = vector.broadcast %3 : vector<1x128xf32> to vector<2x128xf32>
    %5 = arith.addf %2, %4 : vector<2x128xf32>
    %6 = math.tanh %5 : vector<2x128xf32>
    %c0_5 = arith.constant 0 : index
    %c0_6 = arith.constant 0 : index
    %7 = vector.load %arg4[%c0_5, %c0_6] : memref<128x128xf32, #tpu.memory_space<vmem>>, vector<128x128xf32>
    %cst_7 = arith.constant dense<0.000000e+00> : vector<2x128xf32>
    %8 = tpu.matmul %6, %7, %cst_7 {dimension_numbers = #tpu.dot_dimension_numbers<[1], [0], [0], [1], [0, 0, 1, 1], [], []>} : vector<2x128xf32>, vector<128x128xf32>, vector<2x128xf32> -> vector<2x128xf32>
    %c0_8 = arith.constant 0 : index
    %c0_9 = arith.constant 0 : index
    %9 = vector.load %arg5[%c0_8, %c0_9] : memref<1x128xf32, #tpu.memory_space<vmem>>, vector<1x128xf32>
    %10 = vector.broadcast %9 : vector<1x128xf32> to vector<2x128xf32>
    %11 = arith.addf %8, %10 : vector<2x128xf32>
    %c0_10 = arith.constant 0 : index
    %c0_11 = arith.constant 0 : index
    %12 = vector.load %arg6[%c0_10, %c0_11] : memref<2x128xf32, #tpu.memory_space<vmem>>, vector<2x128xf32>
    tpu.vector_store %arg6[%c0_10, %c0_11], %11 {strides = array<i32>} : memref<2x128xf32, #tpu.memory_space<vmem>>, vector<2x128xf32>,
    return
  }
  func.func @transform_0(%arg0: i32) -> (i32, i32) {
    %c0_i32 = arith.constant 0 : i32
    %c0_i32_0 = arith.constant 0 : i32
    %c0_i32_1 = arith.constant 0 : i32
    return %c0_i32, %c0_i32_0 : i32, i32
  }
  func.func @transform_1(%arg0: i32) -> (i32, i32) {
    %c0_i32 = arith.constant 0 : i32
    %c0_i32_0 = arith.constant 0 : i32
    %c0_i32_1 = arith.constant 0 : i32
    return %c0_i32, %c0_i32_0 : i32, i32
  }
  func.func @transform_2(%arg0: i32) -> (i32, i32) {
    %c0_i32 = arith.constant 0 : i32
    %c0_i32_0 = arith.constant 0 : i32
    %c0_i32_1 = arith.constant 0 : i32
    return %c0_i32, %c0_i32_0 : i32, i32
  }
  func.func @transform_3(%arg0: i32) -> (i32, i32) {
    %c0_i32 = arith.constant 0 : i32
    %c0_i32_0 = arith.constant 0 : i32
    %c0_i32_1 = arith.constant 0 : i32
    return %c0_i32, %c0_i32_0 : i32, i32
  }
  func.func @transform_4(%arg0: i32) -> (i32, i32) {
    %c0_i32 = arith.constant 0 : i32
    %c0_i32_0 = arith.constant 0 : i32
    %c0_i32_1 = arith.constant 0 : i32
    return %c0_i32, %c0_i32_0 : i32, i32
  }
  func.func @transform_5(%arg0: i32) -> (i32, i32) {
    %c0_i32 = arith.constant 0 : i32
    %c0_i32_0 = arith.constant 0 : i32
    %c0_i32_1 = arith.constant 0 : i32
    return %c0_i32, %c0_i32_0 : i32, i32
  }
}

</mosaic_0001>

<llo_original>
// kernel: bert_forward.6
$region0: #{bert_forward.6}
  #allocation0 [shape = 'u32[]', space=smem, size = 0x4, offset = 0x4, fixed_abs, tag = 'smem constant byte address 0x4 - core index']
  #allocation1 [shape = 'u32[144,128]{1,0:T(1,128)}', space=vmem, size = 0x12000, scoped, tag = 'internal scratch']
  %s0 = inlined_call_operand.vmem [shape: f32[32,128], index: 0, kind: input, shape index: {}]
  %s1 = inlined_call_operand.vmem [shape: f32[1,128], index: 1, kind: input, shape index: {}]
  %s2 = inlined_call_operand.vmem [shape: f32[1,128], index: 2, kind: input, shape index: {}]
  %s3 = inlined_call_operand.vmem [shape: f32[32,128], index: 3, kind: output, shape index: {}]
  %s4 = sld [smem:[#allocation0]]
  $region22: #{bert_forward.6} parent=0
    _
  %s6 = ssub.s32 1, %s4
  %s7 = scalar_select 0, %s6, %s4
  // Predicated region
  $region2: #{bert_forward.6} parent=0 // pred_check
    _
  $region3: #{bert_forward.6} parent=0 // pred_check_branch
    %9 = sbr.rel (0) target = $region5
  $region4: #{bert_forward.6} parent=0 // pred_region
    _
  $region5: #{bert_forward.6} parent=0 // pred_fallthru
    _
  // Predicated region
  $region6: #{bert_forward.6} parent=0 // pred_check
    _
  $region7: #{bert_forward.6} parent=0 // pred_check_branch
    %11 = sbr.rel (0) target = $region9
  $region8: #{bert_forward.6} parent=0 // pred_region
    _
  $region9: #{bert_forward.6} parent=0 // pred_fallthru
    _
  // Predicated region
  $region10: #{bert_forward.6} parent=0 // pred_check
    _
  $region11: #{bert_forward.6} parent=0 // pred_check_branch
    %13 = sbr.rel (0) target = $region13
  $region12: #{bert_forward.6} parent=0 // pred_region
    _
  $region13: #{bert_forward.6} parent=0 // pred_fallthru
    _
  %v14 = vld [vmem:[%s0] sm:$0xff]
  %v15 = vld [vmem:[%s0 + $0x8] sm:$0xff]
  %v16 = vld [vmem:[%s0 + $0x10] sm:$0xff]
  %v17 = vld [vmem:[%s0 + $0x18] sm:$0xff]
  %v18 = vld [vmem:[%s1] sm:$0x1]
  %v19 = vld [vmem:[%s2] sm:$0x1]
  %20 = vadd.xlane.f32.xlu0 %v14
  %v21 = vpop.xlane.xlu0 %20
  %22 = vadd.xlane.f32.xlu0 %v15
  %v23 = vpop.xlane.xlu0 %22
  %24 = vadd.xlane.f32.xlu0 %v16
  %v25 = vpop.xlane.xlu0 %24
  %26 = vadd.xlane.f32.xlu0 %v17
  %v27 = vpop.xlane.xlu0 %26
  %v28 = vrcp.pop 128.0
  %v29 = vmul.f32 %v21, %v28
  %v30 = vmul.f32 %v23, %v28
  %v31 = vmul.f32 %v25, %v28
  %v32 = vmul.f32 %v27, %v28
  %v33 = vsub.f32 %v14, %v29
  %v34 = vsub.f32 %v15, %v30
  %v35 = vsub.f32 %v16, %v31
  %v36 = vsub.f32 %v17, %v32
  %v37 = vmul.f32 %v33, %v33
  %v38 = vmul.f32 %v34, %v34
  %v39 = vmul.f32 %v35, %v35
  %v40 = vmul.f32 %v36, %v36
  %41 = vadd.xlane.f32.xlu0 %v37
  %v42 = vpop.xlane.xlu0 %41
  %43 = vadd.xlane.f32.xlu0 %v38
  %v44 = vpop.xlane.xlu0 %43
  %45 = vadd.xlane.f32.xlu0 %v39
  %v46 = vpop.xlane.xlu0 %45
  %47 = vadd.xlane.f32.xlu0 %v40
  %v48 = vpop.xlane.xlu0 %47
  %v49 = vmul.f32 %v42, %v28
  %v50 = vmul.f32 %v44, %v28
  %v51 = vmul.f32 %v46, %v28
  %v52 = vmul.f32 %v48, %v28
  %v53 = vadd.f32 %v49, 1e-12
  %v54 = vadd.f32 %v50, 1e-12
  %v55 = vadd.f32 %v51, 1e-12
  %v56 = vadd.f32 %v52, 1e-12
  %v57 = vrsqrt.pop %v53
  %v58 = vrsqrt.pop %v54
  %v59 = vrsqrt.pop %v55
  %v60 = vrsqrt.pop %v56
  %v61 = vmul.f32 %v33, %v57
  %v62 = vmul.f32 %v34, %v58
  %v63 = vmul.f32 %v35, %v59
  %v64 = vmul.f32 %v36, %v60
  %v66 = vlaneseq
  %v67 = vshrl.u32 %v66, 7
  %v68 = vsub.s32 0, %v67
  %v69 = vrot.slane %v18, %v68
  %v71 = vmul.f32 %v61, %v69
  %v72 = vmul.f32 %v62, %v69
  %v73 = vmul.f32 %v63, %v69
  %v74 = vmul.f32 %v64, %v69
  %v76 = vlaneseq
  %v77 = vshrl.u32 %v76, 7
  %v78 = vsub.s32 0, %v77
  %v79 = vrot.slane %v19, %v78
  %v81 = vadd.f32 %v71, %v79
  %v82 = vadd.f32 %v72, %v79
  %v83 = vadd.f32 %v73, %v79
  %v84 = vadd.f32 %v74, %v79
  %85 = vst [vmem:[%s3] sm:$0xff] %v81
  %86 = vst [vmem:[%s3 + $0x8] sm:$0xff] %v82
  %87 = vst [vmem:[%s3 + $0x10] sm:$0xff] %v83
  %88 = vst [vmem:[%s3 + $0x18] sm:$0xff] %v84
  // Predicated region
  $region14: #{bert_forward.6} parent=0 // pred_check
    _
  $region15: #{bert_forward.6} parent=0 // pred_check_branch
    %90 = sbr.rel (0) target = $region17
  $region16: #{bert_forward.6} parent=0 // pred_region
    _
  $region17: #{bert_forward.6} parent=0 // pred_fallthru
    _
  // Predicated region
  $region18: #{bert_forward.6} parent=0 // pred_check
    _
  $region19: #{bert_forward.6} parent=0 // pred_check_branch
    %92 = sbr.rel (0) target = $region21
  $region20: #{bert_forward.6} parent=0 // pred_region
    _
  $region21: #{bert_forward.6} parent=0 // pred_fallthru
    _

// kernel: bert_forward.8
$region0: #{bert_forward.8}
  #allocation0 [shape = 'u32[]', space=smem, size = 0x4, offset = 0x4, fixed_abs, tag = 'smem constant byte address 0x4 - core index']
  #allocation1 [shape = 'u32[144,128]{1,0:T(1,128)}', space=vmem, size = 0x12000, scoped, tag = 'internal scratch']
  %s0 = inlined_call_operand.vmem [shape: f32[32,128], index: 0, kind: input, shape index: {}]
  %s1 = inlined_call_operand.vmem [shape: f32[128,512], index: 1, kind: input, shape index: {}]
  %s2 = inlined_call_operand.vmem [shape: f32[1,512], index: 2, kind: input, shape index: {}]
  %s3 = inlined_call_operand.vmem [shape: f32[512,128], index: 3, kind: input, shape index: {}]
  %s4 = inlined_call_operand.vmem [shape: f32[1,128], index: 4, kind: input, shape index: {}]
  %s5 = inlined_call_operand.vmem [shape: f32[1,128], index: 5, kind: input, shape index: {}]
  %s6 = inlined_call_operand.vmem [shape: f32[1,128], index: 6, kind: input, shape index: {}]
  %s7 = inlined_call_operand.vmem [shape: f32[32,128], index: 7, kind: output, shape index: {}]
  %s8 = sld [smem:[#allocation0]]
  $region38: #{bert_forward.8} parent=0
    _
  %s10 = ssub.s32 1, %s8
  %s11 = scalar_select 0, %s10, %s8
  // Predicated region
  $region2: #{bert_forward.8} parent=0 // pred_check
    _
  $region3: #{bert_forward.8} parent=0 // pred_check_branch
    %13 = sbr.rel (0) target = $region5
  $region4: #{bert_forward.8} parent=0 // pred_region
    _
  $region5: #{bert_forward.8} parent=0 // pred_fallthru
    _
  // Predicated region
  $region6: #{bert_forward.8} parent=0 // pred_check
    _
  $region7: #{bert_forward.8} parent=0 // pred_check_branch
    %15 = sbr.rel (0) target = $region9
  $region8: #{bert_forward.8} parent=0 // pred_region
    _
  $region9: #{bert_forward.8} parent=0 // pred_fallthru
    _
  // Predicated region
  $region10: #{bert_forward.8} parent=0 // pred_check
    _
  $region11: #{bert_forward.8} parent=0 // pred_check_branch
    %17 = sbr.rel (0) target = $region13
  $region12: #{bert_forward.8} parent=0 // pred_region
    _
  $region13: #{bert_forward.8} parent=0 // pred_fallthru
    _
  // Predicated region
  $region14: #{bert_forward.8} parent=0 // pred_check
    _
  $region15: #{bert_forward.8} parent=0 // pred_check_branch
    %19 = sbr.rel (0) target = $region17
  $region16: #{bert_forward.8} parent=0 // pred_region
    _
  $region17: #{bert_forward.8} parent=0 // pred_fallthru
    _
  // Predicated region
  $region18: #{bert_forward.8} parent=0 // pred_check
    _
  $region19: #{bert_forward.8} parent=0 // pred_check_branch
    %21 = sbr.rel (0) target = $region21
  $region20: #{bert_forward.8} parent=0 // pred_region
    _
  $region21: #{bert_forward.8} parent=0 // pred_fallthru
    _
  // Predicated region
  $region22: #{bert_forward.8} parent=0 // pred_check
    _
  $region23: #{bert_forward.8} parent=0 // pred_check_branch
    %23 = sbr.rel (0) target = $region25
  $region24: #{bert_forward.8} parent=0 // pred_region
    _
  $region25: #{bert_forward.8} parent=0 // pred_fallthru
    _
  // Predicated region
  $region26: #{bert_forward.8} parent=0 // pred_check
    _
  $region27: #{bert_forward.8} parent=0 // pred_check_branch
    %25 = sbr.rel (0) target = $region29
  $region28: #{bert_forward.8} parent=0 // pred_region
    _
  $region29: #{bert_forward.8} parent=0 // pred_fallthru
    _
  %v26 = vld [vmem:[%s0] sm:$0xff]
  %v27 = vld [vmem:[%s0 + $0x8] sm:$0xff]
  %v28 = vld [vmem:[%s0 + $0x10] sm:$0xff]
  %v29 = vld [vmem:[%s0 + $0x18] sm:$0xff]
  %v30 = vld [vmem:[%s1] sm:$0xff]
  %v31 = vld [vmem:[%s1 + $0x8] sm:$0xff]
  %v32 = vld [vmem:[%s1 + $0x10] sm:$0xff]
  %v33 = vld [vmem:[%s1 + $0x18] sm:$0xff]
  %v34 = vld [vmem:[%s1 + $0x20] sm:$0xff]
  %v35 = vld [vmem:[%s1 + $0x28] sm:$0xff]
  %v36 = vld [vmem:[%s1 + $0x30] sm:$0xff]
  %v37 = vld [vmem:[%s1 + $0x38] sm:$0xff]
  %v38 = vld [vmem:[%s1 + $0x40] sm:$0xff]
  %v39 = vld [vmem:[%s1 + $0x48] sm:$0xff]
  %v40 = vld [vmem:[%s1 + $0x50] sm:$0xff]
  %v41 = vld [vmem:[%s1 + $0x58] sm:$0xff]
  %v42 = vld [vmem:[%s1 + $0x60] sm:$0xff]
  %v43 = vld [vmem:[%s1 + $0x68] sm:$0xff]
  %v44 = vld [vmem:[%s1 + $0x70] sm:$0xff]
  %v45 = vld [vmem:[%s1 + $0x78] sm:$0xff]
  %v46 = vld [vmem:[%s1 + $0x80] sm:$0xff]
  %v47 = vld [vmem:[%s1 + $0x88] sm:$0xff]
  %v48 = vld [vmem:[%s1 + $0x90] sm:$0xff]
  %v49 = vld [vmem:[%s1 + $0x98] sm:$0xff]
  %v50 = vld [vmem:[%s1 + $0xa0] sm:$0xff]
  %v51 = vld [vmem:[%s1 + $0xa8] sm:$0xff]
  %v52 = vld [vmem:[%s1 + $0xb0] sm:$0xff]
  %v53 = vld [vmem:[%s1 + $0xb8] sm:$0xff]
  %v54 = vld [vmem:[%s1 + $0xc0] sm:$0xff]
  %v55 = vld [vmem:[%s1 + $0xc8] sm:$0xff]
  %v56 = vld [vmem:[%s1 + $0xd0] sm:$0xff]
  %v57 = vld [vmem:[%s1 + $0xd8] sm:$0xff]
  %v58 = vld [vmem:[%s1 + $0xe0] sm:$0xff]
  %v59 = vld [vmem:[%s1 + $0xe8] sm:$0xff]
  %v60 = vld [vmem:[%s1 + $0xf0] sm:$0xff]
  %v61 = vld [vmem:[%s1 + $0xf8] sm:$0xff]
  %v62 = vld [vmem:[%s1 + $0x100] sm:$0xff]
  %v63 = vld [vmem:[%s1 + $0x108] sm:$0xff]
  %v64 = vld [vmem:[%s1 + $0x110] sm:$0xff]
  %v65 = vld [vmem:[%s1 + $0x118] sm:$0xff]
  %v66 = vld [vmem:[%s1 + $0x120] sm:$0xff]
  %v67 = vld [vmem:[%s1 + $0x128] sm:$0xff]
  %v68 = vld [vmem:[%s1 + $0x130] sm:$0xff]
  %v69 = vld [vmem:[%s1 + $0x138] sm:$0xff]
  %v70 = vld [vmem:[%s1 + $0x140] sm:$0xff]
  %v71 = vld [vmem:[%s1 + $0x148] sm:$0xff]
  %v72 = vld [vmem:[%s1 + $0x150] sm:$0xff]
  %v73 = vld [vmem:[%s1 + $0x158] sm:$0xff]
  %v74 = vld [vmem:[%s1 + $0x160] sm:$0xff]
  %v75 = vld [vmem:[%s1 + $0x168] sm:$0xff]
  %v76 = vld [vmem:[%s1 + $0x170] sm:$0xff]
  %v77 = vld [vmem:[%s1 + $0x178] sm:$0xff]
  %v78 = vld [vmem:[%s1 + $0x180] sm:$0xff]
  %v79 = vld [vmem:[%s1 + $0x188] sm:$0xff]
  %v80 = vld [vmem:[%s1 + $0x190] sm:$0xff]
  %v81 = vld [vmem:[%s1 + $0x198] sm:$0xff]
  %v82 = vld [vmem:[%s1 + $0x1a0] sm:$0xff]
  %v83 = vld [vmem:[%s1 + $0x1a8] sm:$0xff]
  %v84 = vld [vmem:[%s1 + $0x1b0] sm:$0xff]
  %v85 = vld [vmem:[%s1 + $0x1b8] sm:$0xff]
  %v86 = vld [vmem:[%s1 + $0x1c0] sm:$0xff]
  %v87 = vld [vmem:[%s1 + $0x1c8] sm:$0xff]
  %v88 = vld [vmem:[%s1 + $0x1d0] sm:$0xff]
  %v89 = vld [vmem:[%s1 + $0x1d8] sm:$0xff]
  %v90 = vld [vmem:[%s1 + $0x1e0] sm:$0xff]
  %v91 = vld [vmem:[%s1 + $0x1e8] sm:$0xff]
  %v92 = vld [vmem:[%s1 + $0x1f0] sm:$0xff]
  %v93 = vld [vmem:[%s1 + $0x1f8] sm:$0xff]
  %v94 = vld [vmem:[%s2] sm:$0xf]
  %v96 = vlaneseq
  %v97 = vshrl.u32 %v96, 7
  %v98 = vsub.s32 0, %v97
  %v99 = vrot.slane %v94, %v98
  %v100 = vlaneseq
  %v101 = vshrl.u32 %v100, 7
  %v102 = vsub.s32 1, %v101
  %v103 = vrot.slane %v94, %v102
  %v104 = vlaneseq
  %v105 = vshrl.u32 %v104, 7
  %v106 = vsub.s32 2, %v105
  %v107 = vrot.slane %v94, %v106
  %v108 = vlaneseq
  %v109 = vshrl.u32 %v108, 7
  %v110 = vsub.s32 3, %v109
  %v111 = vrot.slane %v94, %v110
  %116 = vmatprep.subr.mxu0 %v31
  %117 = vmatpush1.msra.mxu0 %v30
  %118 = vmatprep.subr.mxu0 %v35
  %119 = vmatpush1.msra.mxu0 %v34
  %120 = vmatprep.subr.mxu0 %v39
  %121 = vmatpush1.msra.mxu0 %v38
  %122 = vmatprep.subr.mxu0 %v43
  %123 = vmatpush1.msra.mxu0 %v42
  %124 = vmatprep.subr.mxu0 %v47
  %125 = vmatpush1.msra.mxu0 %v46
  %126 = vmatprep.subr.mxu0 %v51
  %127 = vmatpush1.msra.mxu0 %v50
  %128 = vmatprep.subr.mxu0 %v55
  %129 = vmatpush1.msra.mxu0 %v54
  %130 = vmatprep.subr.mxu0 %v59
  %131 = vmatpush1.msra.mxu0 %v58
  %132 = vmatprep.subr.mxu0 %v63
  %133 = vmatpush1.msra.mxu0 %v62
  %134 = vmatprep.subr.mxu0 %v67
  %135 = vmatpush1.msra.mxu0 %v66
  %136 = vmatprep.subr.mxu0 %v71
  %137 = vmatpush1.msra.mxu0 %v70
  %138 = vmatprep.subr.mxu0 %v75
  %139 = vmatpush1.msra.mxu0 %v74
  %140 = vmatprep.subr.mxu0 %v79
  %141 = vmatpush1.msra.mxu0 %v78
  %142 = vmatprep.subr.mxu0 %v83
  %143 = vmatpush1.msra.mxu0 %v82
  %144 = vmatprep.subr.mxu0 %v87
  %145 = vmatpush1.msra.mxu0 %v86
  %146 = vmatprep.subr.mxu0 %v91
  %147 = vmatpush1.msra.mxu0 %v90
  %148 = vmatprep.subr.mxu0 0.0
  %149 = vmatpush1.msra.mxu0 0.0
  %150 = vmatprep.subr.mxu0 0.0
  %151 = vmatpush1.msra.mxu0 0.0
  %152 = vmatprep.subr.mxu0 0.0
  %153 = vmatpush1.msra.mxu0 0.0
  %154 = vmatprep.subr.mxu0 0.0
  %155 = vmatpush1.msra.mxu0 0.0
  %156 = vmatprep.subr.mxu0 0.0
  %157 = vmatpush1.msra.mxu0 0.0
  %158 = vmatprep.subr.mxu0 0.0
  %159 = vmatpush1.msra.mxu0 0.0
  %160 = vmatprep.subr.mxu0 0.0
  %161 = vmatpush1.msra.mxu0 0.0
  %162 = vmatprep.subr.mxu0 0.0
  %163 = vmatpush1.msra.mxu0 0.0
  %164 = vmatprep.subr.mxu0 0.0
  %165 = vmatpush1.msra.mxu0 0.0
  %166 = vmatprep.subr.mxu0 0.0
  %167 = vmatpush1.msra.mxu0 0.0
  %168 = vmatprep.subr.mxu0 0.0
  %169 = vmatpush1.msra.mxu0 0.0
  %170 = vmatprep.subr.mxu0 0.0
  %171 = vmatpush1.msra.mxu0 0.0
  %172 = vmatprep.subr.mxu0 0.0
  %173 = vmatpush1.msra.mxu0 0.0
  %174 = vmatprep.subr.mxu0 0.0
  %175 = vmatpush1.msra.mxu0 0.0
  %176 = vmatprep.subr.mxu0 0.0
  %177 = vmatpush1.msra.mxu0 0.0
  %178 = vmatprep.subr.mxu0 0.0
  %179 = vmatpush1.msra.mxu0 0.0
  %180 = vmatprep.mubr.f32.mxu0 0.0
  %181 = vmatmul.mubr.f32.gmra.mrb[0].mxu0 %v26
  %v182 = vpop.f32.mrb[0].mxu0
  %v183 = vadd.f32 %v99, %v182
  %v184 = vpop.f32.mrb[0].mxu0
  %v185 = vadd.f32 %v103, %v184
  %186 = vmatprep.mubr.f32.mxu0 0.0
  %187 = vmatmul.mubr.f32.gmra.mrb[0].mxu0 %v27
  %v188 = vpop.f32.mrb[0].mxu0
  %v189 = vadd.f32 %v99, %v188
  %v190 = vpop.f32.mrb[0].mxu0
  %v191 = vadd.f32 %v103, %v190
  %192 = vmatprep.mubr.f32.mxu0 0.0
  %193 = vmatmul.mubr.f32.gmra.mrb[0].mxu0 %v28
  %v194 = vpop.f32.mrb[0].mxu0
  %v195 = vadd.f32 %v99, %v194
  %v196 = vpop.f32.mrb[0].mxu0
  %v197 = vadd.f32 %v103, %v196
  %198 = vmatprep.mubr.f32.mxu0 0.0
  %199 = vmatmul.mubr.f32.gmra.mrb[0].mxu0 %v29
  %v200 = vpop.f32.mrb[0].mxu0
  %v201 = vadd.f32 %v99, %v200
  %v202 = vpop.f32.mrb[0].mxu0
  %v203 = vadd.f32 %v103, %v202
  %204 = vdwg.mxu0
  %205 = vmatprep.subr.mxu0 %v33
  %206 = vmatpush1.msra.mxu0 %v32
  %207 = vmatprep.subr.mxu0 %v37
  %208 = vmatpush1.msra.mxu0 %v36
  %209 = vmatprep.subr.mxu0 %v41
  %210 = vmatpush1.msra.mxu0 %v40
  %211 = vmatprep.subr.mxu0 %v45
  %212 = vmatpush1.msra.mxu0 %v44
  %213 = vmatprep.subr.mxu0 %v49
  %214 = vmatpush1.msra.mxu0 %v48
  %215 = vmatprep.subr.mxu0 %v53
  %216 = vmatpush1.msra.mxu0 %v52
  %217 = vmatprep.subr.mxu0 %v57
  %218 = vmatpush1.msra.mxu0 %v56
  %219 = vmatprep.subr.mxu0 %v61
  %220 = vmatpush1.msra.mxu0 %v60
  %221 = vmatprep.subr.mxu0 %v65
  %222 = vmatpush1.msra.mxu0 %v64
  %223 = vmatprep.subr.mxu0 %v69
  %224 = vmatpush1.msra.mxu0 %v68
  %225 = vmatprep.subr.mxu0 %v73
  %226 = vmatpush1.msra.mxu0 %v72
  %227 = vmatprep.subr.mxu0 %v77
  %228 = vmatpush1.msra.mxu0 %v76
  %229 = vmatprep.subr.mxu0 %v81
  %230 = vmatpush1.msra.mxu0 %v80
  %231 = vmatprep.subr.mxu0 %v85
  %232 = vmatpush1.msra.mxu0 %v84
  %233 = vmatprep.subr.mxu0 %v89
  %234 = vmatpush1.msra.mxu0 %v88
  %235 = vmatprep.subr.mxu0 %v93
  %236 = vmatpush1.msra.mxu0 %v92
  %237 = vmatprep.subr.mxu0 0.0
  %238 = vmatpush1.msra.mxu0 0.0
  %239 = vmatprep.subr.mxu0 0.0
  %240 = vmatpush1.msra.mxu0 0.0
  %241 = vmatprep.subr.mxu0 0.0
  %242 = vmatpush1.msra.mxu0 0.0
  %243 = vmatprep.subr.mxu0 0.0
  %244 = vmatpush1.msra.mxu0 0.0
  %245 = vmatprep.subr.mxu0 0.0
  %246 = vmatpush1.msra.mxu0 0.0
  %247 = vmatprep.subr.mxu0 0.0
  %248 = vmatpush1.msra.mxu0 0.0
  %249 = vmatprep.subr.mxu0 0.0
  %250 = vmatpush1.msra.mxu0 0.0
  %251 = vmatprep.subr.mxu0 0.0
  %252 = vmatpush1.msra.mxu0 0.0
  %253 = vmatprep.subr.mxu0 0.0
  %254 = vmatpush1.msra.mxu0 0.0
  %255 = vmatprep.subr.mxu0 0.0
  %256 = vmatpush1.msra.mxu0 0.0
  %257 = vmatprep.subr.mxu0 0.0
  %258 = vmatpush1.msra.mxu0 0.0
  %259 = vmatprep.subr.mxu0 0.0
  %260 = vmatpush1.msra.mxu0 0.0
  %261 = vmatprep.subr.mxu0 0.0
  %262 = vmatpush1.msra.mxu0 0.0
  %263 = vmatprep.subr.mxu0 0.0
  %264 = vmatpush1.msra.mxu0 0.0
  %265 = vmatprep.subr.mxu0 0.0
  %266 = vmatpush1.msra.mxu0 0.0
  %267 = vmatprep.subr.mxu0 0.0
  %268 = vmatpush1.msra.mxu0 0.0
  %269 = vmatprep.mubr.f32.mxu0 0.0
  %270 = vmatmul.mubr.f32.gmra.mrb[0].mxu0 %v26
  %v271 = vpop.f32.mrb[0].mxu0
  %v272 = vadd.f32 %v107, %v271
  %v273 = vpop.f32.mrb[0].mxu0
  %v274 = vadd.f32 %v111, %v273
  %275 = vmatprep.mubr.f32.mxu0 0.0
  %276 = vmatmul.mubr.f32.gmra.mrb[0].mxu0 %v27
  %v277 = vpop.f32.mrb[0].mxu0
  %v278 = vadd.f32 %v107, %v277
  %v279 = vpop.f32.mrb[0].mxu0
  %v280 = vadd.f32 %v111, %v279
  %281 = vmatprep.mubr.f32.mxu0 0.0
  %282 = vmatmul.mubr.f32.gmra.mrb[0].mxu0 %v28
  %v283 = vpop.f32.mrb[0].mxu0
  %v284 = vadd.f32 %v107, %v283
  %v285 = vpop.f32.mrb[0].mxu0
  %v286 = vadd.f32 %v111, %v285
  %287 = vmatprep.mubr.f32.mxu0 0.0
  %288 = vmatmul.mubr.f32.gmra.mrb[0].mxu0 %v29
  %v289 = vpop.f32.mrb[0].mxu0
  %v290 = vadd.f32 %v107, %v289
  %v291 = vpop.f32.mrb[0].mxu0
  %v292 = vadd.f32 %v111, %v291
  %293 = vdwg.mxu0
  %v294 = vmul.f32 %v183, 0.5
  %v295 = vmul.f32 %v185, 0.5
  %v296 = vmul.f32 %v272, 0.5
  %v297 = vmul.f32 %v274, 0.5
  %v298 = vmul.f32 %v189, 0.5
  %v299 = vmul.f32 %v191, 0.5
  %v300 = vmul.f32 %v278, 0.5
  %v301 = vmul.f32 %v280, 0.5
  %v302 = vmul.f32 %v195, 0.5
  %v303 = vmul.f32 %v197, 0.5
  %v304 = vmul.f32 %v284, 0.5
  %v305 = vmul.f32 %v286, 0.5
  %v306 = vmul.f32 %v201, 0.5
  %v307 = vmul.f32 %v203, 0.5
  %v308 = vmul.f32 %v290, 0.5
  %v309 = vmul.f32 %v292, 0.5
  %v310 = vmul.f32 %v183, 0.044715
  %v311 = vmul.f32 %v185, 0.044715
  %v312 = vmul.f32 %v272, 0.044715
  %v313 = vmul.f32 %v274, 0.044715
  %v314 = vmul.f32 %v189, 0.044715
  %v315 = vmul.f32 %v191, 0.044715
  %v316 = vmul.f32 %v278, 0.044715
  %v317 = vmul.f32 %v280, 0.044715
  %v318 = vmul.f32 %v195, 0.044715
  %v319 = vmul.f32 %v197, 0.044715
  %v320 = vmul.f32 %v284, 0.044715
  %v321 = vmul.f32 %v286, 0.044715
  %v322 = vmul.f32 %v201, 0.044715
  %v323 = vmul.f32 %v203, 0.044715
  %v324 = vmul.f32 %v290, 0.044715
  %v325 = vmul.f32 %v292, 0.044715
  %v326 = vmul.f32 %v310, %v183
  %v327 = vmul.f32 %v311, %v185
  %v328 = vmul.f32 %v312, %v272
  %v329 = vmul.f32 %v313, %v274
  %v330 = vmul.f32 %v314, %v189
  %v331 = vmul.f32 %v315, %v191
  %v332 = vmul.f32 %v316, %v278
  %v333 = vmul.f32 %v317, %v280
  %v334 = vmul.f32 %v318, %v195
  %v335 = vmul.f32 %v319, %v197
  %v336 = vmul.f32 %v320, %v284
  %v337 = vmul.f32 %v321, %v286
  %v338 = vmul.f32 %v322, %v201
  %v339 = vmul.f32 %v323, %v203
  %v340 = vmul.f32 %v324, %v290
  %v341 = vmul.f32 %v325, %v292
  %v342 = vmul.f32 %v326, %v183
  %v343 = vmul.f32 %v327, %v185
  %v344 = vmul.f32 %v328, %v272
  %v345 = vmul.f32 %v329, %v274
  %v346 = vmul.f32 %v330, %v189
  %v347 = vmul.f32 %v331, %v191
  %v348 = vmul.f32 %v332, %v278
  %v349 = vmul.f32 %v333, %v280
  %v350 = vmul.f32 %v334, %v195
  %v351 = vmul.f32 %v335, %v197
  %v352 = vmul.f32 %v336, %v284
  %v353 = vmul.f32 %v337, %v286
  %v354 = vmul.f32 %v338, %v201
  %v355 = vmul.f32 %v339, %v203
  %v356 = vmul.f32 %v340, %v290
  %v357 = vmul.f32 %v341, %v292
  %v358 = vadd.f32 %v183, %v342
  %v359 = vadd.f32 %v185, %v343
  %v360 = vadd.f32 %v272, %v344
  %v361 = vadd.f32 %v274, %v345
  %v362 = vadd.f32 %v189, %v346
  %v363 = vadd.f32 %v191, %v347
  %v364 = vadd.f32 %v278, %v348
  %v365 = vadd.f32 %v280, %v349
  %v366 = vadd.f32 %v195, %v350
  %v367 = vadd.f32 %v197, %v351
  %v368 = vadd.f32 %v284, %v352
  %v369 = vadd.f32 %v286, %v353
  %v370 = vadd.f32 %v201, %v354
  %v371 = vadd.f32 %v203, %v355
  %v372 = vadd.f32 %v290, %v356
  %v373 = vadd.f32 %v292, %v357
  %v374 = vmul.f32 %v358, 0.7978846
  %v375 = vmul.f32 %v359, 0.7978846
  %v376 = vmul.f32 %v360, 0.7978846
  %v377 = vmul.f32 %v361, 0.7978846
  %v378 = vmul.f32 %v362, 0.7978846
  %v379 = vmul.f32 %v363, 0.7978846
  %v380 = vmul.f32 %v364, 0.7978846
  %v381 = vmul.f32 %v365, 0.7978846
  %v382 = vmul.f32 %v366, 0.7978846
  %v383 = vmul.f32 %v367, 0.7978846
  %v384 = vmul.f32 %v368, 0.7978846
  %v385 = vmul.f32 %v369, 0.7978846
  %v386 = vmul.f32 %v370, 0.7978846
  %v387 = vmul.f32 %v371, 0.7978846
  %v388 = vmul.f32 %v372, 0.7978846
  %v389 = vmul.f32 %v373, 0.7978846
  %v390 = vtanh.pop %v374
  %v391 = vtanh.pop %v375
  %v392 = vtanh.pop %v376
  %v393 = vtanh.pop %v377
  %v394 = vtanh.pop %v378
  %v395 = vtanh.pop %v379
  %v396 = vtanh.pop %v380
  %v397 = vtanh.pop %v381
  %v398 = vtanh.pop %v382
  %v399 = vtanh.pop %v383
  %v400 = vtanh.pop %v384
  %v401 = vtanh.pop %v385
  %v402 = vtanh.pop %v386
  %v403 = vtanh.pop %v387
  %v404 = vtanh.pop %v388
  %v405 = vtanh.pop %v389
  %v406 = vadd.f32 %v390, 1.0
  %v407 = vadd.f32 %v391, 1.0
  %v408 = vadd.f32 %v392, 1.0
  %v409 = vadd.f32 %v393, 1.0
  %v410 = vadd.f32 %v394, 1.0
  %v411 = vadd.f32 %v395, 1.0
  %v412 = vadd.f32 %v396, 1.0
  %v413 = vadd.f32 %v397, 1.0
  %v414 = vadd.f32 %v398, 1.0
  %v415 = vadd.f32 %v399, 1.0
  %v416 = vadd.f32 %v400, 1.0
  %v417 = vadd.f32 %v401, 1.0
  %v418 = vadd.f32 %v402, 1.0
  %v419 = vadd.f32 %v403, 1.0
  %v420 = vadd.f32 %v404, 1.0
  %v421 = vadd.f32 %v405, 1.0
  %v422 = vmul.f32 %v294, %v406
  %v423 = vmul.f32 %v295, %v407
  %v424 = vmul.f32 %v296, %v408
  %v425 = vmul.f32 %v297, %v409
  %v426 = vmul.f32 %v298, %v410
  %v427 = vmul.f32 %v299, %v411
  %v428 = vmul.f32 %v300, %v412
  %v429 = vmul.f32 %v301, %v413
  %v430 = vmul.f32 %v302, %v414
  %v431 = vmul.f32 %v303, %v415
  %v432 = vmul.f32 %v304, %v416
  %v433 = vmul.f32 %v305, %v417
  %v434 = vmul.f32 %v306, %v418
  %v435 = vmul.f32 %v307, %v419
  %v436 = vmul.f32 %v308, %v420
  %v437 = vmul.f32 %v309, %v421
  %v438 = vld [vmem:[%s3] sm:$0xff]
  %v439 = vld [vmem:[%s3 + $0x8] sm:$0xff]
  %v440 = vld [vmem:[%s3 + $0x10] sm:$0xff]
  %v441 = vld [vmem:[%s3 + $0x18] sm:$0xff]
  %v442 = vld [vmem:[%s3 + $0x20] sm:$0xff]
  %v443 = vld [vmem:[%s3 + $0x28] sm:$0xff]
  %v444 = vld [vmem:[%s3 + $0x30] sm:$0xff]
  %v445 = vld [vmem:[%s3 + $0x38] sm:$0xff]
  %v446 = vld [vmem:[%s3 + $0x40] sm:$0xff]
  %v447 = vld [vmem:[%s3 + $0x48] sm:$0xff]
  %v448 = vld [vmem:[%s3 + $0x50] sm:$0xff]
  %v449 = vld [vmem:[%s3 + $0x58] sm:$0xff]
  %v450 = vld [vmem:[%s3 + $0x60] sm:$0xff]
  %v451 = vld [vmem:[%s3 + $0x68] sm:$0xff]
  %v452 = vld [vmem:[%s3 + $0x70] sm:$0xff]
  %v453 = vld [vmem:[%s3 + $0x78] sm:$0xff]
  %v454 = vld [vmem:[%s3 + $0x80] sm:$0xff]
  %v455 = vld [vmem:[%s3 + $0x88] sm:$0xff]
  %v456 = vld [vmem:[%s3 + $0x90] sm:$0xff]
  %v457 = vld [vmem:[%s3 + $0x98] sm:$0xff]
  %v458 = vld [vmem:[%s3 + $0xa0] sm:$0xff]
  %v459 = vld [vmem:[%s3 + $0xa8] sm:$0xff]
  %v460 = vld [vmem:[%s3 + $0xb0] sm:$0xff]
  %v461 = vld [vmem:[%s3 + $0xb8] sm:$0xff]
  %v462 = vld [vmem:[%s3 + $0xc0] sm:$0xff]
  %v463 = vld [vmem:[%s3 + $0xc8] sm:$0xff]
  %v464 = vld [vmem:[%s3 + $0xd0] sm:$0xff]
  %v465 = vld [vmem:[%s3 + $0xd8] sm:$0xff]
  %v466 = vld [vmem:[%s3 + $0xe0] sm:$0xff]
  %v467 = vld [vmem:[%s3 + $0xe8] sm:$0xff]
  %v468 = vld [vmem:[%s3 + $0xf0] sm:$0xff]
  %v469 = vld [vmem:[%s3 + $0xf8] sm:$0xff]
  %v470 = vld [vmem:[%s3 + $0x100] sm:$0xff]
  %v471 = vld [vmem:[%s3 + $0x108] sm:$0xff]
  %v472 = vld [vmem:[%s3 + $0x110] sm:$0xff]
  %v473 = vld [vmem:[%s3 + $0x118] sm:$0xff]
  %v474 = vld [vmem:[%s3 + $0x120] sm:$0xff]
  %v475 = vld [vmem:[%s3 + $0x128] sm:$0xff]
  %v476 = vld [vmem:[%s3 + $0x130] sm:$0xff]
  %v477 = vld [vmem:[%s3 + $0x138] sm:$0xff]
  %v478 = vld [vmem:[%s3 + $0x140] sm:$0xff]
  %v479 = vld [vmem:[%s3 + $0x148] sm:$0xff]
  %v480 = vld [vmem:[%s3 + $0x150] sm:$0xff]
  %v481 = vld [vmem:[%s3 + $0x158] sm:$0xff]
  %v482 = vld [vmem:[%s3 + $0x160] sm:$0xff]
  %v483 = vld [vmem:[%s3 + $0x168] sm:$0xff]
  %v484 = vld [vmem:[%s3 + $0x170] sm:$0xff]
  %v485 = vld [vmem:[%s3 + $0x178] sm:$0xff]
  %v486 = vld [vmem:[%s3 + $0x180] sm:$0xff]
  %v487 = vld [vmem:[%s3 + $0x188] sm:$0xff]
  %v488 = vld [vmem:[%s3 + $0x190] sm:$0xff]
  %v489 = vld [vmem:[%s3 + $0x198] sm:$0xff]
  %v490 = vld [vmem:[%s3 + $0x1a0] sm:$0xff]
  %v491 = vld [vmem:[%s3 + $0x1a8] sm:$0xff]
  %v492 = vld [vmem:[%s3 + $0x1b0] sm:$0xff]
  %v493 = vld [vmem:[%s3 + $0x1b8] sm:$0xff]
  %v494 = vld [vmem:[%s3 + $0x1c0] sm:$0xff]
  %v495 = vld [vmem:[%s3 + $0x1c8] sm:$0xff]
  %v496 = vld [vmem:[%s3 + $0x1d0] sm:$0xff]
  %v497 = vld [vmem:[%s3 + $0x1d8] sm:$0xff]
  %v498 = vld [vmem:[%s3 + $0x1e0] sm:$0xff]
  %v499 = vld [vmem:[%s3 + $0x1e8] sm:$0xff]
  %v500 = vld [vmem:[%s3 + $0x1f0] sm:$0xff]
  %v501 = vld [vmem:[%s3 + $0x1f8] sm:$0xff]
  %v502 = vld [vmem:[%s4] sm:$0x1]
  %v504 = vlaneseq
  %v505 = vshrl.u32 %v504, 7
  %v506 = vsub.s32 0, %v505
  %v507 = vrot.slane %v502, %v506
  %509 = vmatprep.subr.mxu0 0.0
  %510 = vmatpush1.msra.mxu0 %v438
  %511 = vmatprep.subr.mxu0 0.0
  %512 = vmatpush1.msra.mxu0 %v439
  %513 = vmatprep.subr.mxu0 0.0
  %514 = vmatpush1.msra.mxu0 %v440
  %515 = vmatprep.subr.mxu0 0.0
  %516 = vmatpush1.msra.mxu0 %v441
  %517 = vmatprep.subr.mxu0 0.0
  %518 = vmatpush1.msra.mxu0 %v442
  %519 = vmatprep.subr.mxu0 0.0
  %520 = vmatpush1.msra.mxu0 %v443
  %521 = vmatprep.subr.mxu0 0.0
  %522 = vmatpush1.msra.mxu0 %v444
  %523 = vmatprep.subr.mxu0 0.0
  %524 = vmatpush1.msra.mxu0 %v445
  %525 = vmatprep.subr.mxu0 0.0
  %526 = vmatpush1.msra.mxu0 %v446
  %527 = vmatprep.subr.mxu0 0.0
  %528 = vmatpush1.msra.mxu0 %v447
  %529 = vmatprep.subr.mxu0 0.0
  %530 = vmatpush1.msra.mxu0 %v448
  %531 = vmatprep.subr.mxu0 0.0
  %532 = vmatpush1.msra.mxu0 %v449
  %533 = vmatprep.subr.mxu0 0.0
  %534 = vmatpush1.msra.mxu0 %v450
  %535 = vmatprep.subr.mxu0 0.0
  %536 = vmatpush1.msra.mxu0 %v451
  %537 = vmatprep.subr.mxu0 0.0
  %538 = vmatpush1.msra.mxu0 %v452
  %539 = vmatprep.subr.mxu0 0.0
  %540 = vmatpush1.msra.mxu0 %v453
  %541 = vmatprep.subr.mxu0 0.0
  %542 = vmatpush1.msra.mxu0 %v454
  %543 = vmatprep.subr.mxu0 0.0
  %544 = vmatpush1.msra.mxu0 %v455
  %545 = vmatprep.subr.mxu0 0.0
  %546 = vmatpush1.msra.mxu0 %v456
  %547 = vmatprep.subr.mxu0 0.0
  %548 = vmatpush1.msra.mxu0 %v457
  %549 = vmatprep.subr.mxu0 0.0
  %550 = vmatpush1.msra.mxu0 %v458
  %551 = vmatprep.subr.mxu0 0.0
  %552 = vmatpush1.msra.mxu0 %v459
  %553 = vmatprep.subr.mxu0 0.0
  %554 = vmatpush1.msra.mxu0 %v460
  %555 = vmatprep.subr.mxu0 0.0
  %556 = vmatpush1.msra.mxu0 %v461
  %557 = vmatprep.subr.mxu0 0.0
  %558 = vmatpush1.msra.mxu0 %v462
  %559 = vmatprep.subr.mxu0 0.0
  %560 = vmatpush1.msra.mxu0 %v463
  %561 = vmatprep.subr.mxu0 0.0
  %562 = vmatpush1.msra.mxu0 %v464
  %563 = vmatprep.subr.mxu0 0.0
  %564 = vmatpush1.msra.mxu0 %v465
  %565 = vmatprep.subr.mxu0 0.0
  %566 = vmatpush1.msra.mxu0 %v466
  %567 = vmatprep.subr.mxu0 0.0
  %568 = vmatpush1.msra.mxu0 %v467
  %569 = vmatprep.subr.mxu0 0.0
  %570 = vmatpush1.msra.mxu0 %v468
  %571 = vmatprep.subr.mxu0 0.0
  %572 = vmatpush1.msra.mxu0 %v469
  %573 = vmatprep.mubr.f32.mxu0 %v423
  %574 = vmatmul.mubr.f32.gmra.mrb[0].mxu0 %v422
  %v575 = vpop.f32.mrb[0].mxu0
  %v576 = vadd.f32 %v507, %v575
  %v577 = vpop.f32.mrb[0].mxu0
  %578 = vmatprep.mubr.f32.mxu0 %v427
  %579 = vmatmul.mubr.f32.gmra.mrb[0].mxu0 %v426
  %v580 = vpop.f32.mrb[0].mxu0
  %v581 = vadd.f32 %v507, %v580
  %v582 = vpop.f32.mrb[0].mxu0
  %583 = vmatprep.mubr.f32.mxu0 %v431
  %584 = vmatmul.mubr.f32.gmra.mrb[0].mxu0 %v430
  %v585 = vpop.f32.mrb[0].mxu0
  %v586 = vadd.f32 %v507, %v585
  %v587 = vpop.f32.mrb[0].mxu0
  %588 = vmatprep.mubr.f32.mxu0 %v435
  %589 = vmatmul.mubr.f32.gmra.mrb[0].mxu0 %v434
  %v590 = vpop.f32.mrb[0].mxu0
  %v591 = vadd.f32 %v507, %v590
  %v592 = vpop.f32.mrb[0].mxu0
  %593 = vdwg.mxu0
  %594 = vmatprep.subr.mxu0 0.0
  %595 = vmatpush1.msra.mxu0 %v470
  %596 = vmatprep.subr.mxu0 0.0
  %597 = vmatpush1.msra.mxu0 %v471
  %598 = vmatprep.subr.mxu0 0.0
  %599 = vmatpush1.msra.mxu0 %v472
  %600 = vmatprep.subr.mxu0 0.0
  %601 = vmatpush1.msra.mxu0 %v473
  %602 = vmatprep.subr.mxu0 0.0
  %603 = vmatpush1.msra.mxu0 %v474
  %604 = vmatprep.subr.mxu0 0.0
  %605 = vmatpush1.msra.mxu0 %v475
  %606 = vmatprep.subr.mxu0 0.0
  %607 = vmatpush1.msra.mxu0 %v476
  %608 = vmatprep.subr.mxu0 0.0
  %609 = vmatpush1.msra.mxu0 %v477
  %610 = vmatprep.subr.mxu0 0.0
  %611 = vmatpush1.msra.mxu0 %v478
  %612 = vmatprep.subr.mxu0 0.0
  %613 = vmatpush1.msra.mxu0 %v479
  %614 = vmatprep.subr.mxu0 0.0
  %615 = vmatpush1.msra.mxu0 %v480
  %616 = vmatprep.subr.mxu0 0.0
  %617 = vmatpush1.msra.mxu0 %v481
  %618 = vmatprep.subr.mxu0 0.0
  %619 = vmatpush1.msra.mxu0 %v482
  %620 = vmatprep.subr.mxu0 0.0
  %621 = vmatpush1.msra.mxu0 %v483
  %622 = vmatprep.subr.mxu0 0.0
  %623 = vmatpush1.msra.mxu0 %v484
  %624 = vmatprep.subr.mxu0 0.0
  %625 = vmatpush1.msra.mxu0 %v485
  %626 = vmatprep.subr.mxu0 0.0
  %627 = vmatpush1.msra.mxu0 %v486
  %628 = vmatprep.subr.mxu0 0.0
  %629 = vmatpush1.msra.mxu0 %v487
  %630 = vmatprep.subr.mxu0 0.0
  %631 = vmatpush1.msra.mxu0 %v488
  %632 = vmatprep.subr.mxu0 0.0
  %633 = vmatpush1.msra.mxu0 %v489
  %634 = vmatprep.subr.mxu0 0.0
  %635 = vmatpush1.msra.mxu0 %v490
  %636 = vmatprep.subr.mxu0 0.0
  %637 = vmatpush1.msra.mxu0 %v491
  %638 = vmatprep.subr.mxu0 0.0
  %639 = vmatpush1.msra.mxu0 %v492
  %640 = vmatprep.subr.mxu0 0.0
  %641 = vmatpush1.msra.mxu0 %v493
  %642 = vmatprep.subr.mxu0 0.0
  %643 = vmatpush1.msra.mxu0 %v494
  %644 = vmatprep.subr.mxu0 0.0
  %645 = vmatpush1.msra.mxu0 %v495
  %646 = vmatprep.subr.mxu0 0.0
  %647 = vmatpush1.msra.mxu0 %v496
  %648 = vmatprep.subr.mxu0 0.0
  %649 = vmatpush1.msra.mxu0 %v497
  %650 = vmatprep.subr.mxu0 0.0
  %651 = vmatpush1.msra.mxu0 %v498
  %652 = vmatprep.subr.mxu0 0.0
  %653 = vmatpush1.msra.mxu0 %v499
  %654 = vmatprep.subr.mxu0 0.0
  %655 = vmatpush1.msra.mxu0 %v500
  %656 = vmatprep.subr.mxu0 0.0
  %657 = vmatpush1.msra.mxu0 %v501
  %658 = vmatprep.mubr.f32.mxu0 %v425
  %659 = vmatmul.mubr.f32.gmra.mrb[0].mxu0 %v424
  %v660 = vpop.f32.mrb[0].mxu0
  %v661 = vadd.f32 %v576, %v660
  %v662 = vpop.f32.mrb[0].mxu0
  %663 = vmatprep.mubr.f32.mxu0 %v429
  %664 = vmatmul.mubr.f32.gmra.mrb[0].mxu0 %v428
  %v665 = vpop.f32.mrb[0].mxu0
  %v666 = vadd.f32 %v581, %v665
  %v667 = vpop.f32.mrb[0].mxu0
  %668 = vmatprep.mubr.f32.mxu0 %v433
  %669 = vmatmul.mubr.f32.gmra.mrb[0].mxu0 %v432
  %v670 = vpop.f32.mrb[0].mxu0
  %v671 = vadd.f32 %v586, %v670
  %v672 = vpop.f32.mrb[0].mxu0
  %673 = vmatprep.mubr.f32.mxu0 %v437
  %674 = vmatmul.mubr.f32.gmra.mrb[0].mxu0 %v436
  %v675 = vpop.f32.mrb[0].mxu0
  %v676 = vadd.f32 %v591, %v675
  %v677 = vpop.f32.mrb[0].mxu0
  %678 = vdwg.mxu0
  %v679 = vadd.f32 %v661, %v26
  %v680 = vadd.f32 %v666, %v27
  %v681 = vadd.f32 %v671, %v28
  %v682 = vadd.f32 %v676, %v29
  %v683 = vld [vmem:[%s5] sm:$0x1]
  %v684 = vld [vmem:[%s6] sm:$0x1]
  %685 = vadd.xlane.f32.xlu0 %v679
  %v686 = vpop.xlane.xlu0 %685
  %687 = vadd.xlane.f32.xlu0 %v680
  %v688 = vpop.xlane.xlu0 %687
  %689 = vadd.xlane.f32.xlu0 %v681
  %v690 = vpop.xlane.xlu0 %689
  %691 = vadd.xlane.f32.xlu0 %v682
  %v692 = vpop.xlane.xlu0 %691
  %v693 = vrcp.pop 128.0
  %v694 = vmul.f32 %v686, %v693
  %v695 = vmul.f32 %v688, %v693
  %v696 = vmul.f32 %v690, %v693
  %v697 = vmul.f32 %v692, %v693
  %v698 = vsub.f32 %v679, %v694
  %v699 = vsub.f32 %v680, %v695
  %v700 = vsub.f32 %v681, %v696
  %v701 = vsub.f32 %v682, %v697
  %v702 = vmul.f32 %v698, %v698
  %v703 = vmul.f32 %v699, %v699
  %v704 = vmul.f32 %v700, %v700
  %v705 = vmul.f32 %v701, %v701
  %706 = vadd.xlane.f32.xlu0 %v702
  %v707 = vpop.xlane.xlu0 %706
  %708 = vadd.xlane.f32.xlu0 %v703
  %v709 = vpop.xlane.xlu0 %708
  %710 = vadd.xlane.f32.xlu0 %v704
  %v711 = vpop.xlane.xlu0 %710
  %712 = vadd.xlane.f32.xlu0 %v705
  %v713 = vpop.xlane.xlu0 %712
  %v714 = vmul.f32 %v707, %v693
  %v715 = vmul.f32 %v709, %v693
  %v716 = vmul.f32 %v711, %v693
  %v717 = vmul.f32 %v713, %v693
  %v718 = vadd.f32 %v714, 1e-12
  %v719 = vadd.f32 %v715, 1e-12
  %v720 = vadd.f32 %v716, 1e-12
  %v721 = vadd.f32 %v717, 1e-12
  %v722 = vrsqrt.pop %v718
  %v723 = vrsqrt.pop %v719
  %v724 = vrsqrt.pop %v720
  %v725 = vrsqrt.pop %v721
  %v726 = vmul.f32 %v698, %v722
  %v727 = vmul.f32 %v699, %v723
  %v728 = vmul.f32 %v700, %v724
  %v729 = vmul.f32 %v701, %v725
  %v731 = vlaneseq
  %v732 = vshrl.u32 %v731, 7
  %v733 = vsub.s32 0, %v732
  %v734 = vrot.slane %v683, %v733
  %v736 = vmul.f32 %v726, %v734
  %v737 = vmul.f32 %v727, %v734
  %v738 = vmul.f32 %v728, %v734
  %v739 = vmul.f32 %v729, %v734
  %v741 = vlaneseq
  %v742 = vshrl.u32 %v741, 7
  %v743 = vsub.s32 0, %v742
  %v744 = vrot.slane %v684, %v743
  %v746 = vadd.f32 %v736, %v744
  %v747 = vadd.f32 %v737, %v744
  %v748 = vadd.f32 %v738, %v744
  %v749 = vadd.f32 %v739, %v744
  %750 = vst [vmem:[%s7] sm:$0xff] %v746
  %751 = vst [vmem:[%s7 + $0x8] sm:$0xff] %v747
  %752 = vst [vmem:[%s7 + $0x10] sm:$0xff] %v748
  %753 = vst [vmem:[%s7 + $0x18] sm:$0xff] %v749
  // Predicated region
  $region30: #{bert_forward.8} parent=0 // pred_check
    _
  $region31: #{bert_forward.8} parent=0 // pred_check_branch
    %755 = sbr.rel (0) target = $region33
  $region32: #{bert_forward.8} parent=0 // pred_region
    _
  $region33: #{bert_forward.8} parent=0 // pred_fallthru
    _
  // Predicated region
  $region34: #{bert_forward.8} parent=0 // pred_check
    _
  $region35: #{bert_forward.8} parent=0 // pred_check_branch
    %757 = sbr.rel (0) target = $region37
  $region36: #{bert_forward.8} parent=0 // pred_region
    _
  $region37: #{bert_forward.8} parent=0 // pred_fallthru
    _

// kernel: bert_forward.7
$region0: #{bert_forward.7}
  #allocation0 [shape = 'u32[]', space=smem, size = 0x4, offset = 0x4, fixed_abs, tag = 'smem constant byte address 0x4 - core index']
  #allocation1 [shape = 'u32[144,128]{1,0:T(1,128)}', space=vmem, size = 0x12000, scoped, tag = 'internal scratch']
  %s0 = inlined_call_operand.vmem [shape: f32[2,16,128], index: 0, kind: input, shape index: {}]
  %s1 = inlined_call_operand.vmem [shape: f32[2,1,16], index: 1, kind: input, shape index: {}]
  %s2 = inlined_call_operand.vmem [shape: f32[128,384], index: 2, kind: input, shape index: {}]
  %s3 = inlined_call_operand.vmem [shape: f32[1,384], index: 3, kind: input, shape index: {}]
  %s4 = inlined_call_operand.hbm [shape: f32[128,128], index: 4, kind: input, shape index: {}]
  %s5 = inlined_call_operand.vmem [shape: f32[1,128], index: 5, kind: input, shape index: {}]
  %s6 = inlined_call_operand.vmem [shape: f32[1,128], index: 6, kind: input, shape index: {}]
  %s7 = inlined_call_operand.vmem [shape: f32[1,128], index: 7, kind: input, shape index: {}]
  %s8 = inlined_call_operand.vmem [shape: f32[2,16,128], index: 8, kind: output, shape index: {}]
  %s9 = sld [smem:[#allocation0]]
  $region69: #{bert_forward.7} parent=0
    _
  %s11 = ssub.s32 1, %s9
  %s12 = scalar_select 0, %s11, %s9
  $region1: #{bert_forward.7} parent=0
    #allocation2 [shape = 'u8[65536]{0}', space=vmem, size = 0x10000, scoped, tag = 'input window, operand 4, single buffered']
    #allocation3 [shape = 's32[2]{0}', space=sflag, size = 0x8, scoped, tag = 'scoped memory for bert_forward.7']
    %13 = vsyncpa [#allocation3], 0
    loop: start=0, step=1, limit=4
    $region2: #{bert_forward.7} parent=1 // loop_pre_header
      _
    $region3: #{bert_forward.7} parent=1 // loop_header
      %s15 = sphi 0, %s19
      %p16 = scmp.ge.s32.totalorder %s15, 4
      %s25 = sphi 0, %s27
      %s28 = sphi 0, %s25
      %s29 = sphi 0, %s28
      %s45 = sphi 0, %s29
      %s51 = sphi 0, %s53
      %s54 = sphi 0, %s51
      %s55 = sphi 0, %s54
      %s71 = sphi 0, %s55
      %s75 = sphi 0, %s75
      %s77 = sphi 0, %s75
      %s78 = sphi 0, %s77
      %s92 = sphi 0, %s78
      %s96 = sphi 0, %s96
      %s98 = sphi 0, %s96
      %s99 = sphi 0, %s98
      %s113 = sphi 0, %s99
      %s117 = sphi 0, %s117
      %s119 = sphi 0, %s117
      %s120 = sphi 0, %s119
      %s134 = sphi 0, %s120
      %s138 = sphi 0, %s138
      %s140 = sphi 0, %s138
      %s141 = sphi 0, %s140
      %s155 = sphi 0, %s141
      %s159 = sphi 0, %s159
      %s161 = sphi 0, %s159
      %s162 = sphi 0, %s161
      %s176 = sphi 0, %s162
      %s180 = sphi 0, %s180
      %s182 = sphi 0, %s180
      %s183 = sphi 0, %s182
      %s197 = sphi 0, %s183
      %s203 = sphi 0, %s205
      %s206 = sphi 0, %s203
      %s207 = sphi 0, %s206
      %s223 = sphi 0, %s207
    $region4: #{bert_forward.7} parent=1 // loop_header_branch
      %18 = sbr.rel (%p16) target = $region8
    $region5: #{bert_forward.7} parent=1 // loop_body
      %s20 = ssub.s32 %s15, 1
      %s21 = ssub.s32 %s15, 2
      %s22 = sadd.s32 %s15, 1
      %s23 = ssub.s32 %s15, %s22
      %p24 = scmp.eq.s32.totalorder %s23, 0
      %s26 = sadd.s32 %s25, 1
      %s27 = scalar_select %p24, %s25, %s26
      %p30 = pneg %p24
      %p31 = scmp.eq.s32.totalorder %s15, 1
      %p32 = por %p30, %p31
      %p33 = scmp.ne.s32.totalorder %s25, %s28
      %p34 = scmp.eq.s32.totalorder %s15, 0
      %p35 = por %p33, %p34
      %p36 = scmp.ne.s32.totalorder %s25, %s28
      %p37 = scmp.eq.s32.totalorder %s20, 1
      %p38 = por %p36, %p37
      %p39 = scmp.ne.s32.totalorder %s28, %s29
      %p40 = scmp.eq.s32.totalorder %s20, 0
      %p41 = por %p39, %p40
      %p42 = scmp.ne.s32.totalorder %s28, %s29
      %p43 = scmp.eq.s32.totalorder %s21, 1
      %p44 = por %p42, %p43
      %p46 = scmp.ne.s32.totalorder %s29, %s45
      %p47 = scmp.eq.s32.totalorder %s21, 0
      %p48 = por %p46, %p47
      %s49 = ssub.s32 %s15, %s22
      %p50 = scmp.eq.s32.totalorder %s49, 0
      %s52 = sadd.s32 %s51, 1
      %s53 = scalar_select %p50, %s51, %s52
      %p56 = pneg %p50
      %p57 = scmp.eq.s32.totalorder %s15, 1
      %p58 = por %p56, %p57
      %p59 = scmp.ne.s32.totalorder %s51, %s54
      %p60 = scmp.eq.s32.totalorder %s15, 0
      %p61 = por %p59, %p60
      %p62 = scmp.ne.s32.totalorder %s51, %s54
      %p63 = scmp.eq.s32.totalorder %s20, 1
      %p64 = por %p62, %p63
      %p65 = scmp.ne.s32.totalorder %s54, %s55
      %p66 = scmp.eq.s32.totalorder %s20, 0
      %p67 = por %p65, %p66
      %p68 = scmp.ne.s32.totalorder %s54, %s55
      %p69 = scmp.eq.s32.totalorder %s21, 1
      %p70 = por %p68, %p69
      %p72 = scmp.ne.s32.totalorder %s55, %s71
      %p73 = scmp.eq.s32.totalorder %s21, 0
      %p74 = por %p72, %p73
      %s76 = sadd.s32 %s75, 1
      %p79 = scmp.eq.s32.totalorder %s15, 1
      %p80 = scmp.ne.s32.totalorder %s75, %s77
      %p81 = scmp.eq.s32.totalorder %s15, 0
      %p82 = por %p80, %p81
      %p83 = scmp.ne.s32.totalorder %s75, %s77
      %p84 = scmp.eq.s32.totalorder %s20, 1
      %p85 = por %p83, %p84
      %p86 = scmp.ne.s32.totalorder %s77, %s78
      %p87 = scmp.eq.s32.totalorder %s20, 0
      %p88 = por %p86, %p87
      %p89 = scmp.ne.s32.totalorder %s77, %s78
      %p90 = scmp.eq.s32.totalorder %s21, 1
      %p91 = por %p89, %p90
      %p93 = scmp.ne.s32.totalorder %s78, %s92
      %p94 = scmp.eq.s32.totalorder %s21, 0
      %p95 = por %p93, %p94
      %s97 = sadd.s32 %s96, 1
      %p100 = scmp.eq.s32.totalorder %s15, 1
      %p101 = scmp.ne.s32.totalorder %s96, %s98
      %p102 = scmp.eq.s32.totalorder %s15, 0
      %p103 = por %p101, %p102
      %p104 = scmp.ne.s32.totalorder %s96, %s98
      %p105 = scmp.eq.s32.totalorder %s20, 1
      %p106 = por %p104, %p105
      %p107 = scmp.ne.s32.totalorder %s98, %s99
      %p108 = scmp.eq.s32.totalorder %s20, 0
      %p109 = por %p107, %p108
      %p110 = scmp.ne.s32.totalorder %s98, %s99
      %p111 = scmp.eq.s32.totalorder %s21, 1
      %p112 = por %p110, %p111
      %p114 = scmp.ne.s32.totalorder %s99, %s113
      %p115 = scmp.eq.s32.totalorder %s21, 0
      %p116 = por %p114, %p115
      %s118 = sadd.s32 %s117, 1
      %p121 = scmp.eq.s32.totalorder %s15, 1
      %p122 = scmp.ne.s32.totalorder %s117, %s119
      %p123 = scmp.eq.s32.totalorder %s15, 0
      %p124 = por %p122, %p123
      %p125 = scmp.ne.s32.totalorder %s117, %s119
      %p126 = scmp.eq.s32.totalorder %s20, 1
      %p127 = por %p125, %p126
      %p128 = scmp.ne.s32.totalorder %s119, %s120
      %p129 = scmp.eq.s32.totalorder %s20, 0
      %p130 = por %p128, %p129
      %p131 = scmp.ne.s32.totalorder %s119, %s120
      %p132 = scmp.eq.s32.totalorder %s21, 1
      %p133 = por %p131, %p132
      %p135 = scmp.ne.s32.totalorder %s120, %s134
      %p136 = scmp.eq.s32.totalorder %s21, 0
      %p137 = por %p135, %p136
      %s139 = sadd.s32 %s138, 1
      %p142 = scmp.eq.s32.totalorder %s15, 1
      %p143 = scmp.ne.s32.totalorder %s138, %s140
      %p144 = scmp.eq.s32.totalorder %s15, 0
      %p145 = por %p143, %p144
      %p146 = scmp.ne.s32.totalorder %s138, %s140
      %p147 = scmp.eq.s32.totalorder %s20, 1
      %p148 = por %p146, %p147
      %p149 = scmp.ne.s32.totalorder %s140, %s141
      %p150 = scmp.eq.s32.totalorder %s20, 0
      %p151 = por %p149, %p150
      %p152 = scmp.ne.s32.totalorder %s140, %s141
      %p153 = scmp.eq.s32.totalorder %s21, 1
      %p154 = por %p152, %p153
      %p156 = scmp.ne.s32.totalorder %s141, %s155
      %p157 = scmp.eq.s32.totalorder %s21, 0
      %p158 = por %p156, %p157
      %s160 = sadd.s32 %s159, 1
      %p163 = scmp.eq.s32.totalorder %s15, 1
      %p164 = scmp.ne.s32.totalorder %s159, %s161
      %p165 = scmp.eq.s32.totalorder %s15, 0
      %p166 = por %p164, %p165
      %p167 = scmp.ne.s32.totalorder %s159, %s161
      %p168 = scmp.eq.s32.totalorder %s20, 1
      %p169 = por %p167, %p168
      %p170 = scmp.ne.s32.totalorder %s161, %s162
      %p171 = scmp.eq.s32.totalorder %s20, 0
      %p172 = por %p170, %p171
      %p173 = scmp.ne.s32.totalorder %s161, %s162
      %p174 = scmp.eq.s32.totalorder %s21, 1
      %p175 = por %p173, %p174
      %p177 = scmp.ne.s32.totalorder %s162, %s176
      %p178 = scmp.eq.s32.totalorder %s21, 0
      %p179 = por %p177, %p178
      %s181 = sadd.s32 %s180, 1
      %p184 = scmp.eq.s32.totalorder %s15, 1
      %p185 = scmp.ne.s32.totalorder %s180, %s182
      %p186 = scmp.eq.s32.totalorder %s15, 0
      %p187 = por %p185, %p186
      %p188 = scmp.ne.s32.totalorder %s180, %s182
      %p189 = scmp.eq.s32.totalorder %s20, 1
      %p190 = por %p188, %p189
      %p191 = scmp.ne.s32.totalorder %s182, %s183
      %p192 = scmp.eq.s32.totalorder %s20, 0
      %p193 = por %p191, %p192
      %p194 = scmp.ne.s32.totalorder %s182, %s183
      %p195 = scmp.eq.s32.totalorder %s21, 1
      %p196 = por %p194, %p195
      %p198 = scmp.ne.s32.totalorder %s183, %s197
      %p199 = scmp.eq.s32.totalorder %s21, 0
      %p200 = por %p198, %p199
      %s201 = ssub.s32 %s15, %s22
      %p202 = scmp.eq.s32.totalorder %s201, 0
      %s204 = sadd.s32 %s203, 1
      %s205 = scalar_select %p202, %s203, %s204
      %p208 = pneg %p202
      %p209 = scmp.eq.s32.totalorder %s15, 1
      %p210 = por %p208, %p209
      %p211 = scmp.ne.s32.totalorder %s203, %s206
      %p212 = scmp.eq.s32.totalorder %s15, 0
      %p213 = por %p211, %p212
      %p214 = scmp.ne.s32.totalorder %s203, %s206
      %p215 = scmp.eq.s32.totalorder %s20, 1
      %p216 = por %p214, %p215
      %p217 = scmp.ne.s32.totalorder %s206, %s207
      %p218 = scmp.eq.s32.totalorder %s20, 0
      %p219 = por %p217, %p218
      %p220 = scmp.ne.s32.totalorder %s206, %s207
      %p221 = scmp.eq.s32.totalorder %s21, 1
      %p222 = por %p220, %p221
      %p224 = scmp.ne.s32.totalorder %s207, %s223
      %p225 = scmp.eq.s32.totalorder %s21, 0
      %p226 = por %p224, %p225
      %p227 = scmp.le.s32.totalorder 1, %s15
      %p228 = scmp.lt.s32.totalorder %s15, 3
      %p229 = pnand %p227, %p228
      %p230 = pneg %p229
      // Predicated region
      $region9: #{bert_forward.7} parent=5 // pred_check
        _
      $region10: #{bert_forward.7} parent=5 // pred_check_branch
        %232 = sbr.rel (%p229) target = $region12
      $region11: #{bert_forward.7} parent=5 // pred_region
        %s233 = ssub.s32 %s15, 1
        // Predicated region
        $region13: #{bert_forward.7} parent=11 // pred_check
          %p234 = pneg %p88
        $region14: #{bert_forward.7} parent=11 // pred_check_branch
          %236 = sbr.rel (%p234) target = $region16
        $region15: #{bert_forward.7} parent=11 // pred_region
          _
        $region16: #{bert_forward.7} parent=11 // pred_fallthru
          _
        // Predicated region
        $region17: #{bert_forward.7} parent=11 // pred_check
          %p237 = pneg %p109
        $region18: #{bert_forward.7} parent=11 // pred_check_branch
          %239 = sbr.rel (%p237) target = $region20
        $region19: #{bert_forward.7} parent=11 // pred_region
          _
        $region20: #{bert_forward.7} parent=11 // pred_fallthru
          _
        // Predicated region
        $region21: #{bert_forward.7} parent=11 // pred_check
          %p240 = pneg %p130
        $region22: #{bert_forward.7} parent=11 // pred_check_branch
          %242 = sbr.rel (%p240) target = $region24
        $region23: #{bert_forward.7} parent=11 // pred_region
          %s244 = ssub.s32 2048, 2048
          %245 = vsyncadd [#allocation3], %s244
          %s246 = sshll.u32 [#allocation2], 4
          %s247 = int_to_ptr.vmem [resolvable:$true] %s246
          %252 = dma.hbm_to_vmem [thread:$0]  %s4, 2048, %s247, [#allocation3], 128, 128, 8
        $region24: #{bert_forward.7} parent=11 // pred_fallthru
          _
        // Predicated region
        $region25: #{bert_forward.7} parent=11 // pred_check
          %p253 = pneg %p151
        $region26: #{bert_forward.7} parent=11 // pred_check_branch
          %255 = sbr.rel (%p253) target = $region28
        $region27: #{bert_forward.7} parent=11 // pred_region
          _
        $region28: #{bert_forward.7} parent=11 // pred_fallthru
          _
        // Predicated region
        $region29: #{bert_forward.7} parent=11 // pred_check
          %p256 = pneg %p172
        $region30: #{bert_forward.7} parent=11 // pred_check_branch
          %258 = sbr.rel (%p256) target = $region32
        $region31: #{bert_forward.7} parent=11 // pred_region
          _
        $region32: #{bert_forward.7} parent=11 // pred_fallthru
          _
        // Predicated region
        $region33: #{bert_forward.7} parent=11 // pred_check
          %p259 = pneg %p193
        $region34: #{bert_forward.7} parent=11 // pred_check_branch
          %261 = sbr.rel (%p259) target = $region36
        $region35: #{bert_forward.7} parent=11 // pred_region
          _
        $region36: #{bert_forward.7} parent=11 // pred_fallthru
          _
      $region12: #{bert_forward.7} parent=5 // pred_fallthru
        _
      %p262 = scmp.lt.s32.totalorder %s15, 2
      // Predicated region
      $region37: #{bert_forward.7} parent=5 // pred_check
        %p263 = pneg %p262
      $region38: #{bert_forward.7} parent=5 // pred_check_branch
        %265 = sbr.rel (%p263) target = $region40
      $region39: #{bert_forward.7} parent=5 // pred_region
        // Predicated region
        $region41: #{bert_forward.7} parent=39 // pred_check
          %p266 = pneg %p35
        $region42: #{bert_forward.7} parent=39 // pred_check_branch
          %268 = sbr.rel (%p266) target = $region44
        $region43: #{bert_forward.7} parent=39 // pred_region
          %p269 = scmp.lt.s32.totalorder %s15, 1
          %s270 = scalar_select %p269, %s15, 1
          %s271 = smul.addr %s270, 2
          %s272 = smul.addr %s271, 8
          %s273 = scalar_lea.vmem %s0, %s272
        $region44: #{bert_forward.7} parent=39 // pred_fallthru
          _
        // Predicated region
        $region45: #{bert_forward.7} parent=39 // pred_check
          %p274 = pneg %p61
        $region46: #{bert_forward.7} parent=39 // pred_check_branch
          %276 = sbr.rel (%p274) target = $region48
        $region47: #{bert_forward.7} parent=39 // pred_region
          %p277 = scmp.lt.s32.totalorder %s15, 1
          %s278 = scalar_select %p277, %s15, 1
          %s279 = scalar_lea.vmem %s1, %s278
        $region48: #{bert_forward.7} parent=39 // pred_fallthru
          _
      $region40: #{bert_forward.7} parent=5 // pred_fallthru
        _
      %p280 = scmp.le.s32.totalorder 1, %s15
      %p281 = scmp.lt.s32.totalorder %s15, 3
      %p282 = pnand %p280, %p281
      %p283 = pneg %p282
      // Predicated region
      $region49: #{bert_forward.7} parent=5 // pred_check
        _
      $region50: #{bert_forward.7} parent=5 // pred_check_branch
        %285 = sbr.rel (%p282) target = $region52
      $region51: #{bert_forward.7} parent=5 // pred_region
        %s286 = ssub.s32 %s15, 1
        // Predicated region
        $region53: #{bert_forward.7} parent=51 // pred_check
          %p287 = pneg %p130
        $region54: #{bert_forward.7} parent=51 // pred_check_branch
          %289 = sbr.rel (%p287) target = $region56
        $region55: #{bert_forward.7} parent=51 // pred_region
          %290 = dma.done [#allocation3], 2048
        $region56: #{bert_forward.7} parent=51 // pred_fallthru
          _
        %p291 = scmp.lt.s32.totalorder %s20, 1
        %s292 = scalar_select %p291, %s20, 1
        %s293 = smul.addr %s292, 2
        %s294 = smul.addr %s293, 8
        %s295 = scalar_lea.vmem %s0, %s294
        %p296 = pneg %p41
        %p297 = pneg %p38
        %p298 = scmp.lt.s32.totalorder %s20, 1
        %s299 = scalar_select %p298, %s20, 1
        %s300 = scalar_lea.vmem %s1, %s299
        %p301 = pneg %p67
        %p302 = pneg %p64
        %p303 = pneg %p88
        %p304 = pneg %p85
        %p305 = pneg %p109
        %p306 = pneg %p106
        %p307 = pneg %p130
        %p308 = pneg %p127
        %p309 = pneg %p151
        %p310 = pneg %p148
        %p311 = pneg %p172
        %p312 = pneg %p169
        %p313 = pneg %p193
        %p314 = pneg %p190
        %p315 = pneg %p219
        %p316 = pneg %p216
        %p317 = scmp.lt.s32.totalorder %s20, 1
        %s318 = scalar_select %p317, %s20, 1
        %s319 = smul.addr %s318, 2
        %s320 = smul.addr %s319, 8
        %s321 = scalar_lea.vmem %s8, %s320
        %p322 = scmp.lt.s32.totalorder %s20, 1
        %s323 = scalar_select %p322, %s20, 1
        %s324 = smul.addr %s323, 2
        %s325 = smul.addr %s324, 8
        %s326 = scalar_lea.vmem %s0, %s325
        %p327 = scmp.lt.s32.totalorder %s20, 1
        %s328 = scalar_select %p327, %s20, 1
        %s329 = scalar_lea.vmem %s1, %s328
        %p330 = scmp.lt.s32.totalorder %s20, 1
        %s331 = scalar_select %p330, %s20, 1
        %s332 = smul.addr %s331, 2
        %s333 = smul.addr %s332, 8
        %s334 = scalar_lea.vmem %s8, %s333
        %v335 = vld [vmem:[%s326] sm:$0xff]
        %v336 = vld [vmem:[%s326 + $0x8] sm:$0xff]
        %v337 = vld [vmem:[%s2] sm:$0xff]
        %v338 = vld [vmem:[%s2 + $0x8] sm:$0xff]
        %v339 = vld [vmem:[%s2 + $0x10] sm:$0xff]
        %v340 = vld [vmem:[%s2 + $0x18] sm:$0xff]
        %v341 = vld [vmem:[%s2 + $0x20] sm:$0xff]
        %v342 = vld [vmem:[%s2 + $0x28] sm:$0xff]
        %v343 = vld [vmem:[%s2 + $0x30] sm:$0xff]
        %v344 = vld [vmem:[%s2 + $0x38] sm:$0xff]
        %v345 = vld [vmem:[%s2 + $0x40] sm:$0xff]
        %v346 = vld [vmem:[%s2 + $0x48] sm:$0xff]
        %v347 = vld [vmem:[%s2 + $0x50] sm:$0xff]
        %v348 = vld [vmem:[%s2 + $0x58] sm:$0xff]
        %v349 = vld [vmem:[%s2 + $0x60] sm:$0xff]
        %v350 = vld [vmem:[%s2 + $0x68] sm:$0xff]
        %v351 = vld [vmem:[%s2 + $0x70] sm:$0xff]
        %v352 = vld [vmem:[%s2 + $0x78] sm:$0xff]
        %v353 = vld [vmem:[%s2 + $0x80] sm:$0xff]
        %v354 = vld [vmem:[%s2 + $0x88] sm:$0xff]
        %v355 = vld [vmem:[%s2 + $0x90] sm:$0xff]
        %v356 = vld [vmem:[%s2 + $0x98] sm:$0xff]
        %v357 = vld [vmem:[%s2 + $0xa0] sm:$0xff]
        %v358 = vld [vmem:[%s2 + $0xa8] sm:$0xff]
        %v359 = vld [vmem:[%s2 + $0xb0] sm:$0xff]
        %v360 = vld [vmem:[%s2 + $0xb8] sm:$0xff]
        %v361 = vld [vmem:[%s2 + $0xc0] sm:$0xff]
        %v362 = vld [vmem:[%s2 + $0xc8] sm:$0xff]
        %v363 = vld [vmem:[%s2 + $0xd0] sm:$0xff]
        %v364 = vld [vmem:[%s2 + $0xd8] sm:$0xff]
        %v365 = vld [vmem:[%s2 + $0xe0] sm:$0xff]
        %v366 = vld [vmem:[%s2 + $0xe8] sm:$0xff]
        %v367 = vld [vmem:[%s2 + $0xf0] sm:$0xff]
        %v368 = vld [vmem:[%s2 + $0xf8] sm:$0xff]
        %v369 = vld [vmem:[%s2 + $0x100] sm:$0xff]
        %v370 = vld [vmem:[%s2 + $0x108] sm:$0xff]
        %v371 = vld [vmem:[%s2 + $0x110] sm:$0xff]
        %v372 = vld [vmem:[%s2 + $0x118] sm:$0xff]
        %v373 = vld [vmem:[%s2 + $0x120] sm:$0xff]
        %v374 = vld [vmem:[%s2 + $0x128] sm:$0xff]
        %v375 = vld [vmem:[%s2 + $0x130] sm:$0xff]
        %v376 = vld [vmem:[%s2 + $0x138] sm:$0xff]
        %v377 = vld [vmem:[%s2 + $0x140] sm:$0xff]
        %v378 = vld [vmem:[%s2 + $0x148] sm:$0xff]
        %v379 = vld [vmem:[%s2 + $0x150] sm:$0xff]
        %v380 = vld [vmem:[%s2 + $0x158] sm:$0xff]
        %v381 = vld [vmem:[%s2 + $0x160] sm:$0xff]
        %v382 = vld [vmem:[%s2 + $0x168] sm:$0xff]
        %v383 = vld [vmem:[%s2 + $0x170] sm:$0xff]
        %v384 = vld [vmem:[%s2 + $0x178] sm:$0xff]
        %v385 = vld [vmem:[%s3] sm:$0x7]
        %v387 = vlaneseq
        %v388 = vshrl.u32 %v387, 7
        %v389 = vsub.s32 0, %v388
        %v390 = vrot.slane %v385, %v389
        %v391 = vlaneseq
        %v392 = vshrl.u32 %v391, 7
        %v393 = vsub.s32 1, %v392
        %v394 = vrot.slane %v385, %v393
        %v395 = vlaneseq
        %v396 = vshrl.u32 %v395, 7
        %v397 = vsub.s32 2, %v396
        %v398 = vrot.slane %v385, %v397
        %402 = vmatprep.subr.mxu0 %v338
        %403 = vmatpush1.msra.mxu0 %v337
        %404 = vmatprep.subr.mxu0 %v341
        %405 = vmatpush1.msra.mxu0 %v340
        %406 = vmatprep.subr.mxu0 %v344
        %407 = vmatpush1.msra.mxu0 %v343
        %408 = vmatprep.subr.mxu0 %v347
        %409 = vmatpush1.msra.mxu0 %v346
        %410 = vmatprep.subr.mxu0 %v350
        %411 = vmatpush1.msra.mxu0 %v349
        %412 = vmatprep.subr.mxu0 %v353
        %413 = vmatpush1.msra.mxu0 %v352
        %414 = vmatprep.subr.mxu0 %v356
        %415 = vmatpush1.msra.mxu0 %v355
        %416 = vmatprep.subr.mxu0 %v359
        %417 = vmatpush1.msra.mxu0 %v358
        %418 = vmatprep.subr.mxu0 %v362
        %419 = vmatpush1.msra.mxu0 %v361
        %420 = vmatprep.subr.mxu0 %v365
        %421 = vmatpush1.msra.mxu0 %v364
        %422 = vmatprep.subr.mxu0 %v368
        %423 = vmatpush1.msra.mxu0 %v367
        %424 = vmatprep.subr.mxu0 %v371
        %425 = vmatpush1.msra.mxu0 %v370
        %426 = vmatprep.subr.mxu0 %v374
        %427 = vmatpush1.msra.mxu0 %v373
        %428 = vmatprep.subr.mxu0 %v377
        %429 = vmatpush1.msra.mxu0 %v376
        %430 = vmatprep.subr.mxu0 %v380
        %431 = vmatpush1.msra.mxu0 %v379
        %432 = vmatprep.subr.mxu0 %v383
        %433 = vmatpush1.msra.mxu0 %v382
        %434 = vmatprep.subr.mxu0 0.0
        %435 = vmatpush1.msra.mxu0 0.0
        %436 = vmatprep.subr.mxu0 0.0
        %437 = vmatpush1.msra.mxu0 0.0
        %438 = vmatprep.subr.mxu0 0.0
        %439 = vmatpush1.msra.mxu0 0.0
        %440 = vmatprep.subr.mxu0 0.0
        %441 = vmatpush1.msra.mxu0 0.0
        %442 = vmatprep.subr.mxu0 0.0
        %443 = vmatpush1.msra.mxu0 0.0
        %444 = vmatprep.subr.mxu0 0.0
        %445 = vmatpush1.msra.mxu0 0.0
        %446 = vmatprep.subr.mxu0 0.0
        %447 = vmatpush1.msra.mxu0 0.0
        %448 = vmatprep.subr.mxu0 0.0
        %449 = vmatpush1.msra.mxu0 0.0
        %450 = vmatprep.subr.mxu0 0.0
        %451 = vmatpush1.msra.mxu0 0.0
        %452 = vmatprep.subr.mxu0 0.0
        %453 = vmatpush1.msra.mxu0 0.0
        %454 = vmatprep.subr.mxu0 0.0
        %455 = vmatpush1.msra.mxu0 0.0
        %456 = vmatprep.subr.mxu0 0.0
        %457 = vmatpush1.msra.mxu0 0.0
        %458 = vmatprep.subr.mxu0 0.0
        %459 = vmatpush1.msra.mxu0 0.0
        %460 = vmatprep.subr.mxu0 0.0
        %461 = vmatpush1.msra.mxu0 0.0
        %462 = vmatprep.subr.mxu0 0.0
        %463 = vmatpush1.msra.mxu0 0.0
        %464 = vmatprep.subr.mxu0 0.0
        %465 = vmatpush1.msra.mxu0 0.0
        %466 = vmatprep.mubr.f32.mxu0 0.0
        %467 = vmatmul.mubr.f32.gmra.mrb[0].mxu0 %v335
        %v468 = vpop.f32.mrb[0].mxu0
        %v469 = vadd.f32 %v390, %v468
        %v470 = vpop.f32.mrb[0].mxu0
        %v471 = vadd.f32 %v394, %v470
        %472 = vmatprep.mubr.f32.mxu0 0.0
        %473 = vmatmul.mubr.f32.gmra.mrb[0].mxu0 %v336
        %v474 = vpop.f32.mrb[0].mxu0
        %v475 = vadd.f32 %v390, %v474
        %v476 = vpop.f32.mrb[0].mxu0
        %v477 = vadd.f32 %v394, %v476
        %478 = vdwg.mxu0
        %479 = vmatprep.subr.mxu0 0.0
        %480 = vmatpush1.msra.mxu0 %v339
        %481 = vmatprep.subr.mxu0 0.0
        %482 = vmatpush1.msra.mxu0 %v342
        %483 = vmatprep.subr.mxu0 0.0
        %484 = vmatpush1.msra.mxu0 %v345
        %485 = vmatprep.subr.mxu0 0.0
        %486 = vmatpush1.msra.mxu0 %v348
        %487 = vmatprep.subr.mxu0 0.0
        %488 = vmatpush1.msra.mxu0 %v351
        %489 = vmatprep.subr.mxu0 0.0
        %490 = vmatpush1.msra.mxu0 %v354
        %491 = vmatprep.subr.mxu0 0.0
        %492 = vmatpush1.msra.mxu0 %v357
        %493 = vmatprep.subr.mxu0 0.0
        %494 = vmatpush1.msra.mxu0 %v360
        %495 = vmatprep.subr.mxu0 0.0
        %496 = vmatpush1.msra.mxu0 %v363
        %497 = vmatprep.subr.mxu0 0.0
        %498 = vmatpush1.msra.mxu0 %v366
        %499 = vmatprep.subr.mxu0 0.0
        %500 = vmatpush1.msra.mxu0 %v369
        %501 = vmatprep.subr.mxu0 0.0
        %502 = vmatpush1.msra.mxu0 %v372
        %503 = vmatprep.subr.mxu0 0.0
        %504 = vmatpush1.msra.mxu0 %v375
        %505 = vmatprep.subr.mxu0 0.0
        %506 = vmatpush1.msra.mxu0 %v378
        %507 = vmatprep.subr.mxu0 0.0
        %508 = vmatpush1.msra.mxu0 %v381
        %509 = vmatprep.subr.mxu0 0.0
        %510 = vmatpush1.msra.mxu0 %v384
        %511 = vmatprep.subr.mxu0 0.0
        %512 = vmatpush1.msra.mxu0 0.0
        %513 = vmatprep.subr.mxu0 0.0
        %514 = vmatpush1.msra.mxu0 0.0
        %515 = vmatprep.subr.mxu0 0.0
        %516 = vmatpush1.msra.mxu0 0.0
        %517 = vmatprep.subr.mxu0 0.0
        %518 = vmatpush1.msra.mxu0 0.0
        %519 = vmatprep.subr.mxu0 0.0
        %520 = vmatpush1.msra.mxu0 0.0
        %521 = vmatprep.subr.mxu0 0.0
        %522 = vmatpush1.msra.mxu0 0.0
        %523 = vmatprep.subr.mxu0 0.0
        %524 = vmatpush1.msra.mxu0 0.0
        %525 = vmatprep.subr.mxu0 0.0
        %526 = vmatpush1.msra.mxu0 0.0
        %527 = vmatprep.subr.mxu0 0.0
        %528 = vmatpush1.msra.mxu0 0.0
        %529 = vmatprep.subr.mxu0 0.0
        %530 = vmatpush1.msra.mxu0 0.0
        %531 = vmatprep.subr.mxu0 0.0
        %532 = vmatpush1.msra.mxu0 0.0
        %533 = vmatprep.subr.mxu0 0.0
        %534 = vmatpush1.msra.mxu0 0.0
        %535 = vmatprep.subr.mxu0 0.0
        %536 = vmatpush1.msra.mxu0 0.0
        %537 = vmatprep.subr.mxu0 0.0
        %538 = vmatpush1.msra.mxu0 0.0
        %539 = vmatprep.subr.mxu0 0.0
        %540 = vmatpush1.msra.mxu0 0.0
        %541 = vmatprep.subr.mxu0 0.0
        %542 = vmatpush1.msra.mxu0 0.0
        %543 = vmatprep.mubr.f32.mxu0 0.0
        %544 = vmatmul.mubr.f32.gmra.mrb[0].mxu0 %v335
        %v545 = vpop.f32.mrb[0].mxu0
        %v546 = vadd.f32 %v398, %v545
        %v547 = vpop.f32.mrb[0].mxu0
        %548 = vmatprep.mubr.f32.mxu0 0.0
        %549 = vmatmul.mubr.f32.gmra.mrb[0].mxu0 %v336
        %v550 = vpop.f32.mrb[0].mxu0
        %v551 = vadd.f32 %v398, %v550
        %v552 = vpop.f32.mrb[0].mxu0
        %553 = vdwg.mxu0
        %v554 = vld [vmem:[%s329] sm:$0x1]
        %v555 = vld [vmem:[%s5] sm:$0x1]
        %v557 = vlaneseq
        %v558 = vshrl.u32 %v557, 7
        %v559 = vsub.s32 0, %v558
        %v560 = vrot.slane %v555, %v559
        %v562 = vadd.f32 %v335, %v560
        %v563 = vadd.f32 %v336, %v560
        %vm564 = vcmask 261120
        %v566 = vsel %vm564, %v469, 0
        %v569 = vsel %vm564, %v475, 0
        %v572 = vsel %vm564, %v471, 0
        %v575 = vsel %vm564, %v477, 0
        %577 = vmatprep.subr.mxu0 0.0
        %578 = vmatpush1.xpose.msra.mxu0 %v572
        %579 = vmatprep.subr.mxu0 0.0
        %580 = vmatpush1.xpose.msra.mxu0 %v575
        %581 = vmatprep.subr.mxu0 0.0
        %582 = vmatpush1.xpose.msra.mxu0 0.0
        %583 = vmatprep.subr.mxu0 0.0
        %584 = vmatpush1.xpose.msra.mxu0 0.0
        %585 = vmatprep.subr.mxu0 0.0
        %586 = vmatpush1.xpose.msra.mxu0 0.0
        %587 = vmatprep.subr.mxu0 0.0
        %588 = vmatpush1.xpose.msra.mxu0 0.0
        %589 = vmatprep.subr.mxu0 0.0
        %590 = vmatpush1.xpose.msra.mxu0 0.0
        %591 = vmatprep.subr.mxu0 0.0
        %592 = vmatpush1.xpose.msra.mxu0 0.0
        %593 = vmatprep.subr.mxu0 0.0
        %594 = vmatpush1.xpose.msra.mxu0 0.0
        %595 = vmatprep.subr.mxu0 0.0
        %596 = vmatpush1.xpose.msra.mxu0 0.0
        %597 = vmatprep.subr.mxu0 0.0
        %598 = vmatpush1.xpose.msra.mxu0 0.0
        %599 = vmatprep.subr.mxu0 0.0
        %600 = vmatpush1.xpose.msra.mxu0 0.0
        %601 = vmatprep.subr.mxu0 0.0
        %602 = vmatpush1.xpose.msra.mxu0 0.0
        %603 = vmatprep.subr.mxu0 0.0
        %604 = vmatpush1.xpose.msra.mxu0 0.0
        %605 = vmatprep.subr.mxu0 0.0
        %606 = vmatpush1.xpose.msra.mxu0 0.0
        %607 = vmatprep.subr.mxu0 0.0
        %608 = vmatpush1.xpose.msra.mxu0 0.0
        %609 = vmatprep.subr.mxu0 0.0
        %610 = vmatpush1.xpose.msra.mxu0 0.0
        %611 = vmatprep.subr.mxu0 0.0
        %612 = vmatpush1.xpose.msra.mxu0 0.0
        %613 = vmatprep.subr.mxu0 0.0
        %614 = vmatpush1.xpose.msra.mxu0 0.0
        %615 = vmatprep.subr.mxu0 0.0
        %616 = vmatpush1.xpose.msra.mxu0 0.0
        %617 = vmatprep.subr.mxu0 0.0
        %618 = vmatpush1.xpose.msra.mxu0 0.0
        %619 = vmatprep.subr.mxu0 0.0
        %620 = vmatpush1.xpose.msra.mxu0 0.0
        %621 = vmatprep.subr.mxu0 0.0
        %622 = vmatpush1.xpose.msra.mxu0 0.0
        %623 = vmatprep.subr.mxu0 0.0
        %624 = vmatpush1.xpose.msra.mxu0 0.0
        %625 = vmatprep.subr.mxu0 0.0
        %626 = vmatpush1.xpose.msra.mxu0 0.0
        %627 = vmatprep.subr.mxu0 0.0
        %628 = vmatpush1.xpose.msra.mxu0 0.0
        %629 = vmatprep.subr.mxu0 0.0
        %630 = vmatpush1.xpose.msra.mxu0 0.0
        %631 = vmatprep.subr.mxu0 0.0
        %632 = vmatpush1.xpose.msra.mxu0 0.0
        %633 = vmatprep.subr.mxu0 0.0
        %634 = vmatpush1.xpose.msra.mxu0 0.0
        %635 = vmatprep.subr.mxu0 0.0
        %636 = vmatpush1.xpose.msra.mxu0 0.0
        %637 = vmatprep.subr.mxu0 0.0
        %638 = vmatpush1.xpose.msra.mxu0 0.0
        %639 = vmatprep.subr.mxu0 0.0
        %640 = vmatpush1.xpose.msra.mxu0 0.0
        %641 = vmatprep.mubr.f32.mxu0 0.0
        %642 = vmatmul.mubr.f32.gmra.mrb[0].mxu0 %v566
        %v643 = vpop.f32.mrb[0].mxu0
        %v644 = vadd.f32 0.0, %v643
        %v645 = vpop.f32.mrb[0].mxu0
        %646 = vmatprep.mubr.f32.mxu0 0.0
        %647 = vmatmul.mubr.f32.gmra.mrb[0].mxu0 %v569
        %v648 = vpop.f32.mrb[0].mxu0
        %v649 = vadd.f32 0.0, %v648
        %v650 = vpop.f32.mrb[0].mxu0
        %651 = vdwg.mxu0
        %v652 = vmul.f32 %v644, 0.17677669
        %v653 = vmul.f32 %v649, 0.17677669
        %v655 = vlaneseq
        %v656 = vshrl.u32 %v655, 7
        %v657 = vsub.s32 0, %v656
        %v658 = vrot.slane %v554, %v657
        %v660 = vadd.f32 %v652, %v658
        %v661 = vadd.f32 %v653, %v658
        %vm662 = vcmask 130048
        %v663 = vsel %vm662, %v660, -inf
        %664 = vmax.xlane.f32.xlu0 %v663
        %v665 = vpop.xlane.xlu0 %664
        %v666 = vsel %vm662, %v661, -inf
        %667 = vmax.xlane.f32.xlu0 %v666
        %v668 = vpop.xlane.xlu0 %667
        %v669 = vsub.f32 %v660, %v665
        %v670 = vsub.f32 %v661, %v668
        %v671 = vmul.f32 %v669, 1.442695
        %v672 = vpow.pop %v671
        %v673 = vmul.f32 %v670, 1.442695
        %v674 = vpow.pop %v673
        %v675 = vsel %vm662, %v672, 0.0
        %676 = vadd.xlane.f32.xlu0 %v675
        %v677 = vpop.xlane.xlu0 %676
        %v678 = vsel %vm662, %v674, 0.0
        %679 = vadd.xlane.f32.xlu0 %v678
        %v680 = vpop.xlane.xlu0 %679
        %v681 = vrcp.pop %v677
        %v682 = vrcp.pop %v680
        %v683 = vmul.f32 %v672, %v681
        %v684 = vmul.f32 %v674, %v682
        %v686 = vsel %vm662, %v683, 0
        %v689 = vsel %vm662, %v684, 0
        %691 = vmatprep.subr.mxu0 0.0
        %692 = vmatpush1.msra.mxu0 %v546
        %693 = vmatprep.subr.mxu0 0.0
        %694 = vmatpush1.msra.mxu0 %v551
        %695 = vmatprep.subr.mxu0 0.0
        %696 = vmatpush1.msra.mxu0 0.0
        %697 = vmatprep.subr.mxu0 0.0
        %698 = vmatpush1.msra.mxu0 0.0
        %699 = vmatprep.subr.mxu0 0.0
        %700 = vmatpush1.msra.mxu0 0.0
        %701 = vmatprep.subr.mxu0 0.0
        %702 = vmatpush1.msra.mxu0 0.0
        %703 = vmatprep.subr.mxu0 0.0
        %704 = vmatpush1.msra.mxu0 0.0
        %705 = vmatprep.subr.mxu0 0.0
        %706 = vmatpush1.msra.mxu0 0.0
        %707 = vmatprep.subr.mxu0 0.0
        %708 = vmatpush1.msra.mxu0 0.0
        %709 = vmatprep.subr.mxu0 0.0
        %710 = vmatpush1.msra.mxu0 0.0
        %711 = vmatprep.subr.mxu0 0.0
        %712 = vmatpush1.msra.mxu0 0.0
        %713 = vmatprep.subr.mxu0 0.0
        %714 = vmatpush1.msra.mxu0 0.0
        %715 = vmatprep.subr.mxu0 0.0
        %716 = vmatpush1.msra.mxu0 0.0
        %717 = vmatprep.subr.mxu0 0.0
        %718 = vmatpush1.msra.mxu0 0.0
        %719 = vmatprep.subr.mxu0 0.0
        %720 = vmatpush1.msra.mxu0 0.0
        %721 = vmatprep.subr.mxu0 0.0
        %722 = vmatpush1.msra.mxu0 0.0
        %723 = vmatprep.subr.mxu0 0.0
        %724 = vmatpush1.msra.mxu0 0.0
        %725 = vmatprep.subr.mxu0 0.0
        %726 = vmatpush1.msra.mxu0 0.0
        %727 = vmatprep.subr.mxu0 0.0
        %728 = vmatpush1.msra.mxu0 0.0
        %729 = vmatprep.subr.mxu0 0.0
        %730 = vmatpush1.msra.mxu0 0.0
        %731 = vmatprep.subr.mxu0 0.0
        %732 = vmatpush1.msra.mxu0 0.0
        %733 = vmatprep.subr.mxu0 0.0
        %734 = vmatpush1.msra.mxu0 0.0
        %735 = vmatprep.subr.mxu0 0.0
        %736 = vmatpush1.msra.mxu0 0.0
        %737 = vmatprep.subr.mxu0 0.0
        %738 = vmatpush1.msra.mxu0 0.0
        %739 = vmatprep.subr.mxu0 0.0
        %740 = vmatpush1.msra.mxu0 0.0
        %741 = vmatprep.subr.mxu0 0.0
        %742 = vmatpush1.msra.mxu0 0.0
        %743 = vmatprep.subr.mxu0 0.0
        %744 = vmatpush1.msra.mxu0 0.0
        %745 = vmatprep.subr.mxu0 0.0
        %746 = vmatpush1.msra.mxu0 0.0
        %747 = vmatprep.subr.mxu0 0.0
        %748 = vmatpush1.msra.mxu0 0.0
        %749 = vmatprep.subr.mxu0 0.0
        %750 = vmatpush1.msra.mxu0 0.0
        %751 = vmatprep.subr.mxu0 0.0
        %752 = vmatpush1.msra.mxu0 0.0
        %753 = vmatprep.subr.mxu0 0.0
        %754 = vmatpush1.msra.mxu0 0.0
        %755 = vmatprep.mubr.f32.mxu0 0.0
        %756 = vmatmul.mubr.f32.gmra.mrb[0].mxu0 %v686
        %v757 = vpop.f32.mrb[0].mxu0
        %v758 = vadd.f32 0.0, %v757
        %v759 = vpop.f32.mrb[0].mxu0
        %760 = vmatprep.mubr.f32.mxu0 0.0
        %761 = vmatmul.mubr.f32.gmra.mrb[0].mxu0 %v689
        %v762 = vpop.f32.mrb[0].mxu0
        %v763 = vadd.f32 0.0, %v762
        %v764 = vpop.f32.mrb[0].mxu0
        %765 = vdwg.mxu0
        %v766 = vld [vmem:[#allocation2] sm:$0xff]
        %v767 = vld [vmem:[#allocation2 + $0x8] sm:$0xff]
        %v768 = vld [vmem:[#allocation2 + $0x10] sm:$0xff]
        %v769 = vld [vmem:[#allocation2 + $0x18] sm:$0xff]
        %v771 = vsel %vm564, %v758, 0
        %v774 = vsel %vm564, %v763, 0
        %776 = vmatprep.subr.mxu0 0.0
        %777 = vmatpush1.msra.mxu0 %v766
        %778 = vmatprep.subr.mxu0 0.0
        %779 = vmatpush1.msra.mxu0 %v767
        %780 = vmatprep.subr.mxu0 0.0
        %781 = vmatpush1.msra.mxu0 %v768
        %782 = vmatprep.subr.mxu0 0.0
        %783 = vmatpush1.msra.mxu0 %v769
        %784 = vmatprep.subr.mxu0 0.0
        %785 = vmatpush1.msra.mxu0 0.0
        %786 = vmatprep.subr.mxu0 0.0
        %787 = vmatpush1.msra.mxu0 0.0
        %788 = vmatprep.subr.mxu0 0.0
        %789 = vmatpush1.msra.mxu0 0.0
        %790 = vmatprep.subr.mxu0 0.0
        %791 = vmatpush1.msra.mxu0 0.0
        %792 = vmatprep.subr.mxu0 0.0
        %793 = vmatpush1.msra.mxu0 0.0
        %794 = vmatprep.subr.mxu0 0.0
        %795 = vmatpush1.msra.mxu0 0.0
        %796 = vmatprep.subr.mxu0 0.0
        %797 = vmatpush1.msra.mxu0 0.0
        %798 = vmatprep.subr.mxu0 0.0
        %799 = vmatpush1.msra.mxu0 0.0
        %800 = vmatprep.subr.mxu0 0.0
        %801 = vmatpush1.msra.mxu0 0.0
        %802 = vmatprep.subr.mxu0 0.0
        %803 = vmatpush1.msra.mxu0 0.0
        %804 = vmatprep.subr.mxu0 0.0
        %805 = vmatpush1.msra.mxu0 0.0
        %806 = vmatprep.subr.mxu0 0.0
        %807 = vmatpush1.msra.mxu0 0.0
        %808 = vmatprep.subr.mxu0 0.0
        %809 = vmatpush1.msra.mxu0 0.0
        %810 = vmatprep.subr.mxu0 0.0
        %811 = vmatpush1.msra.mxu0 0.0
        %812 = vmatprep.subr.mxu0 0.0
        %813 = vmatpush1.msra.mxu0 0.0
        %814 = vmatprep.subr.mxu0 0.0
        %815 = vmatpush1.msra.mxu0 0.0
        %816 = vmatprep.subr.mxu0 0.0
        %817 = vmatpush1.msra.mxu0 0.0
        %818 = vmatprep.subr.mxu0 0.0
        %819 = vmatpush1.msra.mxu0 0.0
        %820 = vmatprep.subr.mxu0 0.0
        %821 = vmatpush1.msra.mxu0 0.0
        %822 = vmatprep.subr.mxu0 0.0
        %823 = vmatpush1.msra.mxu0 0.0
        %824 = vmatprep.subr.mxu0 0.0
        %825 = vmatpush1.msra.mxu0 0.0
        %826 = vmatprep.subr.mxu0 0.0
        %827 = vmatpush1.msra.mxu0 0.0
        %828 = vmatprep.subr.mxu0 0.0
        %829 = vmatpush1.msra.mxu0 0.0
        %830 = vmatprep.subr.mxu0 0.0
        %831 = vmatpush1.msra.mxu0 0.0
        %832 = vmatprep.subr.mxu0 0.0
        %833 = vmatpush1.msra.mxu0 0.0
        %834 = vmatprep.subr.mxu0 0.0
        %835 = vmatpush1.msra.mxu0 0.0
        %836 = vmatprep.subr.mxu0 0.0
        %837 = vmatpush1.msra.mxu0 0.0
        %838 = vmatprep.subr.mxu0 0.0
        %839 = vmatpush1.msra.mxu0 0.0
        %840 = vmatprep.mubr.f32.mxu0 0.0
        %841 = vmatmul.mubr.f32.gmra.mrb[0].mxu0 %v771
        %v842 = vpop.f32.mrb[0].mxu0
        %v843 = vadd.f32 0.0, %v842
        %v844 = vpop.f32.mrb[0].mxu0
        %845 = vmatprep.mubr.f32.mxu0 0.0
        %846 = vmatmul.mubr.f32.gmra.mrb[0].mxu0 %v774
        %v847 = vpop.f32.mrb[0].mxu0
        %v848 = vadd.f32 0.0, %v847
        %v849 = vpop.f32.mrb[0].mxu0
        %850 = vdwg.mxu0
        %v851 = vadd.f32 %v562, %v843
        %v852 = vadd.f32 %v563, %v848
        %853 = vrot.lane.b32.xlu0 %v469, 96
        %v854 = vpop.permute.xlu0 %853
        %855 = vrot.lane.b32.xlu0 %v475, 96
        %v856 = vpop.permute.xlu0 %855
        %857 = vrot.lane.b32.xlu0 %v471, 96
        %v858 = vpop.permute.xlu0 %857
        %859 = vrot.lane.b32.xlu0 %v477, 96
        %v860 = vpop.permute.xlu0 %859
        %v861 = vsel %vm564, %v854, 0
        %v863 = vsel %vm564, %v856, 0
        %v865 = vsel %vm564, %v858, 0
        %v867 = vsel %vm564, %v860, 0
        %869 = vmatprep.subr.mxu0 0.0
        %870 = vmatpush1.xpose.msra.mxu0 %v865
        %871 = vmatprep.subr.mxu0 0.0
        %872 = vmatpush1.xpose.msra.mxu0 %v867
        %873 = vmatprep.subr.mxu0 0.0
        %874 = vmatpush1.xpose.msra.mxu0 0.0
        %875 = vmatprep.subr.mxu0 0.0
        %876 = vmatpush1.xpose.msra.mxu0 0.0
        %877 = vmatprep.subr.mxu0 0.0
        %878 = vmatpush1.xpose.msra.mxu0 0.0
        %879 = vmatprep.subr.mxu0 0.0
        %880 = vmatpush1.xpose.msra.mxu0 0.0
        %881 = vmatprep.subr.mxu0 0.0
        %882 = vmatpush1.xpose.msra.mxu0 0.0
        %883 = vmatprep.subr.mxu0 0.0
        %884 = vmatpush1.xpose.msra.mxu0 0.0
        %885 = vmatprep.subr.mxu0 0.0
        %886 = vmatpush1.xpose.msra.mxu0 0.0
        %887 = vmatprep.subr.mxu0 0.0
        %888 = vmatpush1.xpose.msra.mxu0 0.0
        %889 = vmatprep.subr.mxu0 0.0
        %890 = vmatpush1.xpose.msra.mxu0 0.0
        %891 = vmatprep.subr.mxu0 0.0
        %892 = vmatpush1.xpose.msra.mxu0 0.0
        %893 = vmatprep.subr.mxu0 0.0
        %894 = vmatpush1.xpose.msra.mxu0 0.0
        %895 = vmatprep.subr.mxu0 0.0
        %896 = vmatpush1.xpose.msra.mxu0 0.0
        %897 = vmatprep.subr.mxu0 0.0
        %898 = vmatpush1.xpose.msra.mxu0 0.0
        %899 = vmatprep.subr.mxu0 0.0
        %900 = vmatpush1.xpose.msra.mxu0 0.0
        %901 = vmatprep.subr.mxu0 0.0
        %902 = vmatpush1.xpose.msra.mxu0 0.0
        %903 = vmatprep.subr.mxu0 0.0
        %904 = vmatpush1.xpose.msra.mxu0 0.0
        %905 = vmatprep.subr.mxu0 0.0
        %906 = vmatpush1.xpose.msra.mxu0 0.0
        %907 = vmatprep.subr.mxu0 0.0
        %908 = vmatpush1.xpose.msra.mxu0 0.0
        %909 = vmatprep.subr.mxu0 0.0
        %910 = vmatpush1.xpose.msra.mxu0 0.0
        %911 = vmatprep.subr.mxu0 0.0
        %912 = vmatpush1.xpose.msra.mxu0 0.0
        %913 = vmatprep.subr.mxu0 0.0
        %914 = vmatpush1.xpose.msra.mxu0 0.0
        %915 = vmatprep.subr.mxu0 0.0
        %916 = vmatpush1.xpose.msra.mxu0 0.0
        %917 = vmatprep.subr.mxu0 0.0
        %918 = vmatpush1.xpose.msra.mxu0 0.0
        %919 = vmatprep.subr.mxu0 0.0
        %920 = vmatpush1.xpose.msra.mxu0 0.0
        %921 = vmatprep.subr.mxu0 0.0
        %922 = vmatpush1.xpose.msra.mxu0 0.0
        %923 = vmatprep.subr.mxu0 0.0
        %924 = vmatpush1.xpose.msra.mxu0 0.0
        %925 = vmatprep.subr.mxu0 0.0
        %926 = vmatpush1.xpose.msra.mxu0 0.0
        %927 = vmatprep.subr.mxu0 0.0
        %928 = vmatpush1.xpose.msra.mxu0 0.0
        %929 = vmatprep.subr.mxu0 0.0
        %930 = vmatpush1.xpose.msra.mxu0 0.0
        %931 = vmatprep.subr.mxu0 0.0
        %932 = vmatpush1.xpose.msra.mxu0 0.0
        %933 = vmatprep.mubr.f32.mxu0 0.0
        %934 = vmatmul.mubr.f32.gmra.mrb[0].mxu0 %v861
        %v935 = vpop.f32.mrb[0].mxu0
        %v936 = vadd.f32 0.0, %v935
        %v937 = vpop.f32.mrb[0].mxu0
        %938 = vmatprep.mubr.f32.mxu0 0.0
        %939 = vmatmul.mubr.f32.gmra.mrb[0].mxu0 %v863
        %v940 = vpop.f32.mrb[0].mxu0
        %v941 = vadd.f32 0.0, %v940
        %v942 = vpop.f32.mrb[0].mxu0
        %943 = vdwg.mxu0
        %v944 = vmul.f32 %v936, 0.17677669
        %v945 = vmul.f32 %v941, 0.17677669
        %v946 = vadd.f32 %v944, %v658
        %v947 = vadd.f32 %v945, %v658
        %v948 = vsel %vm662, %v946, -inf
        %949 = vmax.xlane.f32.xlu0 %v948
        %v950 = vpop.xlane.xlu0 %949
        %v951 = vsel %vm662, %v947, -inf
        %952 = vmax.xlane.f32.xlu0 %v951
        %v953 = vpop.xlane.xlu0 %952
        %v954 = vsub.f32 %v946, %v950
        %v955 = vsub.f32 %v947, %v953
        %v956 = vmul.f32 %v954, 1.442695
        %v957 = vpow.pop %v956
        %v958 = vmul.f32 %v955, 1.442695
        %v959 = vpow.pop %v958
        %v960 = vsel %vm662, %v957, 0.0
        %961 = vadd.xlane.f32.xlu0 %v960
        %v962 = vpop.xlane.xlu0 %961
        %v963 = vsel %vm662, %v959, 0.0
        %964 = vadd.xlane.f32.xlu0 %v963
        %v965 = vpop.xlane.xlu0 %964
        %v966 = vrcp.pop %v962
        %v967 = vrcp.pop %v965
        %v968 = vmul.f32 %v957, %v966
        %v969 = vmul.f32 %v959, %v967
        %972 = vrot.lane.b32.xlu0 %v546, 96
        %v973 = vpop.permute.xlu0 %972
        %974 = vrot.lane.b32.xlu0 %v551, 96
        %v975 = vpop.permute.xlu0 %974
        %v979 = vsel %vm662, %v968, 0
        %v982 = vsel %vm662, %v969, 0
        %984 = vmatprep.subr.mxu0 0.0
        %985 = vmatpush1.msra.mxu0 %v973
        %986 = vmatprep.subr.mxu0 0.0
        %987 = vmatpush1.msra.mxu0 %v975
        %988 = vmatprep.subr.mxu0 0.0
        %989 = vmatpush1.msra.mxu0 0.0
        %990 = vmatprep.subr.mxu0 0.0
        %991 = vmatpush1.msra.mxu0 0.0
        %992 = vmatprep.subr.mxu0 0.0
        %993 = vmatpush1.msra.mxu0 0.0
        %994 = vmatprep.subr.mxu0 0.0
        %995 = vmatpush1.msra.mxu0 0.0
        %996 = vmatprep.subr.mxu0 0.0
        %997 = vmatpush1.msra.mxu0 0.0
        %998 = vmatprep.subr.mxu0 0.0
        %999 = vmatpush1.msra.mxu0 0.0
        %1000 = vmatprep.subr.mxu0 0.0
        %1001 = vmatpush1.msra.mxu0 0.0
        %1002 = vmatprep.subr.mxu0 0.0
        %1003 = vmatpush1.msra.mxu0 0.0
        %1004 = vmatprep.subr.mxu0 0.0
        %1005 = vmatpush1.msra.mxu0 0.0
        %1006 = vmatprep.subr.mxu0 0.0
        %1007 = vmatpush1.msra.mxu0 0.0
        %1008 = vmatprep.subr.mxu0 0.0
        %1009 = vmatpush1.msra.mxu0 0.0
        %1010 = vmatprep.subr.mxu0 0.0
        %1011 = vmatpush1.msra.mxu0 0.0
        %1012 = vmatprep.subr.mxu0 0.0
        %1013 = vmatpush1.msra.mxu0 0.0
        %1014 = vmatprep.subr.mxu0 0.0
        %1015 = vmatpush1.msra.mxu0 0.0
        %1016 = vmatprep.subr.mxu0 0.0
        %1017 = vmatpush1.msra.mxu0 0.0
        %1018 = vmatprep.subr.mxu0 0.0
        %1019 = vmatpush1.msra.mxu0 0.0
        %1020 = vmatprep.subr.mxu0 0.0
        %1021 = vmatpush1.msra.mxu0 0.0
        %1022 = vmatprep.subr.mxu0 0.0
        %1023 = vmatpush1.msra.mxu0 0.0
        %1024 = vmatprep.subr.mxu0 0.0
        %1025 = vmatpush1.msra.mxu0 0.0
        %1026 = vmatprep.subr.mxu0 0.0
        %1027 = vmatpush1.msra.mxu0 0.0
        %1028 = vmatprep.subr.mxu0 0.0
        %1029 = vmatpush1.msra.mxu0 0.0
        %1030 = vmatprep.subr.mxu0 0.0
        %1031 = vmatpush1.msra.mxu0 0.0
        %1032 = vmatprep.subr.mxu0 0.0
        %1033 = vmatpush1.msra.mxu0 0.0
        %1034 = vmatprep.subr.mxu0 0.0
        %1035 = vmatpush1.msra.mxu0 0.0
        %1036 = vmatprep.subr.mxu0 0.0
        %1037 = vmatpush1.msra.mxu0 0.0
        %1038 = vmatprep.subr.mxu0 0.0
        %1039 = vmatpush1.msra.mxu0 0.0
        %1040 = vmatprep.subr.mxu0 0.0
        %1041 = vmatpush1.msra.mxu0 0.0
        %1042 = vmatprep.subr.mxu0 0.0
        %1043 = vmatpush1.msra.mxu0 0.0
        %1044 = vmatprep.subr.mxu0 0.0
        %1045 = vmatpush1.msra.mxu0 0.0
        %1046 = vmatprep.subr.mxu0 0.0
        %1047 = vmatpush1.msra.mxu0 0.0
        %1048 = vmatprep.mubr.f32.mxu0 0.0
        %1049 = vmatmul.mubr.f32.gmra.mrb[0].mxu0 %v979
        %v1050 = vpop.f32.mrb[0].mxu0
        %v1051 = vadd.f32 0.0, %v1050
        %v1052 = vpop.f32.mrb[0].mxu0
        %1053 = vmatprep.mubr.f32.mxu0 0.0
        %1054 = vmatmul.mubr.f32.gmra.mrb[0].mxu0 %v982
        %v1055 = vpop.f32.mrb[0].mxu0
        %v1056 = vadd.f32 0.0, %v1055
        %v1057 = vpop.f32.mrb[0].mxu0
        %1058 = vdwg.mxu0
        %v1059 = vld [vmem:[#allocation2 + $0x20] sm:$0xff]
        %v1060 = vld [vmem:[#allocation2 + $0x28] sm:$0xff]
        %v1061 = vld [vmem:[#allocation2 + $0x30] sm:$0xff]
        %v1062 = vld [vmem:[#allocation2 + $0x38] sm:$0xff]
        %v1064 = vsel %vm564, %v1051, 0
        %v1067 = vsel %vm564, %v1056, 0
        %1069 = vmatprep.subr.mxu0 0.0
        %1070 = vmatpush1.msra.mxu0 %v1059
        %1071 = vmatprep.subr.mxu0 0.0
        %1072 = vmatpush1.msra.mxu0 %v1060
        %1073 = vmatprep.subr.mxu0 0.0
        %1074 = vmatpush1.msra.mxu0 %v1061
        %1075 = vmatprep.subr.mxu0 0.0
        %1076 = vmatpush1.msra.mxu0 %v1062
        %1077 = vmatprep.subr.mxu0 0.0
        %1078 = vmatpush1.msra.mxu0 0.0
        %1079 = vmatprep.subr.mxu0 0.0
        %1080 = vmatpush1.msra.mxu0 0.0
        %1081 = vmatprep.subr.mxu0 0.0
        %1082 = vmatpush1.msra.mxu0 0.0
        %1083 = vmatprep.subr.mxu0 0.0
        %1084 = vmatpush1.msra.mxu0 0.0
        %1085 = vmatprep.subr.mxu0 0.0
        %1086 = vmatpush1.msra.mxu0 0.0
        %1087 = vmatprep.subr.mxu0 0.0
        %1088 = vmatpush1.msra.mxu0 0.0
        %1089 = vmatprep.subr.mxu0 0.0
        %1090 = vmatpush1.msra.mxu0 0.0
        %1091 = vmatprep.subr.mxu0 0.0
        %1092 = vmatpush1.msra.mxu0 0.0
        %1093 = vmatprep.subr.mxu0 0.0
        %1094 = vmatpush1.msra.mxu0 0.0
        %1095 = vmatprep.subr.mxu0 0.0
        %1096 = vmatpush1.msra.mxu0 0.0
        %1097 = vmatprep.subr.mxu0 0.0
        %1098 = vmatpush1.msra.mxu0 0.0
        %1099 = vmatprep.subr.mxu0 0.0
        %1100 = vmatpush1.msra.mxu0 0.0
        %1101 = vmatprep.subr.mxu0 0.0
        %1102 = vmatpush1.msra.mxu0 0.0
        %1103 = vmatprep.subr.mxu0 0.0
        %1104 = vmatpush1.msra.mxu0 0.0
        %1105 = vmatprep.subr.mxu0 0.0
        %1106 = vmatpush1.msra.mxu0 0.0
        %1107 = vmatprep.subr.mxu0 0.0
        %1108 = vmatpush1.msra.mxu0 0.0
        %1109 = vmatprep.subr.mxu0 0.0
        %1110 = vmatpush1.msra.mxu0 0.0
        %1111 = vmatprep.subr.mxu0 0.0
        %1112 = vmatpush1.msra.mxu0 0.0
        %1113 = vmatprep.subr.mxu0 0.0
        %1114 = vmatpush1.msra.mxu0 0.0
        %1115 = vmatprep.subr.mxu0 0.0
        %1116 = vmatpush1.msra.mxu0 0.0
        %1117 = vmatprep.subr.mxu0 0.0
        %1118 = vmatpush1.msra.mxu0 0.0
        %1119 = vmatprep.subr.mxu0 0.0
        %1120 = vmatpush1.msra.mxu0 0.0
        %1121 = vmatprep.subr.mxu0 0.0
        %1122 = vmatpush1.msra.mxu0 0.0
        %1123 = vmatprep.subr.mxu0 0.0
        %1124 = vmatpush1.msra.mxu0 0.0
        %1125 = vmatprep.subr.mxu0 0.0
        %1126 = vmatpush1.msra.mxu0 0.0
        %1127 = vmatprep.subr.mxu0 0.0
        %1128 = vmatpush1.msra.mxu0 0.0
        %1129 = vmatprep.subr.mxu0 0.0
        %1130 = vmatpush1.msra.mxu0 0.0
        %1131 = vmatprep.subr.mxu0 0.0
        %1132 = vmatpush1.msra.mxu0 0.0
        %1133 = vmatprep.mubr.f32.mxu0 0.0
        %1134 = vmatmul.mubr.f32.gmra.mrb[0].mxu0 %v1064
        %v1135 = vpop.f32.mrb[0].mxu0
        %v1136 = vadd.f32 0.0, %v1135
        %v1137 = vpop.f32.mrb[0].mxu0
        %1138 = vmatprep.mubr.f32.mxu0 0.0
        %1139 = vmatmul.mubr.f32.gmra.mrb[0].mxu0 %v1067
        %v1140 = vpop.f32.mrb[0].mxu0
        %v1141 = vadd.f32 0.0, %v1140
        %v1142 = vpop.f32.mrb[0].mxu0
        %1143 = vdwg.mxu0
        %v1144 = vadd.f32 %v851, %v1136
        %v1145 = vadd.f32 %v852, %v1141
        %1146 = vrot.lane.b32.xlu0 %v469, 64
        %v1147 = vpop.permute.xlu0 %1146
        %1148 = vrot.lane.b32.xlu0 %v475, 64
        %v1149 = vpop.permute.xlu0 %1148
        %1150 = vrot.lane.b32.xlu0 %v471, 64
        %v1151 = vpop.permute.xlu0 %1150
        %1152 = vrot.lane.b32.xlu0 %v477, 64
        %v1153 = vpop.permute.xlu0 %1152
        %v1154 = vsel %vm564, %v1147, 0
        %v1156 = vsel %vm564, %v1149, 0
        %v1158 = vsel %vm564, %v1151, 0
        %v1160 = vsel %vm564, %v1153, 0
        %1162 = vmatprep.subr.mxu0 0.0
        %1163 = vmatpush1.xpose.msra.mxu0 %v1158
        %1164 = vmatprep.subr.mxu0 0.0
        %1165 = vmatpush1.xpose.msra.mxu0 %v1160
        %1166 = vmatprep.subr.mxu0 0.0
        %1167 = vmatpush1.xpose.msra.mxu0 0.0
        %1168 = vmatprep.subr.mxu0 0.0
        %1169 = vmatpush1.xpose.msra.mxu0 0.0
        %1170 = vmatprep.subr.mxu0 0.0
        %1171 = vmatpush1.xpose.msra.mxu0 0.0
        %1172 = vmatprep.subr.mxu0 0.0
        %1173 = vmatpush1.xpose.msra.mxu0 0.0
        %1174 = vmatprep.subr.mxu0 0.0
        %1175 = vmatpush1.xpose.msra.mxu0 0.0
        %1176 = vmatprep.subr.mxu0 0.0
        %1177 = vmatpush1.xpose.msra.mxu0 0.0
        %1178 = vmatprep.subr.mxu0 0.0
        %1179 = vmatpush1.xpose.msra.mxu0 0.0
        %1180 = vmatprep.subr.mxu0 0.0
        %1181 = vmatpush1.xpose.msra.mxu0 0.0
        %1182 = vmatprep.subr.mxu0 0.0
        %1183 = vmatpush1.xpose.msra.mxu0 0.0
        %1184 = vmatprep.subr.mxu0 0.0
        %1185 = vmatpush1.xpose.msra.mxu0 0.0
        %1186 = vmatprep.subr.mxu0 0.0
        %1187 = vmatpush1.xpose.msra.mxu0 0.0
        %1188 = vmatprep.subr.mxu0 0.0
        %1189 = vmatpush1.xpose.msra.mxu0 0.0
        %1190 = vmatprep.subr.mxu0 0.0
        %1191 = vmatpush1.xpose.msra.mxu0 0.0
        %1192 = vmatprep.subr.mxu0 0.0
        %1193 = vmatpush1.xpose.msra.mxu0 0.0
        %1194 = vmatprep.subr.mxu0 0.0
        %1195 = vmatpush1.xpose.msra.mxu0 0.0
        %1196 = vmatprep.subr.mxu0 0.0
        %1197 = vmatpush1.xpose.msra.mxu0 0.0
        %1198 = vmatprep.subr.mxu0 0.0
        %1199 = vmatpush1.xpose.msra.mxu0 0.0
        %1200 = vmatprep.subr.mxu0 0.0
        %1201 = vmatpush1.xpose.msra.mxu0 0.0
        %1202 = vmatprep.subr.mxu0 0.0
        %1203 = vmatpush1.xpose.msra.mxu0 0.0
        %1204 = vmatprep.subr.mxu0 0.0
        %1205 = vmatpush1.xpose.msra.mxu0 0.0
        %1206 = vmatprep.subr.mxu0 0.0
        %1207 = vmatpush1.xpose.msra.mxu0 0.0
        %1208 = vmatprep.subr.mxu0 0.0
        %1209 = vmatpush1.xpose.msra.mxu0 0.0
        %1210 = vmatprep.subr.mxu0 0.0
        %1211 = vmatpush1.xpose.msra.mxu0 0.0
        %1212 = vmatprep.subr.mxu0 0.0
        %1213 = vmatpush1.xpose.msra.mxu0 0.0
        %1214 = vmatprep.subr.mxu0 0.0
        %1215 = vmatpush1.xpose.msra.mxu0 0.0
        %1216 = vmatprep.subr.mxu0 0.0
        %1217 = vmatpush1.xpose.msra.mxu0 0.0
        %1218 = vmatprep.subr.mxu0 0.0
        %1219 = vmatpush1.xpose.msra.mxu0 0.0
        %1220 = vmatprep.subr.mxu0 0.0
        %1221 = vmatpush1.xpose.msra.mxu0 0.0
        %1222 = vmatprep.subr.mxu0 0.0
        %1223 = vmatpush1.xpose.msra.mxu0 0.0
        %1224 = vmatprep.subr.mxu0 0.0
        %1225 = vmatpush1.xpose.msra.mxu0 0.0
        %1226 = vmatprep.mubr.f32.mxu0 0.0
        %1227 = vmatmul.mubr.f32.gmra.mrb[0].mxu0 %v1154
        %v1228 = vpop.f32.mrb[0].mxu0
        %v1229 = vadd.f32 0.0, %v1228
        %v1230 = vpop.f32.mrb[0].mxu0
        %1231 = vmatprep.mubr.f32.mxu0 0.0
        %1232 = vmatmul.mubr.f32.gmra.mrb[0].mxu0 %v1156
        %v1233 = vpop.f32.mrb[0].mxu0
        %v1234 = vadd.f32 0.0, %v1233
        %v1235 = vpop.f32.mrb[0].mxu0
        %1236 = vdwg.mxu0
        %v1237 = vmul.f32 %v1229, 0.17677669
        %v1238 = vmul.f32 %v1234, 0.17677669
        %v1239 = vadd.f32 %v1237, %v658
        %v1240 = vadd.f32 %v1238, %v658
        %v1241 = vsel %vm662, %v1239, -inf
        %1242 = vmax.xlane.f32.xlu0 %v1241
        %v1243 = vpop.xlane.xlu0 %1242
        %v1244 = vsel %vm662, %v1240, -inf
        %1245 = vmax.xlane.f32.xlu0 %v1244
        %v1246 = vpop.xlane.xlu0 %1245
        %v1247 = vsub.f32 %v1239, %v1243
        %v1248 = vsub.f32 %v1240, %v1246
        %v1249 = vmul.f32 %v1247, 1.442695
        %v1250 = vpow.pop %v1249
        %v1251 = vmul.f32 %v1248, 1.442695
        %v1252 = vpow.pop %v1251
        %v1253 = vsel %vm662, %v1250, 0.0
        %1254 = vadd.xlane.f32.xlu0 %v1253
        %v1255 = vpop.xlane.xlu0 %1254
        %v1256 = vsel %vm662, %v1252, 0.0
        %1257 = vadd.xlane.f32.xlu0 %v1256
        %v1258 = vpop.xlane.xlu0 %1257
        %v1259 = vrcp.pop %v1255
        %v1260 = vrcp.pop %v1258
        %v1261 = vmul.f32 %v1250, %v1259
        %v1262 = vmul.f32 %v1252, %v1260
        %1263 = vrot.lane.b32.xlu0 %v546, 64
        %v1264 = vpop.permute.xlu0 %1263
        %1265 = vrot.lane.b32.xlu0 %v551, 64
        %v1266 = vpop.permute.xlu0 %1265
        %v1270 = vsel %vm662, %v1261, 0
        %v1273 = vsel %vm662, %v1262, 0
        %1275 = vmatprep.subr.mxu0 0.0
        %1276 = vmatpush1.msra.mxu0 %v1264
        %1277 = vmatprep.subr.mxu0 0.0
        %1278 = vmatpush1.msra.mxu0 %v1266
        %1279 = vmatprep.subr.mxu0 0.0
        %1280 = vmatpush1.msra.mxu0 0.0
        %1281 = vmatprep.subr.mxu0 0.0
        %1282 = vmatpush1.msra.mxu0 0.0
        %1283 = vmatprep.subr.mxu0 0.0
        %1284 = vmatpush1.msra.mxu0 0.0
        %1285 = vmatprep.subr.mxu0 0.0
        %1286 = vmatpush1.msra.mxu0 0.0
        %1287 = vmatprep.subr.mxu0 0.0
        %1288 = vmatpush1.msra.mxu0 0.0
        %1289 = vmatprep.subr.mxu0 0.0
        %1290 = vmatpush1.msra.mxu0 0.0
        %1291 = vmatprep.subr.mxu0 0.0
        %1292 = vmatpush1.msra.mxu0 0.0
        %1293 = vmatprep.subr.mxu0 0.0
        %1294 = vmatpush1.msra.mxu0 0.0
        %1295 = vmatprep.subr.mxu0 0.0
        %1296 = vmatpush1.msra.mxu0 0.0
        %1297 = vmatprep.subr.mxu0 0.0
        %1298 = vmatpush1.msra.mxu0 0.0
        %1299 = vmatprep.subr.mxu0 0.0
        %1300 = vmatpush1.msra.mxu0 0.0
        %1301 = vmatprep.subr.mxu0 0.0
        %1302 = vmatpush1.msra.mxu0 0.0
        %1303 = vmatprep.subr.mxu0 0.0
        %1304 = vmatpush1.msra.mxu0 0.0
        %1305 = vmatprep.subr.mxu0 0.0
        %1306 = vmatpush1.msra.mxu0 0.0
        %1307 = vmatprep.subr.mxu0 0.0
        %1308 = vmatpush1.msra.mxu0 0.0
        %1309 = vmatprep.subr.mxu0 0.0
        %1310 = vmatpush1.msra.mxu0 0.0
        %1311 = vmatprep.subr.mxu0 0.0
        %1312 = vmatpush1.msra.mxu0 0.0
        %1313 = vmatprep.subr.mxu0 0.0
        %1314 = vmatpush1.msra.mxu0 0.0
        %1315 = vmatprep.subr.mxu0 0.0
        %1316 = vmatpush1.msra.mxu0 0.0
        %1317 = vmatprep.subr.mxu0 0.0
        %1318 = vmatpush1.msra.mxu0 0.0
        %1319 = vmatprep.subr.mxu0 0.0
        %1320 = vmatpush1.msra.mxu0 0.0
        %1321 = vmatprep.subr.mxu0 0.0
        %1322 = vmatpush1.msra.mxu0 0.0
        %1323 = vmatprep.subr.mxu0 0.0
        %1324 = vmatpush1.msra.mxu0 0.0
        %1325 = vmatprep.subr.mxu0 0.0
        %1326 = vmatpush1.msra.mxu0 0.0
        %1327 = vmatprep.subr.mxu0 0.0
        %1328 = vmatpush1.msra.mxu0 0.0
        %1329 = vmatprep.subr.mxu0 0.0
        %1330 = vmatpush1.msra.mxu0 0.0
        %1331 = vmatprep.subr.mxu0 0.0
        %1332 = vmatpush1.msra.mxu0 0.0
        %1333 = vmatprep.subr.mxu0 0.0
        %1334 = vmatpush1.msra.mxu0 0.0
        %1335 = vmatprep.subr.mxu0 0.0
        %1336 = vmatpush1.msra.mxu0 0.0
        %1337 = vmatprep.subr.mxu0 0.0
        %1338 = vmatpush1.msra.mxu0 0.0
        %1339 = vmatprep.mubr.f32.mxu0 0.0
        %1340 = vmatmul.mubr.f32.gmra.mrb[0].mxu0 %v1270
        %v1341 = vpop.f32.mrb[0].mxu0
        %v1342 = vadd.f32 0.0, %v1341
        %v1343 = vpop.f32.mrb[0].mxu0
        %1344 = vmatprep.mubr.f32.mxu0 0.0
        %1345 = vmatmul.mubr.f32.gmra.mrb[0].mxu0 %v1273
        %v1346 = vpop.f32.mrb[0].mxu0
        %v1347 = vadd.f32 0.0, %v1346
        %v1348 = vpop.f32.mrb[0].mxu0
        %1349 = vdwg.mxu0
        %v1350 = vld [vmem:[#allocation2 + $0x40] sm:$0xff]
        %v1351 = vld [vmem:[#allocation2 + $0x48] sm:$0xff]
        %v1352 = vld [vmem:[#allocation2 + $0x50] sm:$0xff]
        %v1353 = vld [vmem:[#allocation2 + $0x58] sm:$0xff]
        %v1355 = vsel %vm564, %v1342, 0
        %v1358 = vsel %vm564, %v1347, 0
        %1360 = vmatprep.subr.mxu0 0.0
        %1361 = vmatpush1.msra.mxu0 %v1350
        %1362 = vmatprep.subr.mxu0 0.0
        %1363 = vmatpush1.msra.mxu0 %v1351
        %1364 = vmatprep.subr.mxu0 0.0
        %1365 = vmatpush1.msra.mxu0 %v1352
        %1366 = vmatprep.subr.mxu0 0.0
        %1367 = vmatpush1.msra.mxu0 %v1353
        %1368 = vmatprep.subr.mxu0 0.0
        %1369 = vmatpush1.msra.mxu0 0.0
        %1370 = vmatprep.subr.mxu0 0.0
        %1371 = vmatpush1.msra.mxu0 0.0
        %1372 = vmatprep.subr.mxu0 0.0
        %1373 = vmatpush1.msra.mxu0 0.0
        %1374 = vmatprep.subr.mxu0 0.0
        %1375 = vmatpush1.msra.mxu0 0.0
        %1376 = vmatprep.subr.mxu0 0.0
        %1377 = vmatpush1.msra.mxu0 0.0
        %1378 = vmatprep.subr.mxu0 0.0
        %1379 = vmatpush1.msra.mxu0 0.0
        %1380 = vmatprep.subr.mxu0 0.0
        %1381 = vmatpush1.msra.mxu0 0.0
        %1382 = vmatprep.subr.mxu0 0.0
        %1383 = vmatpush1.msra.mxu0 0.0
        %1384 = vmatprep.subr.mxu0 0.0
        %1385 = vmatpush1.msra.mxu0 0.0
        %1386 = vmatprep.subr.mxu0 0.0
        %1387 = vmatpush1.msra.mxu0 0.0
        %1388 = vmatprep.subr.mxu0 0.0
        %1389 = vmatpush1.msra.mxu0 0.0
        %1390 = vmatprep.subr.mxu0 0.0
        %1391 = vmatpush1.msra.mxu0 0.0
        %1392 = vmatprep.subr.mxu0 0.0
        %1393 = vmatpush1.msra.mxu0 0.0
        %1394 = vmatprep.subr.mxu0 0.0
        %1395 = vmatpush1.msra.mxu0 0.0
        %1396 = vmatprep.subr.mxu0 0.0
        %1397 = vmatpush1.msra.mxu0 0.0
        %1398 = vmatprep.subr.mxu0 0.0
        %1399 = vmatpush1.msra.mxu0 0.0
        %1400 = vmatprep.subr.mxu0 0.0
        %1401 = vmatpush1.msra.mxu0 0.0
        %1402 = vmatprep.subr.mxu0 0.0
        %1403 = vmatpush1.msra.mxu0 0.0
        %1404 = vmatprep.subr.mxu0 0.0
        %1405 = vmatpush1.msra.mxu0 0.0
        %1406 = vmatprep.subr.mxu0 0.0
        %1407 = vmatpush1.msra.mxu0 0.0
        %1408 = vmatprep.subr.mxu0 0.0
        %1409 = vmatpush1.msra.mxu0 0.0
        %1410 = vmatprep.subr.mxu0 0.0
        %1411 = vmatpush1.msra.mxu0 0.0
        %1412 = vmatprep.subr.mxu0 0.0
        %1413 = vmatpush1.msra.mxu0 0.0
        %1414 = vmatprep.subr.mxu0 0.0
        %1415 = vmatpush1.msra.mxu0 0.0
        %1416 = vmatprep.subr.mxu0 0.0
        %1417 = vmatpush1.msra.mxu0 0.0
        %1418 = vmatprep.subr.mxu0 0.0
        %1419 = vmatpush1.msra.mxu0 0.0
        %1420 = vmatprep.subr.mxu0 0.0
        %1421 = vmatpush1.msra.mxu0 0.0
        %1422 = vmatprep.subr.mxu0 0.0
        %1423 = vmatpush1.msra.mxu0 0.0
        %1424 = vmatprep.mubr.f32.mxu0 0.0
        %1425 = vmatmul.mubr.f32.gmra.mrb[0].mxu0 %v1355
        %v1426 = vpop.f32.mrb[0].mxu0
        %v1427 = vadd.f32 0.0, %v1426
        %v1428 = vpop.f32.mrb[0].mxu0
        %1429 = vmatprep.mubr.f32.mxu0 0.0
        %1430 = vmatmul.mubr.f32.gmra.mrb[0].mxu0 %v1358
        %v1431 = vpop.f32.mrb[0].mxu0
        %v1432 = vadd.f32 0.0, %v1431
        %v1433 = vpop.f32.mrb[0].mxu0
        %1434 = vdwg.mxu0
        %v1435 = vadd.f32 %v1144, %v1427
        %v1436 = vadd.f32 %v1145, %v1432
        %1437 = vrot.lane.b32.xlu0 %v469, 32
        %v1438 = vpop.permute.xlu0 %1437
        %1439 = vrot.lane.b32.xlu0 %v475, 32
        %v1440 = vpop.permute.xlu0 %1439
        %1441 = vrot.lane.b32.xlu0 %v471, 32
        %v1442 = vpop.permute.xlu0 %1441
        %1443 = vrot.lane.b32.xlu0 %v477, 32
        %v1444 = vpop.permute.xlu0 %1443
        %v1445 = vsel %vm564, %v1438, 0
        %v1447 = vsel %vm564, %v1440, 0
        %v1449 = vsel %vm564, %v1442, 0
        %v1451 = vsel %vm564, %v1444, 0
        %1453 = vmatprep.subr.mxu0 0.0
        %1454 = vmatpush1.xpose.msra.mxu0 %v1449
        %1455 = vmatprep.subr.mxu0 0.0
        %1456 = vmatpush1.xpose.msra.mxu0 %v1451
        %1457 = vmatprep.subr.mxu0 0.0
        %1458 = vmatpush1.xpose.msra.mxu0 0.0
        %1459 = vmatprep.subr.mxu0 0.0
        %1460 = vmatpush1.xpose.msra.mxu0 0.0
        %1461 = vmatprep.subr.mxu0 0.0
        %1462 = vmatpush1.xpose.msra.mxu0 0.0
        %1463 = vmatprep.subr.mxu0 0.0
        %1464 = vmatpush1.xpose.msra.mxu0 0.0
        %1465 = vmatprep.subr.mxu0 0.0
        %1466 = vmatpush1.xpose.msra.mxu0 0.0
        %1467 = vmatprep.subr.mxu0 0.0
        %1468 = vmatpush1.xpose.msra.mxu0 0.0
        %1469 = vmatprep.subr.mxu0 0.0
        %1470 = vmatpush1.xpose.msra.mxu0 0.0
        %1471 = vmatprep.subr.mxu0 0.0
        %1472 = vmatpush1.xpose.msra.mxu0 0.0
        %1473 = vmatprep.subr.mxu0 0.0
        %1474 = vmatpush1.xpose.msra.mxu0 0.0
        %1475 = vmatprep.subr.mxu0 0.0
        %1476 = vmatpush1.xpose.msra.mxu0 0.0
        %1477 = vmatprep.subr.mxu0 0.0
        %1478 = vmatpush1.xpose.msra.mxu0 0.0
        %1479 = vmatprep.subr.mxu0 0.0
        %1480 = vmatpush1.xpose.msra.mxu0 0.0
        %1481 = vmatprep.subr.mxu0 0.0
        %1482 = vmatpush1.xpose.msra.mxu0 0.0
        %1483 = vmatprep.subr.mxu0 0.0
        %1484 = vmatpush1.xpose.msra.mxu0 0.0
        %1485 = vmatprep.subr.mxu0 0.0
        %1486 = vmatpush1.xpose.msra.mxu0 0.0
        %1487 = vmatprep.subr.mxu0 0.0
        %1488 = vmatpush1.xpose.msra.mxu0 0.0
        %1489 = vmatprep.subr.mxu0 0.0
        %1490 = vmatpush1.xpose.msra.mxu0 0.0
        %1491 = vmatprep.subr.mxu0 0.0
        %1492 = vmatpush1.xpose.msra.mxu0 0.0
        %1493 = vmatprep.subr.mxu0 0.0
        %1494 = vmatpush1.xpose.msra.mxu0 0.0
        %1495 = vmatprep.subr.mxu0 0.0
        %1496 = vmatpush1.xpose.msra.mxu0 0.0
        %1497 = vmatprep.subr.mxu0 0.0
        %1498 = vmatpush1.xpose.msra.mxu0 0.0
        %1499 = vmatprep.subr.mxu0 0.0
        %1500 = vmatpush1.xpose.msra.mxu0 0.0
        %1501 = vmatprep.subr.mxu0 0.0
        %1502 = vmatpush1.xpose.msra.mxu0 0.0
        %1503 = vmatprep.subr.mxu0 0.0
        %1504 = vmatpush1.xpose.msra.mxu0 0.0
        %1505 = vmatprep.subr.mxu0 0.0
        %1506 = vmatpush1.xpose.msra.mxu0 0.0
        %1507 = vmatprep.subr.mxu0 0.0
        %1508 = vmatpush1.xpose.msra.mxu0 0.0
        %1509 = vmatprep.subr.mxu0 0.0
        %1510 = vmatpush1.xpose.msra.mxu0 0.0
        %1511 = vmatprep.subr.mxu0 0.0
        %1512 = vmatpush1.xpose.msra.mxu0 0.0
        %1513 = vmatprep.subr.mxu0 0.0
        %1514 = vmatpush1.xpose.msra.mxu0 0.0
        %1515 = vmatprep.subr.mxu0 0.0
        %1516 = vmatpush1.xpose.msra.mxu0 0.0
        %1517 = vmatprep.mubr.f32.mxu0 0.0
        %1518 = vmatmul.mubr.f32.gmra.mrb[0].mxu0 %v1445
        %v1519 = vpop.f32.mrb[0].mxu0
        %v1520 = vadd.f32 0.0, %v1519
        %v1521 = vpop.f32.mrb[0].mxu0
        %1522 = vmatprep.mubr.f32.mxu0 0.0
        %1523 = vmatmul.mubr.f32.gmra.mrb[0].mxu0 %v1447
        %v1524 = vpop.f32.mrb[0].mxu0
        %v1525 = vadd.f32 0.0, %v1524
        %v1526 = vpop.f32.mrb[0].mxu0
        %1527 = vdwg.mxu0
        %v1528 = vmul.f32 %v1520, 0.17677669
        %v1529 = vmul.f32 %v1525, 0.17677669
        %v1530 = vadd.f32 %v1528, %v658
        %v1531 = vadd.f32 %v1529, %v658
        %v1532 = vsel %vm662, %v1530, -inf
        %1533 = vmax.xlane.f32.xlu0 %v1532
        %v1534 = vpop.xlane.xlu0 %1533
        %v1535 = vsel %vm662, %v1531, -inf
        %1536 = vmax.xlane.f32.xlu0 %v1535
        %v1537 = vpop.xlane.xlu0 %1536
        %v1538 = vsub.f32 %v1530, %v1534
        %v1539 = vsub.f32 %v1531, %v1537
        %v1540 = vmul.f32 %v1538, 1.442695
        %v1541 = vpow.pop %v1540
        %v1542 = vmul.f32 %v1539, 1.442695
        %v1543 = vpow.pop %v1542
        %v1544 = vsel %vm662, %v1541, 0.0
        %1545 = vadd.xlane.f32.xlu0 %v1544
        %v1546 = vpop.xlane.xlu0 %1545
        %v1547 = vsel %vm662, %v1543, 0.0
        %1548 = vadd.xlane.f32.xlu0 %v1547
        %v1549 = vpop.xlane.xlu0 %1548
        %v1550 = vrcp.pop %v1546
        %v1551 = vrcp.pop %v1549
        %v1552 = vmul.f32 %v1541, %v1550
        %v1553 = vmul.f32 %v1543, %v1551
        %1554 = vrot.lane.b32.xlu0 %v546, 32
        %v1555 = vpop.permute.xlu0 %1554
        %1556 = vrot.lane.b32.xlu0 %v551, 32
        %v1557 = vpop.permute.xlu0 %1556
        %v1561 = vsel %vm662, %v1552, 0
        %v1564 = vsel %vm662, %v1553, 0
        %1566 = vmatprep.subr.mxu0 0.0
        %1567 = vmatpush1.msra.mxu0 %v1555
        %1568 = vmatprep.subr.mxu0 0.0
        %1569 = vmatpush1.msra.mxu0 %v1557
        %1570 = vmatprep.subr.mxu0 0.0
        %1571 = vmatpush1.msra.mxu0 0.0
        %1572 = vmatprep.subr.mxu0 0.0
        %1573 = vmatpush1.msra.mxu0 0.0
        %1574 = vmatprep.subr.mxu0 0.0
        %1575 = vmatpush1.msra.mxu0 0.0
        %1576 = vmatprep.subr.mxu0 0.0
        %1577 = vmatpush1.msra.mxu0 0.0
        %1578 = vmatprep.subr.mxu0 0.0
        %1579 = vmatpush1.msra.mxu0 0.0
        %1580 = vmatprep.subr.mxu0 0.0
        %1581 = vmatpush1.msra.mxu0 0.0
        %1582 = vmatprep.subr.mxu0 0.0
        %1583 = vmatpush1.msra.mxu0 0.0
        %1584 = vmatprep.subr.mxu0 0.0
        %1585 = vmatpush1.msra.mxu0 0.0
        %1586 = vmatprep.subr.mxu0 0.0
        %1587 = vmatpush1.msra.mxu0 0.0
        %1588 = vmatprep.subr.mxu0 0.0
        %1589 = vmatpush1.msra.mxu0 0.0
        %1590 = vmatprep.subr.mxu0 0.0
        %1591 = vmatpush1.msra.mxu0 0.0
        %1592 = vmatprep.subr.mxu0 0.0
        %1593 = vmatpush1.msra.mxu0 0.0
        %1594 = vmatprep.subr.mxu0 0.0
        %1595 = vmatpush1.msra.mxu0 0.0
        %1596 = vmatprep.subr.mxu0 0.0
        %1597 = vmatpush1.msra.mxu0 0.0
        %1598 = vmatprep.subr.mxu0 0.0
        %1599 = vmatpush1.msra.mxu0 0.0
        %1600 = vmatprep.subr.mxu0 0.0
        %1601 = vmatpush1.msra.mxu0 0.0
        %1602 = vmatprep.subr.mxu0 0.0
        %1603 = vmatpush1.msra.mxu0 0.0
        %1604 = vmatprep.subr.mxu0 0.0
        %1605 = vmatpush1.msra.mxu0 0.0
        %1606 = vmatprep.subr.mxu0 0.0
        %1607 = vmatpush1.msra.mxu0 0.0
        %1608 = vmatprep.subr.mxu0 0.0
        %1609 = vmatpush1.msra.mxu0 0.0
        %1610 = vmatprep.subr.mxu0 0.0
        %1611 = vmatpush1.msra.mxu0 0.0
        %1612 = vmatprep.subr.mxu0 0.0
        %1613 = vmatpush1.msra.mxu0 0.0
        %1614 = vmatprep.subr.mxu0 0.0
        %1615 = vmatpush1.msra.mxu0 0.0
        %1616 = vmatprep.subr.mxu0 0.0
        %1617 = vmatpush1.msra.mxu0 0.0
        %1618 = vmatprep.subr.mxu0 0.0
        %1619 = vmatpush1.msra.mxu0 0.0
        %1620 = vmatprep.subr.mxu0 0.0
        %1621 = vmatpush1.msra.mxu0 0.0
        %1622 = vmatprep.subr.mxu0 0.0
        %1623 = vmatpush1.msra.mxu0 0.0
        %1624 = vmatprep.subr.mxu0 0.0
        %1625 = vmatpush1.msra.mxu0 0.0
        %1626 = vmatprep.subr.mxu0 0.0
        %1627 = vmatpush1.msra.mxu0 0.0
        %1628 = vmatprep.subr.mxu0 0.0
        %1629 = vmatpush1.msra.mxu0 0.0
        %1630 = vmatprep.mubr.f32.mxu0 0.0
        %1631 = vmatmul.mubr.f32.gmra.mrb[0].mxu0 %v1561
        %v1632 = vpop.f32.mrb[0].mxu0
        %v1633 = vadd.f32 0.0, %v1632
        %v1634 = vpop.f32.mrb[0].mxu0
        %1635 = vmatprep.mubr.f32.mxu0 0.0
        %1636 = vmatmul.mubr.f32.gmra.mrb[0].mxu0 %v1564
        %v1637 = vpop.f32.mrb[0].mxu0
        %v1638 = vadd.f32 0.0, %v1637
        %v1639 = vpop.f32.mrb[0].mxu0
        %1640 = vdwg.mxu0
        %v1641 = vld [vmem:[#allocation2 + $0x60] sm:$0xff]
        %v1642 = vld [vmem:[#allocation2 + $0x68] sm:$0xff]
        %v1643 = vld [vmem:[#allocation2 + $0x70] sm:$0xff]
        %v1644 = vld [vmem:[#allocation2 + $0x78] sm:$0xff]
        %v1646 = vsel %vm564, %v1633, 0
        %v1649 = vsel %vm564, %v1638, 0
        %1651 = vmatprep.subr.mxu0 0.0
        %1652 = vmatpush1.msra.mxu0 %v1641
        %1653 = vmatprep.subr.mxu0 0.0
        %1654 = vmatpush1.msra.mxu0 %v1642
        %1655 = vmatprep.subr.mxu0 0.0
        %1656 = vmatpush1.msra.mxu0 %v1643
        %1657 = vmatprep.subr.mxu0 0.0
        %1658 = vmatpush1.msra.mxu0 %v1644
        %1659 = vmatprep.subr.mxu0 0.0
        %1660 = vmatpush1.msra.mxu0 0.0
        %1661 = vmatprep.subr.mxu0 0.0
        %1662 = vmatpush1.msra.mxu0 0.0
        %1663 = vmatprep.subr.mxu0 0.0
        %1664 = vmatpush1.msra.mxu0 0.0
        %1665 = vmatprep.subr.mxu0 0.0
        %1666 = vmatpush1.msra.mxu0 0.0
        %1667 = vmatprep.subr.mxu0 0.0
        %1668 = vmatpush1.msra.mxu0 0.0
        %1669 = vmatprep.subr.mxu0 0.0
        %1670 = vmatpush1.msra.mxu0 0.0
        %1671 = vmatprep.subr.mxu0 0.0
        %1672 = vmatpush1.msra.mxu0 0.0
        %1673 = vmatprep.subr.mxu0 0.0
        %1674 = vmatpush1.msra.mxu0 0.0
        %1675 = vmatprep.subr.mxu0 0.0
        %1676 = vmatpush1.msra.mxu0 0.0
        %1677 = vmatprep.subr.mxu0 0.0
        %1678 = vmatpush1.msra.mxu0 0.0
        %1679 = vmatprep.subr.mxu0 0.0
        %1680 = vmatpush1.msra.mxu0 0.0
        %1681 = vmatprep.subr.mxu0 0.0
        %1682 = vmatpush1.msra.mxu0 0.0
        %1683 = vmatprep.subr.mxu0 0.0
        %1684 = vmatpush1.msra.mxu0 0.0
        %1685 = vmatprep.subr.mxu0 0.0
        %1686 = vmatpush1.msra.mxu0 0.0
        %1687 = vmatprep.subr.mxu0 0.0
        %1688 = vmatpush1.msra.mxu0 0.0
        %1689 = vmatprep.subr.mxu0 0.0
        %1690 = vmatpush1.msra.mxu0 0.0
        %1691 = vmatprep.subr.mxu0 0.0
        %1692 = vmatpush1.msra.mxu0 0.0
        %1693 = vmatprep.subr.mxu0 0.0
        %1694 = vmatpush1.msra.mxu0 0.0
        %1695 = vmatprep.subr.mxu0 0.0
        %1696 = vmatpush1.msra.mxu0 0.0
        %1697 = vmatprep.subr.mxu0 0.0
        %1698 = vmatpush1.msra.mxu0 0.0
        %1699 = vmatprep.subr.mxu0 0.0
        %1700 = vmatpush1.msra.mxu0 0.0
        %1701 = vmatprep.subr.mxu0 0.0
        %1702 = vmatpush1.msra.mxu0 0.0
        %1703 = vmatprep.subr.mxu0 0.0
        %1704 = vmatpush1.msra.mxu0 0.0
        %1705 = vmatprep.subr.mxu0 0.0
        %1706 = vmatpush1.msra.mxu0 0.0
        %1707 = vmatprep.subr.mxu0 0.0
        %1708 = vmatpush1.msra.mxu0 0.0
        %1709 = vmatprep.subr.mxu0 0.0
        %1710 = vmatpush1.msra.mxu0 0.0
        %1711 = vmatprep.subr.mxu0 0.0
        %1712 = vmatpush1.msra.mxu0 0.0
        %1713 = vmatprep.subr.mxu0 0.0
        %1714 = vmatpush1.msra.mxu0 0.0
        %1715 = vmatprep.mubr.f32.mxu0 0.0
        %1716 = vmatmul.mubr.f32.gmra.mrb[0].mxu0 %v1646
        %v1717 = vpop.f32.mrb[0].mxu0
        %v1718 = vadd.f32 0.0, %v1717
        %v1719 = vpop.f32.mrb[0].mxu0
        %1720 = vmatprep.mubr.f32.mxu0 0.0
        %1721 = vmatmul.mubr.f32.gmra.mrb[0].mxu0 %v1649
        %v1722 = vpop.f32.mrb[0].mxu0
        %v1723 = vadd.f32 0.0, %v1722
        %v1724 = vpop.f32.mrb[0].mxu0
        %1725 = vdwg.mxu0
        %v1726 = vadd.f32 %v1435, %v1718
        %v1727 = vadd.f32 %v1436, %v1723
        %v1728 = vld [vmem:[%s6] sm:$0x1]
        %v1729 = vld [vmem:[%s7] sm:$0x1]
        %1730 = vadd.xlane.f32.xlu0 %v1726
        %v1731 = vpop.xlane.xlu0 %1730
        %1732 = vadd.xlane.f32.xlu0 %v1727
        %v1733 = vpop.xlane.xlu0 %1732
        %v1734 = vrcp.pop 128.0
        %v1735 = vmul.f32 %v1731, %v1734
        %v1736 = vmul.f32 %v1733, %v1734
        %v1737 = vsub.f32 %v1726, %v1735
        %v1738 = vsub.f32 %v1727, %v1736
        %v1739 = vmul.f32 %v1737, %v1737
        %v1740 = vmul.f32 %v1738, %v1738
        %1741 = vadd.xlane.f32.xlu0 %v1739
        %v1742 = vpop.xlane.xlu0 %1741
        %1743 = vadd.xlane.f32.xlu0 %v1740
        %v1744 = vpop.xlane.xlu0 %1743
        %v1745 = vmul.f32 %v1742, %v1734
        %v1746 = vmul.f32 %v1744, %v1734
        %v1747 = vadd.f32 %v1745, 1e-12
        %v1748 = vadd.f32 %v1746, 1e-12
        %v1749 = vrsqrt.pop %v1747
        %v1750 = vrsqrt.pop %v1748
        %v1751 = vmul.f32 %v1737, %v1749
        %v1752 = vmul.f32 %v1738, %v1750
        %v1754 = vlaneseq
        %v1755 = vshrl.u32 %v1754, 7
        %v1756 = vsub.s32 0, %v1755
        %v1757 = vrot.slane %v1728, %v1756
        %v1759 = vmul.f32 %v1751, %v1757
        %v1760 = vmul.f32 %v1752, %v1757
        %v1762 = vlaneseq
        %v1763 = vshrl.u32 %v1762, 7
        %v1764 = vsub.s32 0, %v1763
        %v1765 = vrot.slane %v1729, %v1764
        %v1767 = vadd.f32 %v1759, %v1765
        %v1768 = vadd.f32 %v1760, %v1765
        %1769 = vst [vmem:[%s334] sm:$0xff] %v1767
        %1770 = vst [vmem:[%s334 + $0x8] sm:$0xff] %v1768
        %p1771 = scmp.lt.s32.totalorder %s20, 1
        %s1772 = scalar_select %p1771, %s20, 1
        %s1773 = smul.addr %s1772, 2
        %s1774 = smul.addr %s1773, 8
        %s1775 = scalar_lea.vmem %s8, %s1774
        // Predicated region
        $region57: #{bert_forward.7} parent=51 // pred_check
          %p1776 = pneg %p216
        $region58: #{bert_forward.7} parent=51 // pred_check_branch
          %1778 = sbr.rel (%p1776) target = $region60
        $region59: #{bert_forward.7} parent=51 // pred_region
          _
        $region60: #{bert_forward.7} parent=51 // pred_fallthru
          _
      $region52: #{bert_forward.7} parent=5 // pred_fallthru
        _
      %p1779 = scmp.le.s32.totalorder 2, %s15
      // Predicated region
      $region61: #{bert_forward.7} parent=5 // pred_check
        %p1780 = pneg %p1779
      $region62: #{bert_forward.7} parent=5 // pred_check_branch
        %1782 = sbr.rel (%p1780) target = $region64
      $region63: #{bert_forward.7} parent=5 // pred_region
        %s1783 = ssub.s32 %s15, 2
        // Predicated region
        $region65: #{bert_forward.7} parent=63 // pred_check
          %p1784 = pneg %p222
        $region66: #{bert_forward.7} parent=63 // pred_check_branch
          %1786 = sbr.rel (%p1784) target = $region68
        $region67: #{bert_forward.7} parent=63 // pred_region
          %p1787 = scmp.lt.s32.totalorder %s21, 1
          %s1788 = scalar_select %p1787, %s21, 1
          %s1789 = smul.addr %s1788, 2
          %s1790 = smul.addr %s1789, 8
          %s1791 = scalar_lea.vmem %s8, %s1790
        $region68: #{bert_forward.7} parent=63 // pred_fallthru
          _
      $region64: #{bert_forward.7} parent=5 // pred_fallthru
        _
    $region6: #{bert_forward.7} parent=1 // loop_footer
      %s19 = sadd.s32 1, %s15
    $region7: #{bert_forward.7} parent=1 // loop_footer_branch
      %14 = sbr.rel target = $region3
    $region8: #{bert_forward.7} parent=1 // loop_exit
      _
    %1792 = vsyncpa [#allocation3], 1
    %s1793 = scalar_lea.sflag [#allocation3], 1
    %1794 = vsyncpa %s1793, 1

// kernel: bert_forward.11
$region0: #{bert_forward.11}
  #allocation0 [shape = 'u32[]', space=smem, size = 0x4, offset = 0x4, fixed_abs, tag = 'smem constant byte address 0x4 - core index']
  #allocation1 [shape = 'u32[144,128]{1,0:T(1,128)}', space=vmem, size = 0x12000, scoped, tag = 'internal scratch']
  %s0 = inlined_call_operand.vmem [shape: f32[2,128], index: 0, kind: input, shape index: {}]
  %s1 = inlined_call_operand.vmem [shape: f32[128,128], index: 1, kind: input, shape index: {}]
  %s2 = inlined_call_operand.vmem [shape: f32[1,128], index: 2, kind: input, shape index: {}]
  %s3 = inlined_call_operand.vmem [shape: f32[128,128], index: 3, kind: input, shape index: {}]
  %s4 = inlined_call_operand.vmem [shape: f32[1,128], index: 4, kind: input, shape index: {}]
  %s5 = inlined_call_operand.hbm [shape: f32[2,128], index: 5, kind: output, shape index: {}]
  %s6 = sld [smem:[#allocation0]]
  $region30: #{bert_forward.11} parent=0
    _
  %s8 = ssub.s32 1, %s6
  %s9 = scalar_select 0, %s8, %s6
  $region1: #{bert_forward.11} parent=0
    #allocation2 [shape = 'u8[1024]{0}', space=vmem, size = 0x400, scoped, tag = 'output window, operand 0, single buffered']
    #allocation3 [shape = 's32[1]{0}', space=sflag, size = 0x4, scoped, tag = 'scoped memory for bert_forward.11']
    %10 = vsyncpa [#allocation3], 0
    // Predicated region
    $region2: #{bert_forward.11} parent=1 // pred_check
      _
    $region3: #{bert_forward.11} parent=1 // pred_check_branch
      %12 = sbr.rel (0) target = $region5
    $region4: #{bert_forward.11} parent=1 // pred_region
      _
    $region5: #{bert_forward.11} parent=1 // pred_fallthru
      _
    // Predicated region
    $region6: #{bert_forward.11} parent=1 // pred_check
      _
    $region7: #{bert_forward.11} parent=1 // pred_check_branch
      %14 = sbr.rel (0) target = $region9
    $region8: #{bert_forward.11} parent=1 // pred_region
      _
    $region9: #{bert_forward.11} parent=1 // pred_fallthru
      _
    // Predicated region
    $region10: #{bert_forward.11} parent=1 // pred_check
      _
    $region11: #{bert_forward.11} parent=1 // pred_check_branch
      %16 = sbr.rel (0) target = $region13
    $region12: #{bert_forward.11} parent=1 // pred_region
      _
    $region13: #{bert_forward.11} parent=1 // pred_fallthru
      _
    // Predicated region
    $region14: #{bert_forward.11} parent=1 // pred_check
      _
    $region15: #{bert_forward.11} parent=1 // pred_check_branch
      %18 = sbr.rel (0) target = $region17
    $region16: #{bert_forward.11} parent=1 // pred_region
      _
    $region17: #{bert_forward.11} parent=1 // pred_fallthru
      _
    // Predicated region
    $region18: #{bert_forward.11} parent=1 // pred_check
      _
    $region19: #{bert_forward.11} parent=1 // pred_check_branch
      %20 = sbr.rel (0) target = $region21
    $region20: #{bert_forward.11} parent=1 // pred_region
      _
    $region21: #{bert_forward.11} parent=1 // pred_fallthru
      _
    %v21 = vld [vmem:[%s0] sm:$0x3]
    %v22 = vld [vmem:[%s1] sm:$0xff]
    %v23 = vld [vmem:[%s1 + $0x8] sm:$0xff]
    %v24 = vld [vmem:[%s1 + $0x10] sm:$0xff]
    %v25 = vld [vmem:[%s1 + $0x18] sm:$0xff]
    %v26 = vld [vmem:[%s1 + $0x20] sm:$0xff]
    %v27 = vld [vmem:[%s1 + $0x28] sm:$0xff]
    %v28 = vld [vmem:[%s1 + $0x30] sm:$0xff]
    %v29 = vld [vmem:[%s1 + $0x38] sm:$0xff]
    %v30 = vld [vmem:[%s1 + $0x40] sm:$0xff]
    %v31 = vld [vmem:[%s1 + $0x48] sm:$0xff]
    %v32 = vld [vmem:[%s1 + $0x50] sm:$0xff]
    %v33 = vld [vmem:[%s1 + $0x58] sm:$0xff]
    %v34 = vld [vmem:[%s1 + $0x60] sm:$0xff]
    %v35 = vld [vmem:[%s1 + $0x68] sm:$0xff]
    %v36 = vld [vmem:[%s1 + $0x70] sm:$0xff]
    %v37 = vld [vmem:[%s1 + $0x78] sm:$0xff]
    %v38 = vld [vmem:[%s2] sm:$0x1]
    %v40 = vlaneseq
    %v41 = vshrl.u32 %v40, 7
    %v42 = vsub.s32 0, %v41
    %v43 = vrot.slane %v38, %v42
    %45 = vmatprep.subr.mxu0 0.0
    %46 = vmatpush1.msra.mxu0 %v22
    %47 = vmatprep.subr.mxu0 0.0
    %48 = vmatpush1.msra.mxu0 %v23
    %49 = vmatprep.subr.mxu0 0.0
    %50 = vmatpush1.msra.mxu0 %v24
    %51 = vmatprep.subr.mxu0 0.0
    %52 = vmatpush1.msra.mxu0 %v25
    %53 = vmatprep.subr.mxu0 0.0
    %54 = vmatpush1.msra.mxu0 %v26
    %55 = vmatprep.subr.mxu0 0.0
    %56 = vmatpush1.msra.mxu0 %v27
    %57 = vmatprep.subr.mxu0 0.0
    %58 = vmatpush1.msra.mxu0 %v28
    %59 = vmatprep.subr.mxu0 0.0
    %60 = vmatpush1.msra.mxu0 %v29
    %61 = vmatprep.subr.mxu0 0.0
    %62 = vmatpush1.msra.mxu0 %v30
    %63 = vmatprep.subr.mxu0 0.0
    %64 = vmatpush1.msra.mxu0 %v31
    %65 = vmatprep.subr.mxu0 0.0
    %66 = vmatpush1.msra.mxu0 %v32
    %67 = vmatprep.subr.mxu0 0.0
    %68 = vmatpush1.msra.mxu0 %v33
    %69 = vmatprep.subr.mxu0 0.0
    %70 = vmatpush1.msra.mxu0 %v34
    %71 = vmatprep.subr.mxu0 0.0
    %72 = vmatpush1.msra.mxu0 %v35
    %73 = vmatprep.subr.mxu0 0.0
    %74 = vmatpush1.msra.mxu0 %v36
    %75 = vmatprep.subr.mxu0 0.0
    %76 = vmatpush1.msra.mxu0 %v37
    %77 = vmatprep.subr.mxu0 0.0
    %78 = vmatpush1.msra.mxu0 0.0
    %79 = vmatprep.subr.mxu0 0.0
    %80 = vmatpush1.msra.mxu0 0.0
    %81 = vmatprep.subr.mxu0 0.0
    %82 = vmatpush1.msra.mxu0 0.0
    %83 = vmatprep.subr.mxu0 0.0
    %84 = vmatpush1.msra.mxu0 0.0
    %85 = vmatprep.subr.mxu0 0.0
    %86 = vmatpush1.msra.mxu0 0.0
    %87 = vmatprep.subr.mxu0 0.0
    %88 = vmatpush1.msra.mxu0 0.0
    %89 = vmatprep.subr.mxu0 0.0
    %90 = vmatpush1.msra.mxu0 0.0
    %91 = vmatprep.subr.mxu0 0.0
    %92 = vmatpush1.msra.mxu0 0.0
    %93 = vmatprep.subr.mxu0 0.0
    %94 = vmatpush1.msra.mxu0 0.0
    %95 = vmatprep.subr.mxu0 0.0
    %96 = vmatpush1.msra.mxu0 0.0
    %97 = vmatprep.subr.mxu0 0.0
    %98 = vmatpush1.msra.mxu0 0.0
    %99 = vmatprep.subr.mxu0 0.0
    %100 = vmatpush1.msra.mxu0 0.0
    %101 = vmatprep.subr.mxu0 0.0
    %102 = vmatpush1.msra.mxu0 0.0
    %103 = vmatprep.subr.mxu0 0.0
    %104 = vmatpush1.msra.mxu0 0.0
    %105 = vmatprep.subr.mxu0 0.0
    %106 = vmatpush1.msra.mxu0 0.0
    %107 = vmatprep.subr.mxu0 0.0
    %108 = vmatpush1.msra.mxu0 0.0
    %109 = vmatprep.mubr.f32.mxu0 0.0
    %110 = vmatmul.mubr.f32.gmra.mrb[0].mxu0 %v21
    %v111 = vpop.f32.mrb[0].mxu0
    %v112 = vadd.f32 %v43, %v111
    %v113 = vpop.f32.mrb[0].mxu0
    %114 = vdwg.mxu0
    %v115 = vtanh.pop %v112
    %v116 = vld [vmem:[%s3] sm:$0xff]
    %v117 = vld [vmem:[%s3 + $0x8] sm:$0xff]
    %v118 = vld [vmem:[%s3 + $0x10] sm:$0xff]
    %v119 = vld [vmem:[%s3 + $0x18] sm:$0xff]
    %v120 = vld [vmem:[%s3 + $0x20] sm:$0xff]
    %v121 = vld [vmem:[%s3 + $0x28] sm:$0xff]
    %v122 = vld [vmem:[%s3 + $0x30] sm:$0xff]
    %v123 = vld [vmem:[%s3 + $0x38] sm:$0xff]
    %v124 = vld [vmem:[%s3 + $0x40] sm:$0xff]
    %v125 = vld [vmem:[%s3 + $0x48] sm:$0xff]
    %v126 = vld [vmem:[%s3 + $0x50] sm:$0xff]
    %v127 = vld [vmem:[%s3 + $0x58] sm:$0xff]
    %v128 = vld [vmem:[%s3 + $0x60] sm:$0xff]
    %v129 = vld [vmem:[%s3 + $0x68] sm:$0xff]
    %v130 = vld [vmem:[%s3 + $0x70] sm:$0xff]
    %v131 = vld [vmem:[%s3 + $0x78] sm:$0xff]
    %v132 = vld [vmem:[%s4] sm:$0x1]
    %v134 = vlaneseq
    %v135 = vshrl.u32 %v134, 7
    %v136 = vsub.s32 0, %v135
    %v137 = vrot.slane %v132, %v136
    %139 = vmatprep.subr.mxu0 0.0
    %140 = vmatpush1.msra.mxu0 %v116
    %141 = vmatprep.subr.mxu0 0.0
    %142 = vmatpush1.msra.mxu0 %v117
    %143 = vmatprep.subr.mxu0 0.0
    %144 = vmatpush1.msra.mxu0 %v118
    %145 = vmatprep.subr.mxu0 0.0
    %146 = vmatpush1.msra.mxu0 %v119
    %147 = vmatprep.subr.mxu0 0.0
    %148 = vmatpush1.msra.mxu0 %v120
    %149 = vmatprep.subr.mxu0 0.0
    %150 = vmatpush1.msra.mxu0 %v121
    %151 = vmatprep.subr.mxu0 0.0
    %152 = vmatpush1.msra.mxu0 %v122
    %153 = vmatprep.subr.mxu0 0.0
    %154 = vmatpush1.msra.mxu0 %v123
    %155 = vmatprep.subr.mxu0 0.0
    %156 = vmatpush1.msra.mxu0 %v124
    %157 = vmatprep.subr.mxu0 0.0
    %158 = vmatpush1.msra.mxu0 %v125
    %159 = vmatprep.subr.mxu0 0.0
    %160 = vmatpush1.msra.mxu0 %v126
    %161 = vmatprep.subr.mxu0 0.0
    %162 = vmatpush1.msra.mxu0 %v127
    %163 = vmatprep.subr.mxu0 0.0
    %164 = vmatpush1.msra.mxu0 %v128
    %165 = vmatprep.subr.mxu0 0.0
    %166 = vmatpush1.msra.mxu0 %v129
    %167 = vmatprep.subr.mxu0 0.0
    %168 = vmatpush1.msra.mxu0 %v130
    %169 = vmatprep.subr.mxu0 0.0
    %170 = vmatpush1.msra.mxu0 %v131
    %171 = vmatprep.subr.mxu0 0.0
    %172 = vmatpush1.msra.mxu0 0.0
    %173 = vmatprep.subr.mxu0 0.0
    %174 = vmatpush1.msra.mxu0 0.0
    %175 = vmatprep.subr.mxu0 0.0
    %176 = vmatpush1.msra.mxu0 0.0
    %177 = vmatprep.subr.mxu0 0.0
    %178 = vmatpush1.msra.mxu0 0.0
    %179 = vmatprep.subr.mxu0 0.0
    %180 = vmatpush1.msra.mxu0 0.0
    %181 = vmatprep.subr.mxu0 0.0
    %182 = vmatpush1.msra.mxu0 0.0
    %183 = vmatprep.subr.mxu0 0.0
    %184 = vmatpush1.msra.mxu0 0.0
    %185 = vmatprep.subr.mxu0 0.0
    %186 = vmatpush1.msra.mxu0 0.0
    %187 = vmatprep.subr.mxu0 0.0
    %188 = vmatpush1.msra.mxu0 0.0
    %189 = vmatprep.subr.mxu0 0.0
    %190 = vmatpush1.msra.mxu0 0.0
    %191 = vmatprep.subr.mxu0 0.0
    %192 = vmatpush1.msra.mxu0 0.0
    %193 = vmatprep.subr.mxu0 0.0
    %194 = vmatpush1.msra.mxu0 0.0
    %195 = vmatprep.subr.mxu0 0.0
    %196 = vmatpush1.msra.mxu0 0.0
    %197 = vmatprep.subr.mxu0 0.0
    %198 = vmatpush1.msra.mxu0 0.0
    %199 = vmatprep.subr.mxu0 0.0
    %200 = vmatpush1.msra.mxu0 0.0
    %201 = vmatprep.subr.mxu0 0.0
    %202 = vmatpush1.msra.mxu0 0.0
    %203 = vmatprep.mubr.f32.mxu0 0.0
    %204 = vmatmul.mubr.f32.gmra.mrb[0].mxu0 %v115
    %v205 = vpop.f32.mrb[0].mxu0
    %v206 = vadd.f32 %v137, %v205
    %v207 = vpop.f32.mrb[0].mxu0
    %208 = vdwg.mxu0
    %209 = vst [vmem:[#allocation2] sm:$0x3] %v206
    // Predicated region
    $region22: #{bert_forward.11} parent=1 // pred_check
      _
    $region23: #{bert_forward.11} parent=1 // pred_check_branch
      %211 = sbr.rel (0) target = $region25
    $region24: #{bert_forward.11} parent=1 // pred_region
      %s213 = ssub.s32 32, 32
      %214 = vsyncadd [#allocation3], %s213
      %s216 = sshll.u32 [#allocation2], 4
      %s217 = int_to_ptr.vmem [resolvable:$true] %s216
      %219 = dma.vmem_to_hbm [thread:$0]  %s217, 32, %s5, [#allocation3]
    $region25: #{bert_forward.11} parent=1 // pred_fallthru
      _
    // Predicated region
    $region26: #{bert_forward.11} parent=1 // pred_check
      _
    $region27: #{bert_forward.11} parent=1 // pred_check_branch
      %221 = sbr.rel (0) target = $region29
    $region28: #{bert_forward.11} parent=1 // pred_region
      %222 = dma.done [#allocation3], 32
    $region29: #{bert_forward.11} parent=1 // pred_fallthru
      _
    %223 = vsyncpa [#allocation3], 1

// kernel: bert_forward.9
$region0: #{bert_forward.9}
  #allocation0 [shape = 'u32[]', space=smem, size = 0x4, offset = 0x4, fixed_abs, tag = 'smem constant byte address 0x4 - core index']
  #allocation1 [shape = 'u32[144,128]{1,0:T(1,128)}', space=vmem, size = 0x12000, scoped, tag = 'internal scratch']
  %s0 = inlined_call_operand.vmem [shape: f32[2,16,128], index: 0, kind: input, shape index: {}]
  %s1 = inlined_call_operand.vmem [shape: f32[2,1,16], index: 1, kind: input, shape index: {}]
  %s2 = inlined_call_operand.vmem [shape: f32[128,384], index: 2, kind: input, shape index: {}]
  %s3 = inlined_call_operand.vmem [shape: f32[1,384], index: 3, kind: input, shape index: {}]
  %s4 = inlined_call_operand.vmem [shape: f32[128,128], index: 4, kind: input, shape index: {}]
  %s5 = inlined_call_operand.vmem [shape: f32[1,128], index: 5, kind: input, shape index: {}]
  %s6 = inlined_call_operand.vmem [shape: f32[1,128], index: 6, kind: input, shape index: {}]
  %s7 = inlined_call_operand.vmem [shape: f32[1,128], index: 7, kind: input, shape index: {}]
  %s8 = inlined_call_operand.vmem [shape: f32[2,16,128], index: 8, kind: output, shape index: {}]
  %s9 = sld [smem:[#allocation0]]
  $region65: #{bert_forward.9} parent=0
    _
  %s11 = ssub.s32 1, %s9
  %s12 = scalar_select 0, %s11, %s9
  loop: start=0, step=1, limit=4
  $region2: #{bert_forward.9} parent=0 // loop_pre_header
    _
  $region3: #{bert_forward.9} parent=0 // loop_header
    %s14 = sphi 0, %s18
    %p15 = scmp.ge.s32.totalorder %s14, 4
    %s24 = sphi 0, %s26
    %s27 = sphi 0, %s24
    %s28 = sphi 0, %s27
    %s44 = sphi 0, %s28
    %s50 = sphi 0, %s52
    %s53 = sphi 0, %s50
    %s54 = sphi 0, %s53
    %s70 = sphi 0, %s54
    %s74 = sphi 0, %s74
    %s76 = sphi 0, %s74
    %s77 = sphi 0, %s76
    %s91 = sphi 0, %s77
    %s95 = sphi 0, %s95
    %s97 = sphi 0, %s95
    %s98 = sphi 0, %s97
    %s112 = sphi 0, %s98
    %s116 = sphi 0, %s116
    %s118 = sphi 0, %s116
    %s119 = sphi 0, %s118
    %s133 = sphi 0, %s119
    %s137 = sphi 0, %s137
    %s139 = sphi 0, %s137
    %s140 = sphi 0, %s139
    %s154 = sphi 0, %s140
    %s158 = sphi 0, %s158
    %s160 = sphi 0, %s158
    %s161 = sphi 0, %s160
    %s175 = sphi 0, %s161
    %s179 = sphi 0, %s179
    %s181 = sphi 0, %s179
    %s182 = sphi 0, %s181
    %s196 = sphi 0, %s182
    %s202 = sphi 0, %s204
    %s205 = sphi 0, %s202
    %s206 = sphi 0, %s205
    %s222 = sphi 0, %s206
  $region4: #{bert_forward.9} parent=0 // loop_header_branch
    %17 = sbr.rel (%p15) target = $region8
  $region5: #{bert_forward.9} parent=0 // loop_body
    %s19 = ssub.s32 %s14, 1
    %s20 = ssub.s32 %s14, 2
    %s21 = sadd.s32 %s14, 1
    %s22 = ssub.s32 %s14, %s21
    %p23 = scmp.eq.s32.totalorder %s22, 0
    %s25 = sadd.s32 %s24, 1
    %s26 = scalar_select %p23, %s24, %s25
    %p29 = pneg %p23
    %p30 = scmp.eq.s32.totalorder %s14, 1
    %p31 = por %p29, %p30
    %p32 = scmp.ne.s32.totalorder %s24, %s27
    %p33 = scmp.eq.s32.totalorder %s14, 0
    %p34 = por %p32, %p33
    %p35 = scmp.ne.s32.totalorder %s24, %s27
    %p36 = scmp.eq.s32.totalorder %s19, 1
    %p37 = por %p35, %p36
    %p38 = scmp.ne.s32.totalorder %s27, %s28
    %p39 = scmp.eq.s32.totalorder %s19, 0
    %p40 = por %p38, %p39
    %p41 = scmp.ne.s32.totalorder %s27, %s28
    %p42 = scmp.eq.s32.totalorder %s20, 1
    %p43 = por %p41, %p42
    %p45 = scmp.ne.s32.totalorder %s28, %s44
    %p46 = scmp.eq.s32.totalorder %s20, 0
    %p47 = por %p45, %p46
    %s48 = ssub.s32 %s14, %s21
    %p49 = scmp.eq.s32.totalorder %s48, 0
    %s51 = sadd.s32 %s50, 1
    %s52 = scalar_select %p49, %s50, %s51
    %p55 = pneg %p49
    %p56 = scmp.eq.s32.totalorder %s14, 1
    %p57 = por %p55, %p56
    %p58 = scmp.ne.s32.totalorder %s50, %s53
    %p59 = scmp.eq.s32.totalorder %s14, 0
    %p60 = por %p58, %p59
    %p61 = scmp.ne.s32.totalorder %s50, %s53
    %p62 = scmp.eq.s32.totalorder %s19, 1
    %p63 = por %p61, %p62
    %p64 = scmp.ne.s32.totalorder %s53, %s54
    %p65 = scmp.eq.s32.totalorder %s19, 0
    %p66 = por %p64, %p65
    %p67 = scmp.ne.s32.totalorder %s53, %s54
    %p68 = scmp.eq.s32.totalorder %s20, 1
    %p69 = por %p67, %p68
    %p71 = scmp.ne.s32.totalorder %s54, %s70
    %p72 = scmp.eq.s32.totalorder %s20, 0
    %p73 = por %p71, %p72
    %s75 = sadd.s32 %s74, 1
    %p78 = scmp.eq.s32.totalorder %s14, 1
    %p79 = scmp.ne.s32.totalorder %s74, %s76
    %p80 = scmp.eq.s32.totalorder %s14, 0
    %p81 = por %p79, %p80
    %p82 = scmp.ne.s32.totalorder %s74, %s76
    %p83 = scmp.eq.s32.totalorder %s19, 1
    %p84 = por %p82, %p83
    %p85 = scmp.ne.s32.totalorder %s76, %s77
    %p86 = scmp.eq.s32.totalorder %s19, 0
    %p87 = por %p85, %p86
    %p88 = scmp.ne.s32.totalorder %s76, %s77
    %p89 = scmp.eq.s32.totalorder %s20, 1
    %p90 = por %p88, %p89
    %p92 = scmp.ne.s32.totalorder %s77, %s91
    %p93 = scmp.eq.s32.totalorder %s20, 0
    %p94 = por %p92, %p93
    %s96 = sadd.s32 %s95, 1
    %p99 = scmp.eq.s32.totalorder %s14, 1
    %p100 = scmp.ne.s32.totalorder %s95, %s97
    %p101 = scmp.eq.s32.totalorder %s14, 0
    %p102 = por %p100, %p101
    %p103 = scmp.ne.s32.totalorder %s95, %s97
    %p104 = scmp.eq.s32.totalorder %s19, 1
    %p105 = por %p103, %p104
    %p106 = scmp.ne.s32.totalorder %s97, %s98
    %p107 = scmp.eq.s32.totalorder %s19, 0
    %p108 = por %p106, %p107
    %p109 = scmp.ne.s32.totalorder %s97, %s98
    %p110 = scmp.eq.s32.totalorder %s20, 1
    %p111 = por %p109, %p110
    %p113 = scmp.ne.s32.totalorder %s98, %s112
    %p114 = scmp.eq.s32.totalorder %s20, 0
    %p115 = por %p113, %p114
    %s117 = sadd.s32 %s116, 1
    %p120 = scmp.eq.s32.totalorder %s14, 1
    %p121 = scmp.ne.s32.totalorder %s116, %s118
    %p122 = scmp.eq.s32.totalorder %s14, 0
    %p123 = por %p121, %p122
    %p124 = scmp.ne.s32.totalorder %s116, %s118
    %p125 = scmp.eq.s32.totalorder %s19, 1
    %p126 = por %p124, %p125
    %p127 = scmp.ne.s32.totalorder %s118, %s119
    %p128 = scmp.eq.s32.totalorder %s19, 0
    %p129 = por %p127, %p128
    %p130 = scmp.ne.s32.totalorder %s118, %s119
    %p131 = scmp.eq.s32.totalorder %s20, 1
    %p132 = por %p130, %p131
    %p134 = scmp.ne.s32.totalorder %s119, %s133
    %p135 = scmp.eq.s32.totalorder %s20, 0
    %p136 = por %p134, %p135
    %s138 = sadd.s32 %s137, 1
    %p141 = scmp.eq.s32.totalorder %s14, 1
    %p142 = scmp.ne.s32.totalorder %s137, %s139
    %p143 = scmp.eq.s32.totalorder %s14, 0
    %p144 = por %p142, %p143
    %p145 = scmp.ne.s32.totalorder %s137, %s139
    %p146 = scmp.eq.s32.totalorder %s19, 1
    %p147 = por %p145, %p146
    %p148 = scmp.ne.s32.totalorder %s139, %s140
    %p149 = scmp.eq.s32.totalorder %s19, 0
    %p150 = por %p148, %p149
    %p151 = scmp.ne.s32.totalorder %s139, %s140
    %p152 = scmp.eq.s32.totalorder %s20, 1
    %p153 = por %p151, %p152
    %p155 = scmp.ne.s32.totalorder %s140, %s154
    %p156 = scmp.eq.s32.totalorder %s20, 0
    %p157 = por %p155, %p156
    %s159 = sadd.s32 %s158, 1
    %p162 = scmp.eq.s32.totalorder %s14, 1
    %p163 = scmp.ne.s32.totalorder %s158, %s160
    %p164 = scmp.eq.s32.totalorder %s14, 0
    %p165 = por %p163, %p164
    %p166 = scmp.ne.s32.totalorder %s158, %s160
    %p167 = scmp.eq.s32.totalorder %s19, 1
    %p168 = por %p166, %p167
    %p169 = scmp.ne.s32.totalorder %s160, %s161
    %p170 = scmp.eq.s32.totalorder %s19, 0
    %p171 = por %p169, %p170
    %p172 = scmp.ne.s32.totalorder %s160, %s161
    %p173 = scmp.eq.s32.totalorder %s20, 1
    %p174 = por %p172, %p173
    %p176 = scmp.ne.s32.totalorder %s161, %s175
    %p177 = scmp.eq.s32.totalorder %s20, 0
    %p178 = por %p176, %p177
    %s180 = sadd.s32 %s179, 1
    %p183 = scmp.eq.s32.totalorder %s14, 1
    %p184 = scmp.ne.s32.totalorder %s179, %s181
    %p185 = scmp.eq.s32.totalorder %s14, 0
    %p186 = por %p184, %p185
    %p187 = scmp.ne.s32.totalorder %s179, %s181
    %p188 = scmp.eq.s32.totalorder %s19, 1
    %p189 = por %p187, %p188
    %p190 = scmp.ne.s32.totalorder %s181, %s182
    %p191 = scmp.eq.s32.totalorder %s19, 0
    %p192 = por %p190, %p191
    %p193 = scmp.ne.s32.totalorder %s181, %s182
    %p194 = scmp.eq.s32.totalorder %s20, 1
    %p195 = por %p193, %p194
    %p197 = scmp.ne.s32.totalorder %s182, %s196
    %p198 = scmp.eq.s32.totalorder %s20, 0
    %p199 = por %p197, %p198
    %s200 = ssub.s32 %s14, %s21
    %p201 = scmp.eq.s32.totalorder %s200, 0
    %s203 = sadd.s32 %s202, 1
    %s204 = scalar_select %p201, %s202, %s203
    %p207 = pneg %p201
    %p208 = scmp.eq.s32.totalorder %s14, 1
    %p209 = por %p207, %p208
    %p210 = scmp.ne.s32.totalorder %s202, %s205
    %p211 = scmp.eq.s32.totalorder %s14, 0
    %p212 = por %p210, %p211
    %p213 = scmp.ne.s32.totalorder %s202, %s205
    %p214 = scmp.eq.s32.totalorder %s19, 1
    %p215 = por %p213, %p214
    %p216 = scmp.ne.s32.totalorder %s205, %s206
    %p217 = scmp.eq.s32.totalorder %s19, 0
    %p218 = por %p216, %p217
    %p219 = scmp.ne.s32.totalorder %s205, %s206
    %p220 = scmp.eq.s32.totalorder %s20, 1
    %p221 = por %p219, %p220
    %p223 = scmp.ne.s32.totalorder %s206, %s222
    %p224 = scmp.eq.s32.totalorder %s20, 0
    %p225 = por %p223, %p224
    %p226 = scmp.le.s32.totalorder 1, %s14
    %p227 = scmp.lt.s32.totalorder %s14, 3
    %p228 = pnand %p226, %p227
    %p229 = pneg %p228
    // Predicated region
    $region9: #{bert_forward.9} parent=5 // pred_check
      _
    $region10: #{bert_forward.9} parent=5 // pred_check_branch
      %231 = sbr.rel (%p228) target = $region12
    $region11: #{bert_forward.9} parent=5 // pred_region
      %s232 = ssub.s32 %s14, 1
      // Predicated region
      $region13: #{bert_forward.9} parent=11 // pred_check
        %p233 = pneg %p87
      $region14: #{bert_forward.9} parent=11 // pred_check_branch
        %235 = sbr.rel (%p233) target = $region16
      $region15: #{bert_forward.9} parent=11 // pred_region
        _
      $region16: #{bert_forward.9} parent=11 // pred_fallthru
        _
      // Predicated region
      $region17: #{bert_forward.9} parent=11 // pred_check
        %p236 = pneg %p108
      $region18: #{bert_forward.9} parent=11 // pred_check_branch
        %238 = sbr.rel (%p236) target = $region20
      $region19: #{bert_forward.9} parent=11 // pred_region
        _
      $region20: #{bert_forward.9} parent=11 // pred_fallthru
        _
      // Predicated region
      $region21: #{bert_forward.9} parent=11 // pred_check
        %p239 = pneg %p129
      $region22: #{bert_forward.9} parent=11 // pred_check_branch
        %241 = sbr.rel (%p239) target = $region24
      $region23: #{bert_forward.9} parent=11 // pred_region
        _
      $region24: #{bert_forward.9} parent=11 // pred_fallthru
        _
      // Predicated region
      $region25: #{bert_forward.9} parent=11 // pred_check
        %p242 = pneg %p150
      $region26: #{bert_forward.9} parent=11 // pred_check_branch
        %244 = sbr.rel (%p242) target = $region28
      $region27: #{bert_forward.9} parent=11 // pred_region
        _
      $region28: #{bert_forward.9} parent=11 // pred_fallthru
        _
      // Predicated region
      $region29: #{bert_forward.9} parent=11 // pred_check
        %p245 = pneg %p171
      $region30: #{bert_forward.9} parent=11 // pred_check_branch
        %247 = sbr.rel (%p245) target = $region32
      $region31: #{bert_forward.9} parent=11 // pred_region
        _
      $region32: #{bert_forward.9} parent=11 // pred_fallthru
        _
      // Predicated region
      $region33: #{bert_forward.9} parent=11 // pred_check
        %p248 = pneg %p192
      $region34: #{bert_forward.9} parent=11 // pred_check_branch
        %250 = sbr.rel (%p248) target = $region36
      $region35: #{bert_forward.9} parent=11 // pred_region
        _
      $region36: #{bert_forward.9} parent=11 // pred_fallthru
        _
    $region12: #{bert_forward.9} parent=5 // pred_fallthru
      _
    %p251 = scmp.lt.s32.totalorder %s14, 2
    // Predicated region
    $region37: #{bert_forward.9} parent=5 // pred_check
      %p252 = pneg %p251
    $region38: #{bert_forward.9} parent=5 // pred_check_branch
      %254 = sbr.rel (%p252) target = $region40
    $region39: #{bert_forward.9} parent=5 // pred_region
      // Predicated region
      $region41: #{bert_forward.9} parent=39 // pred_check
        %p255 = pneg %p34
      $region42: #{bert_forward.9} parent=39 // pred_check_branch
        %257 = sbr.rel (%p255) target = $region44
      $region43: #{bert_forward.9} parent=39 // pred_region
        %p258 = scmp.lt.s32.totalorder %s14, 1
        %s259 = scalar_select %p258, %s14, 1
        %s260 = smul.addr %s259, 2
        %s261 = smul.addr %s260, 8
        %s262 = scalar_lea.vmem %s0, %s261
      $region44: #{bert_forward.9} parent=39 // pred_fallthru
        _
      // Predicated region
      $region45: #{bert_forward.9} parent=39 // pred_check
        %p263 = pneg %p60
      $region46: #{bert_forward.9} parent=39 // pred_check_branch
        %265 = sbr.rel (%p263) target = $region48
      $region47: #{bert_forward.9} parent=39 // pred_region
        %p266 = scmp.lt.s32.totalorder %s14, 1
        %s267 = scalar_select %p266, %s14, 1
        %s268 = scalar_lea.vmem %s1, %s267
      $region48: #{bert_forward.9} parent=39 // pred_fallthru
        _
    $region40: #{bert_forward.9} parent=5 // pred_fallthru
      _
    %p269 = scmp.le.s32.totalorder 1, %s14
    %p270 = scmp.lt.s32.totalorder %s14, 3
    %p271 = pnand %p269, %p270
    %p272 = pneg %p271
    // Predicated region
    $region49: #{bert_forward.9} parent=5 // pred_check
      _
    $region50: #{bert_forward.9} parent=5 // pred_check_branch
      %274 = sbr.rel (%p271) target = $region52
    $region51: #{bert_forward.9} parent=5 // pred_region
      %s275 = ssub.s32 %s14, 1
      %p276 = scmp.lt.s32.totalorder %s19, 1
      %s277 = scalar_select %p276, %s19, 1
      %s278 = smul.addr %s277, 2
      %s279 = smul.addr %s278, 8
      %s280 = scalar_lea.vmem %s0, %s279
      %p281 = pneg %p40
      %p282 = pneg %p37
      %p283 = scmp.lt.s32.totalorder %s19, 1
      %s284 = scalar_select %p283, %s19, 1
      %s285 = scalar_lea.vmem %s1, %s284
      %p286 = pneg %p66
      %p287 = pneg %p63
      %p288 = pneg %p87
      %p289 = pneg %p84
      %p290 = pneg %p108
      %p291 = pneg %p105
      %p292 = pneg %p129
      %p293 = pneg %p126
      %p294 = pneg %p150
      %p295 = pneg %p147
      %p296 = pneg %p171
      %p297 = pneg %p168
      %p298 = pneg %p192
      %p299 = pneg %p189
      %p300 = pneg %p218
      %p301 = pneg %p215
      %p302 = scmp.lt.s32.totalorder %s19, 1
      %s303 = scalar_select %p302, %s19, 1
      %s304 = smul.addr %s303, 2
      %s305 = smul.addr %s304, 8
      %s306 = scalar_lea.vmem %s8, %s305
      %p307 = scmp.lt.s32.totalorder %s19, 1
      %s308 = scalar_select %p307, %s19, 1
      %s309 = smul.addr %s308, 2
      %s310 = smul.addr %s309, 8
      %s311 = scalar_lea.vmem %s0, %s310
      %p312 = scmp.lt.s32.totalorder %s19, 1
      %s313 = scalar_select %p312, %s19, 1
      %s314 = scalar_lea.vmem %s1, %s313
      %p315 = scmp.lt.s32.totalorder %s19, 1
      %s316 = scalar_select %p315, %s19, 1
      %s317 = smul.addr %s316, 2
      %s318 = smul.addr %s317, 8
      %s319 = scalar_lea.vmem %s8, %s318
      %v320 = vld [vmem:[%s311] sm:$0xff]
      %v321 = vld [vmem:[%s311 + $0x8] sm:$0xff]
      %v322 = vld [vmem:[%s2] sm:$0xff]
      %v323 = vld [vmem:[%s2 + $0x8] sm:$0xff]
      %v324 = vld [vmem:[%s2 + $0x10] sm:$0xff]
      %v325 = vld [vmem:[%s2 + $0x18] sm:$0xff]
      %v326 = vld [vmem:[%s2 + $0x20] sm:$0xff]
      %v327 = vld [vmem:[%s2 + $0x28] sm:$0xff]
      %v328 = vld [vmem:[%s2 + $0x30] sm:$0xff]
      %v329 = vld [vmem:[%s2 + $0x38] sm:$0xff]
      %v330 = vld [vmem:[%s2 + $0x40] sm:$0xff]
      %v331 = vld [vmem:[%s2 + $0x48] sm:$0xff]
      %v332 = vld [vmem:[%s2 + $0x50] sm:$0xff]
      %v333 = vld [vmem:[%s2 + $0x58] sm:$0xff]
      %v334 = vld [vmem:[%s2 + $0x60] sm:$0xff]
      %v335 = vld [vmem:[%s2 + $0x68] sm:$0xff]
      %v336 = vld [vmem:[%s2 + $0x70] sm:$0xff]
      %v337 = vld [vmem:[%s2 + $0x78] sm:$0xff]
      %v338 = vld [vmem:[%s2 + $0x80] sm:$0xff]
      %v339 = vld [vmem:[%s2 + $0x88] sm:$0xff]
      %v340 = vld [vmem:[%s2 + $0x90] sm:$0xff]
      %v341 = vld [vmem:[%s2 + $0x98] sm:$0xff]
      %v342 = vld [vmem:[%s2 + $0xa0] sm:$0xff]
      %v343 = vld [vmem:[%s2 + $0xa8] sm:$0xff]
      %v344 = vld [vmem:[%s2 + $0xb0] sm:$0xff]
      %v345 = vld [vmem:[%s2 + $0xb8] sm:$0xff]
      %v346 = vld [vmem:[%s2 + $0xc0] sm:$0xff]
      %v347 = vld [vmem:[%s2 + $0xc8] sm:$0xff]
      %v348 = vld [vmem:[%s2 + $0xd0] sm:$0xff]
      %v349 = vld [vmem:[%s2 + $0xd8] sm:$0xff]
      %v350 = vld [vmem:[%s2 + $0xe0] sm:$0xff]
      %v351 = vld [vmem:[%s2 + $0xe8] sm:$0xff]
      %v352 = vld [vmem:[%s2 + $0xf0] sm:$0xff]
      %v353 = vld [vmem:[%s2 + $0xf8] sm:$0xff]
      %v354 = vld [vmem:[%s2 + $0x100] sm:$0xff]
      %v355 = vld [vmem:[%s2 + $0x108] sm:$0xff]
      %v356 = vld [vmem:[%s2 + $0x110] sm:$0xff]
      %v357 = vld [vmem:[%s2 + $0x118] sm:$0xff]
      %v358 = vld [vmem:[%s2 + $0x120] sm:$0xff]
      %v359 = vld [vmem:[%s2 + $0x128] sm:$0xff]
      %v360 = vld [vmem:[%s2 + $0x130] sm:$0xff]
      %v361 = vld [vmem:[%s2 + $0x138] sm:$0xff]
      %v362 = vld [vmem:[%s2 + $0x140] sm:$0xff]
      %v363 = vld [vmem:[%s2 + $0x148] sm:$0xff]
      %v364 = vld [vmem:[%s2 + $0x150] sm:$0xff]
      %v365 = vld [vmem:[%s2 + $0x158] sm:$0xff]
      %v366 = vld [vmem:[%s2 + $0x160] sm:$0xff]
      %v367 = vld [vmem:[%s2 + $0x168] sm:$0xff]
      %v368 = vld [vmem:[%s2 + $0x170] sm:$0xff]
      %v369 = vld [vmem:[%s2 + $0x178] sm:$0xff]
      %v370 = vld [vmem:[%s3] sm:$0x7]
      %v372 = vlaneseq
      %v373 = vshrl.u32 %v372, 7
      %v374 = vsub.s32 0, %v373
      %v375 = vrot.slane %v370, %v374
      %v376 = vlaneseq
      %v377 = vshrl.u32 %v376, 7
      %v378 = vsub.s32 1, %v377
      %v379 = vrot.slane %v370, %v378
      %v380 = vlaneseq
      %v381 = vshrl.u32 %v380, 7
      %v382 = vsub.s32 2, %v381
      %v383 = vrot.slane %v370, %v382
      %387 = vmatprep.subr.mxu0 %v323
      %388 = vmatpush1.msra.mxu0 %v322
      %389 = vmatprep.subr.mxu0 %v326
      %390 = vmatpush1.msra.mxu0 %v325
      %391 = vmatprep.subr.mxu0 %v329
      %392 = vmatpush1.msra.mxu0 %v328
      %393 = vmatprep.subr.mxu0 %v332
      %394 = vmatpush1.msra.mxu0 %v331
      %395 = vmatprep.subr.mxu0 %v335
      %396 = vmatpush1.msra.mxu0 %v334
      %397 = vmatprep.subr.mxu0 %v338
      %398 = vmatpush1.msra.mxu0 %v337
      %399 = vmatprep.subr.mxu0 %v341
      %400 = vmatpush1.msra.mxu0 %v340
      %401 = vmatprep.subr.mxu0 %v344
      %402 = vmatpush1.msra.mxu0 %v343
      %403 = vmatprep.subr.mxu0 %v347
      %404 = vmatpush1.msra.mxu0 %v346
      %405 = vmatprep.subr.mxu0 %v350
      %406 = vmatpush1.msra.mxu0 %v349
      %407 = vmatprep.subr.mxu0 %v353
      %408 = vmatpush1.msra.mxu0 %v352
      %409 = vmatprep.subr.mxu0 %v356
      %410 = vmatpush1.msra.mxu0 %v355
      %411 = vmatprep.subr.mxu0 %v359
      %412 = vmatpush1.msra.mxu0 %v358
      %413 = vmatprep.subr.mxu0 %v362
      %414 = vmatpush1.msra.mxu0 %v361
      %415 = vmatprep.subr.mxu0 %v365
      %416 = vmatpush1.msra.mxu0 %v364
      %417 = vmatprep.subr.mxu0 %v368
      %418 = vmatpush1.msra.mxu0 %v367
      %419 = vmatprep.subr.mxu0 0.0
      %420 = vmatpush1.msra.mxu0 0.0
      %421 = vmatprep.subr.mxu0 0.0
      %422 = vmatpush1.msra.mxu0 0.0
      %423 = vmatprep.subr.mxu0 0.0
      %424 = vmatpush1.msra.mxu0 0.0
      %425 = vmatprep.subr.mxu0 0.0
      %426 = vmatpush1.msra.mxu0 0.0
      %427 = vmatprep.subr.mxu0 0.0
      %428 = vmatpush1.msra.mxu0 0.0
      %429 = vmatprep.subr.mxu0 0.0
      %430 = vmatpush1.msra.mxu0 0.0
      %431 = vmatprep.subr.mxu0 0.0
      %432 = vmatpush1.msra.mxu0 0.0
      %433 = vmatprep.subr.mxu0 0.0
      %434 = vmatpush1.msra.mxu0 0.0
      %435 = vmatprep.subr.mxu0 0.0
      %436 = vmatpush1.msra.mxu0 0.0
      %437 = vmatprep.subr.mxu0 0.0
      %438 = vmatpush1.msra.mxu0 0.0
      %439 = vmatprep.subr.mxu0 0.0
      %440 = vmatpush1.msra.mxu0 0.0
      %441 = vmatprep.subr.mxu0 0.0
      %442 = vmatpush1.msra.mxu0 0.0
      %443 = vmatprep.subr.mxu0 0.0
      %444 = vmatpush1.msra.mxu0 0.0
      %445 = vmatprep.subr.mxu0 0.0
      %446 = vmatpush1.msra.mxu0 0.0
      %447 = vmatprep.subr.mxu0 0.0
      %448 = vmatpush1.msra.mxu0 0.0
      %449 = vmatprep.subr.mxu0 0.0
      %450 = vmatpush1.msra.mxu0 0.0
      %451 = vmatprep.mubr.f32.mxu0 0.0
      %452 = vmatmul.mubr.f32.gmra.mrb[0].mxu0 %v320
      %v453 = vpop.f32.mrb[0].mxu0
      %v454 = vadd.f32 %v375, %v453
      %v455 = vpop.f32.mrb[0].mxu0
      %v456 = vadd.f32 %v379, %v455
      %457 = vmatprep.mubr.f32.mxu0 0.0
      %458 = vmatmul.mubr.f32.gmra.mrb[0].mxu0 %v321
      %v459 = vpop.f32.mrb[0].mxu0
      %v460 = vadd.f32 %v375, %v459
      %v461 = vpop.f32.mrb[0].mxu0
      %v462 = vadd.f32 %v379, %v461
      %463 = vdwg.mxu0
      %464 = vmatprep.subr.mxu0 0.0
      %465 = vmatpush1.msra.mxu0 %v324
      %466 = vmatprep.subr.mxu0 0.0
      %467 = vmatpush1.msra.mxu0 %v327
      %468 = vmatprep.subr.mxu0 0.0
      %469 = vmatpush1.msra.mxu0 %v330
      %470 = vmatprep.subr.mxu0 0.0
      %471 = vmatpush1.msra.mxu0 %v333
      %472 = vmatprep.subr.mxu0 0.0
      %473 = vmatpush1.msra.mxu0 %v336
      %474 = vmatprep.subr.mxu0 0.0
      %475 = vmatpush1.msra.mxu0 %v339
      %476 = vmatprep.subr.mxu0 0.0
      %477 = vmatpush1.msra.mxu0 %v342
      %478 = vmatprep.subr.mxu0 0.0
      %479 = vmatpush1.msra.mxu0 %v345
      %480 = vmatprep.subr.mxu0 0.0
      %481 = vmatpush1.msra.mxu0 %v348
      %482 = vmatprep.subr.mxu0 0.0
      %483 = vmatpush1.msra.mxu0 %v351
      %484 = vmatprep.subr.mxu0 0.0
      %485 = vmatpush1.msra.mxu0 %v354
      %486 = vmatprep.subr.mxu0 0.0
      %487 = vmatpush1.msra.mxu0 %v357
      %488 = vmatprep.subr.mxu0 0.0
      %489 = vmatpush1.msra.mxu0 %v360
      %490 = vmatprep.subr.mxu0 0.0
      %491 = vmatpush1.msra.mxu0 %v363
      %492 = vmatprep.subr.mxu0 0.0
      %493 = vmatpush1.msra.mxu0 %v366
      %494 = vmatprep.subr.mxu0 0.0
      %495 = vmatpush1.msra.mxu0 %v369
      %496 = vmatprep.subr.mxu0 0.0
      %497 = vmatpush1.msra.mxu0 0.0
      %498 = vmatprep.subr.mxu0 0.0
      %499 = vmatpush1.msra.mxu0 0.0
      %500 = vmatprep.subr.mxu0 0.0
      %501 = vmatpush1.msra.mxu0 0.0
      %502 = vmatprep.subr.mxu0 0.0
      %503 = vmatpush1.msra.mxu0 0.0
      %504 = vmatprep.subr.mxu0 0.0
      %505 = vmatpush1.msra.mxu0 0.0
      %506 = vmatprep.subr.mxu0 0.0
      %507 = vmatpush1.msra.mxu0 0.0
      %508 = vmatprep.subr.mxu0 0.0
      %509 = vmatpush1.msra.mxu0 0.0
      %510 = vmatprep.subr.mxu0 0.0
      %511 = vmatpush1.msra.mxu0 0.0
      %512 = vmatprep.subr.mxu0 0.0
      %513 = vmatpush1.msra.mxu0 0.0
      %514 = vmatprep.subr.mxu0 0.0
      %515 = vmatpush1.msra.mxu0 0.0
      %516 = vmatprep.subr.mxu0 0.0
      %517 = vmatpush1.msra.mxu0 0.0
      %518 = vmatprep.subr.mxu0 0.0
      %519 = vmatpush1.msra.mxu0 0.0
      %520 = vmatprep.subr.mxu0 0.0
      %521 = vmatpush1.msra.mxu0 0.0
      %522 = vmatprep.subr.mxu0 0.0
      %523 = vmatpush1.msra.mxu0 0.0
      %524 = vmatprep.subr.mxu0 0.0
      %525 = vmatpush1.msra.mxu0 0.0
      %526 = vmatprep.subr.mxu0 0.0
      %527 = vmatpush1.msra.mxu0 0.0
      %528 = vmatprep.mubr.f32.mxu0 0.0
      %529 = vmatmul.mubr.f32.gmra.mrb[0].mxu0 %v320
      %v530 = vpop.f32.mrb[0].mxu0
      %v531 = vadd.f32 %v383, %v530
      %v532 = vpop.f32.mrb[0].mxu0
      %533 = vmatprep.mubr.f32.mxu0 0.0
      %534 = vmatmul.mubr.f32.gmra.mrb[0].mxu0 %v321
      %v535 = vpop.f32.mrb[0].mxu0
      %v536 = vadd.f32 %v383, %v535
      %v537 = vpop.f32.mrb[0].mxu0
      %538 = vdwg.mxu0
      %v539 = vld [vmem:[%s314] sm:$0x1]
      %v540 = vld [vmem:[%s5] sm:$0x1]
      %v542 = vlaneseq
      %v543 = vshrl.u32 %v542, 7
      %v544 = vsub.s32 0, %v543
      %v545 = vrot.slane %v540, %v544
      %v547 = vadd.f32 %v320, %v545
      %v548 = vadd.f32 %v321, %v545
      %vm549 = vcmask 261120
      %v551 = vsel %vm549, %v454, 0
      %v554 = vsel %vm549, %v460, 0
      %v557 = vsel %vm549, %v456, 0
      %v560 = vsel %vm549, %v462, 0
      %562 = vmatprep.subr.mxu0 0.0
      %563 = vmatpush1.xpose.msra.mxu0 %v557
      %564 = vmatprep.subr.mxu0 0.0
      %565 = vmatpush1.xpose.msra.mxu0 %v560
      %566 = vmatprep.subr.mxu0 0.0
      %567 = vmatpush1.xpose.msra.mxu0 0.0
      %568 = vmatprep.subr.mxu0 0.0
      %569 = vmatpush1.xpose.msra.mxu0 0.0
      %570 = vmatprep.subr.mxu0 0.0
      %571 = vmatpush1.xpose.msra.mxu0 0.0
      %572 = vmatprep.subr.mxu0 0.0
      %573 = vmatpush1.xpose.msra.mxu0 0.0
      %574 = vmatprep.subr.mxu0 0.0
      %575 = vmatpush1.xpose.msra.mxu0 0.0
      %576 = vmatprep.subr.mxu0 0.0
      %577 = vmatpush1.xpose.msra.mxu0 0.0
      %578 = vmatprep.subr.mxu0 0.0
      %579 = vmatpush1.xpose.msra.mxu0 0.0
      %580 = vmatprep.subr.mxu0 0.0
      %581 = vmatpush1.xpose.msra.mxu0 0.0
      %582 = vmatprep.subr.mxu0 0.0
      %583 = vmatpush1.xpose.msra.mxu0 0.0
      %584 = vmatprep.subr.mxu0 0.0
      %585 = vmatpush1.xpose.msra.mxu0 0.0
      %586 = vmatprep.subr.mxu0 0.0
      %587 = vmatpush1.xpose.msra.mxu0 0.0
      %588 = vmatprep.subr.mxu0 0.0
      %589 = vmatpush1.xpose.msra.mxu0 0.0
      %590 = vmatprep.subr.mxu0 0.0
      %591 = vmatpush1.xpose.msra.mxu0 0.0
      %592 = vmatprep.subr.mxu0 0.0
      %593 = vmatpush1.xpose.msra.mxu0 0.0
      %594 = vmatprep.subr.mxu0 0.0
      %595 = vmatpush1.xpose.msra.mxu0 0.0
      %596 = vmatprep.subr.mxu0 0.0
      %597 = vmatpush1.xpose.msra.mxu0 0.0
      %598 = vmatprep.subr.mxu0 0.0
      %599 = vmatpush1.xpose.msra.mxu0 0.0
      %600 = vmatprep.subr.mxu0 0.0
      %601 = vmatpush1.xpose.msra.mxu0 0.0
      %602 = vmatprep.subr.mxu0 0.0
      %603 = vmatpush1.xpose.msra.mxu0 0.0
      %604 = vmatprep.subr.mxu0 0.0
      %605 = vmatpush1.xpose.msra.mxu0 0.0
      %606 = vmatprep.subr.mxu0 0.0
      %607 = vmatpush1.xpose.msra.mxu0 0.0
      %608 = vmatprep.subr.mxu0 0.0
      %609 = vmatpush1.xpose.msra.mxu0 0.0
      %610 = vmatprep.subr.mxu0 0.0
      %611 = vmatpush1.xpose.msra.mxu0 0.0
      %612 = vmatprep.subr.mxu0 0.0
      %613 = vmatpush1.xpose.msra.mxu0 0.0
      %614 = vmatprep.subr.mxu0 0.0
      %615 = vmatpush1.xpose.msra.mxu0 0.0
      %616 = vmatprep.subr.mxu0 0.0
      %617 = vmatpush1.xpose.msra.mxu0 0.0
      %618 = vmatprep.subr.mxu0 0.0
      %619 = vmatpush1.xpose.msra.mxu0 0.0
      %620 = vmatprep.subr.mxu0 0.0
      %621 = vmatpush1.xpose.msra.mxu0 0.0
      %622 = vmatprep.subr.mxu0 0.0
      %623 = vmatpush1.xpose.msra.mxu0 0.0
      %624 = vmatprep.subr.mxu0 0.0
      %625 = vmatpush1.xpose.msra.mxu0 0.0
      %626 = vmatprep.mubr.f32.mxu0 0.0
      %627 = vmatmul.mubr.f32.gmra.mrb[0].mxu0 %v551
      %v628 = vpop.f32.mrb[0].mxu0
      %v629 = vadd.f32 0.0, %v628
      %v630 = vpop.f32.mrb[0].mxu0
      %631 = vmatprep.mubr.f32.mxu0 0.0
      %632 = vmatmul.mubr.f32.gmra.mrb[0].mxu0 %v554
      %v633 = vpop.f32.mrb[0].mxu0
      %v634 = vadd.f32 0.0, %v633
      %v635 = vpop.f32.mrb[0].mxu0
      %636 = vdwg.mxu0
      %v637 = vmul.f32 %v629, 0.17677669
      %v638 = vmul.f32 %v634, 0.17677669
      %v640 = vlaneseq
      %v641 = vshrl.u32 %v640, 7
      %v642 = vsub.s32 0, %v641
      %v643 = vrot.slane %v539, %v642
      %v645 = vadd.f32 %v637, %v643
      %v646 = vadd.f32 %v638, %v643
      %vm647 = vcmask 130048
      %v648 = vsel %vm647, %v645, -inf
      %649 = vmax.xlane.f32.xlu0 %v648
      %v650 = vpop.xlane.xlu0 %649
      %v651 = vsel %vm647, %v646, -inf
      %652 = vmax.xlane.f32.xlu0 %v651
      %v653 = vpop.xlane.xlu0 %652
      %v654 = vsub.f32 %v645, %v650
      %v655 = vsub.f32 %v646, %v653
      %v656 = vmul.f32 %v654, 1.442695
      %v657 = vpow.pop %v656
      %v658 = vmul.f32 %v655, 1.442695
      %v659 = vpow.pop %v658
      %v660 = vsel %vm647, %v657, 0.0
      %661 = vadd.xlane.f32.xlu0 %v660
      %v662 = vpop.xlane.xlu0 %661
      %v663 = vsel %vm647, %v659, 0.0
      %664 = vadd.xlane.f32.xlu0 %v663
      %v665 = vpop.xlane.xlu0 %664
      %v666 = vrcp.pop %v662
      %v667 = vrcp.pop %v665
      %v668 = vmul.f32 %v657, %v666
      %v669 = vmul.f32 %v659, %v667
      %v671 = vsel %vm647, %v668, 0
      %v674 = vsel %vm647, %v669, 0
      %676 = vmatprep.subr.mxu0 0.0
      %677 = vmatpush1.msra.mxu0 %v531
      %678 = vmatprep.subr.mxu0 0.0
      %679 = vmatpush1.msra.mxu0 %v536
      %680 = vmatprep.subr.mxu0 0.0
      %681 = vmatpush1.msra.mxu0 0.0
      %682 = vmatprep.subr.mxu0 0.0
      %683 = vmatpush1.msra.mxu0 0.0
      %684 = vmatprep.subr.mxu0 0.0
      %685 = vmatpush1.msra.mxu0 0.0
      %686 = vmatprep.subr.mxu0 0.0
      %687 = vmatpush1.msra.mxu0 0.0
      %688 = vmatprep.subr.mxu0 0.0
      %689 = vmatpush1.msra.mxu0 0.0
      %690 = vmatprep.subr.mxu0 0.0
      %691 = vmatpush1.msra.mxu0 0.0
      %692 = vmatprep.subr.mxu0 0.0
      %693 = vmatpush1.msra.mxu0 0.0
      %694 = vmatprep.subr.mxu0 0.0
      %695 = vmatpush1.msra.mxu0 0.0
      %696 = vmatprep.subr.mxu0 0.0
      %697 = vmatpush1.msra.mxu0 0.0
      %698 = vmatprep.subr.mxu0 0.0
      %699 = vmatpush1.msra.mxu0 0.0
      %700 = vmatprep.subr.mxu0 0.0
      %701 = vmatpush1.msra.mxu0 0.0
      %702 = vmatprep.subr.mxu0 0.0
      %703 = vmatpush1.msra.mxu0 0.0
      %704 = vmatprep.subr.mxu0 0.0
      %705 = vmatpush1.msra.mxu0 0.0
      %706 = vmatprep.subr.mxu0 0.0
      %707 = vmatpush1.msra.mxu0 0.0
      %708 = vmatprep.subr.mxu0 0.0
      %709 = vmatpush1.msra.mxu0 0.0
      %710 = vmatprep.subr.mxu0 0.0
      %711 = vmatpush1.msra.mxu0 0.0
      %712 = vmatprep.subr.mxu0 0.0
      %713 = vmatpush1.msra.mxu0 0.0
      %714 = vmatprep.subr.mxu0 0.0
      %715 = vmatpush1.msra.mxu0 0.0
      %716 = vmatprep.subr.mxu0 0.0
      %717 = vmatpush1.msra.mxu0 0.0
      %718 = vmatprep.subr.mxu0 0.0
      %719 = vmatpush1.msra.mxu0 0.0
      %720 = vmatprep.subr.mxu0 0.0
      %721 = vmatpush1.msra.mxu0 0.0
      %722 = vmatprep.subr.mxu0 0.0
      %723 = vmatpush1.msra.mxu0 0.0
      %724 = vmatprep.subr.mxu0 0.0
      %725 = vmatpush1.msra.mxu0 0.0
      %726 = vmatprep.subr.mxu0 0.0
      %727 = vmatpush1.msra.mxu0 0.0
      %728 = vmatprep.subr.mxu0 0.0
      %729 = vmatpush1.msra.mxu0 0.0
      %730 = vmatprep.subr.mxu0 0.0
      %731 = vmatpush1.msra.mxu0 0.0
      %732 = vmatprep.subr.mxu0 0.0
      %733 = vmatpush1.msra.mxu0 0.0
      %734 = vmatprep.subr.mxu0 0.0
      %735 = vmatpush1.msra.mxu0 0.0
      %736 = vmatprep.subr.mxu0 0.0
      %737 = vmatpush1.msra.mxu0 0.0
      %738 = vmatprep.subr.mxu0 0.0
      %739 = vmatpush1.msra.mxu0 0.0
      %740 = vmatprep.mubr.f32.mxu0 0.0
      %741 = vmatmul.mubr.f32.gmra.mrb[0].mxu0 %v671
      %v742 = vpop.f32.mrb[0].mxu0
      %v743 = vadd.f32 0.0, %v742
      %v744 = vpop.f32.mrb[0].mxu0
      %745 = vmatprep.mubr.f32.mxu0 0.0
      %746 = vmatmul.mubr.f32.gmra.mrb[0].mxu0 %v674
      %v747 = vpop.f32.mrb[0].mxu0
      %v748 = vadd.f32 0.0, %v747
      %v749 = vpop.f32.mrb[0].mxu0
      %750 = vdwg.mxu0
      %v751 = vld [vmem:[%s4] sm:$0xff]
      %v752 = vld [vmem:[%s4 + $0x8] sm:$0xff]
      %v753 = vld [vmem:[%s4 + $0x10] sm:$0xff]
      %v754 = vld [vmem:[%s4 + $0x18] sm:$0xff]
      %v756 = vsel %vm549, %v743, 0
      %v759 = vsel %vm549, %v748, 0
      %761 = vmatprep.subr.mxu0 0.0
      %762 = vmatpush1.msra.mxu0 %v751
      %763 = vmatprep.subr.mxu0 0.0
      %764 = vmatpush1.msra.mxu0 %v752
      %765 = vmatprep.subr.mxu0 0.0
      %766 = vmatpush1.msra.mxu0 %v753
      %767 = vmatprep.subr.mxu0 0.0
      %768 = vmatpush1.msra.mxu0 %v754
      %769 = vmatprep.subr.mxu0 0.0
      %770 = vmatpush1.msra.mxu0 0.0
      %771 = vmatprep.subr.mxu0 0.0
      %772 = vmatpush1.msra.mxu0 0.0
      %773 = vmatprep.subr.mxu0 0.0
      %774 = vmatpush1.msra.mxu0 0.0
      %775 = vmatprep.subr.mxu0 0.0
      %776 = vmatpush1.msra.mxu0 0.0
      %777 = vmatprep.subr.mxu0 0.0
      %778 = vmatpush1.msra.mxu0 0.0
      %779 = vmatprep.subr.mxu0 0.0
      %780 = vmatpush1.msra.mxu0 0.0
      %781 = vmatprep.subr.mxu0 0.0
      %782 = vmatpush1.msra.mxu0 0.0
      %783 = vmatprep.subr.mxu0 0.0
      %784 = vmatpush1.msra.mxu0 0.0
      %785 = vmatprep.subr.mxu0 0.0
      %786 = vmatpush1.msra.mxu0 0.0
      %787 = vmatprep.subr.mxu0 0.0
      %788 = vmatpush1.msra.mxu0 0.0
      %789 = vmatprep.subr.mxu0 0.0
      %790 = vmatpush1.msra.mxu0 0.0
      %791 = vmatprep.subr.mxu0 0.0
      %792 = vmatpush1.msra.mxu0 0.0
      %793 = vmatprep.subr.mxu0 0.0
      %794 = vmatpush1.msra.mxu0 0.0
      %795 = vmatprep.subr.mxu0 0.0
      %796 = vmatpush1.msra.mxu0 0.0
      %797 = vmatprep.subr.mxu0 0.0
      %798 = vmatpush1.msra.mxu0 0.0
      %799 = vmatprep.subr.mxu0 0.0
      %800 = vmatpush1.msra.mxu0 0.0
      %801 = vmatprep.subr.mxu0 0.0
      %802 = vmatpush1.msra.mxu0 0.0
      %803 = vmatprep.subr.mxu0 0.0
      %804 = vmatpush1.msra.mxu0 0.0
      %805 = vmatprep.subr.mxu0 0.0
      %806 = vmatpush1.msra.mxu0 0.0
      %807 = vmatprep.subr.mxu0 0.0
      %808 = vmatpush1.msra.mxu0 0.0
      %809 = vmatprep.subr.mxu0 0.0
      %810 = vmatpush1.msra.mxu0 0.0
      %811 = vmatprep.subr.mxu0 0.0
      %812 = vmatpush1.msra.mxu0 0.0
      %813 = vmatprep.subr.mxu0 0.0
      %814 = vmatpush1.msra.mxu0 0.0
      %815 = vmatprep.subr.mxu0 0.0
      %816 = vmatpush1.msra.mxu0 0.0
      %817 = vmatprep.subr.mxu0 0.0
      %818 = vmatpush1.msra.mxu0 0.0
      %819 = vmatprep.subr.mxu0 0.0
      %820 = vmatpush1.msra.mxu0 0.0
      %821 = vmatprep.subr.mxu0 0.0
      %822 = vmatpush1.msra.mxu0 0.0
      %823 = vmatprep.subr.mxu0 0.0
      %824 = vmatpush1.msra.mxu0 0.0
      %825 = vmatprep.mubr.f32.mxu0 0.0
      %826 = vmatmul.mubr.f32.gmra.mrb[0].mxu0 %v756
      %v827 = vpop.f32.mrb[0].mxu0
      %v828 = vadd.f32 0.0, %v827
      %v829 = vpop.f32.mrb[0].mxu0
      %830 = vmatprep.mubr.f32.mxu0 0.0
      %831 = vmatmul.mubr.f32.gmra.mrb[0].mxu0 %v759
      %v832 = vpop.f32.mrb[0].mxu0
      %v833 = vadd.f32 0.0, %v832
      %v834 = vpop.f32.mrb[0].mxu0
      %835 = vdwg.mxu0
      %v836 = vadd.f32 %v547, %v828
      %v837 = vadd.f32 %v548, %v833
      %838 = vrot.lane.b32.xlu0 %v454, 96
      %v839 = vpop.permute.xlu0 %838
      %840 = vrot.lane.b32.xlu0 %v460, 96
      %v841 = vpop.permute.xlu0 %840
      %842 = vrot.lane.b32.xlu0 %v456, 96
      %v843 = vpop.permute.xlu0 %842
      %844 = vrot.lane.b32.xlu0 %v462, 96
      %v845 = vpop.permute.xlu0 %844
      %v846 = vsel %vm549, %v839, 0
      %v848 = vsel %vm549, %v841, 0
      %v850 = vsel %vm549, %v843, 0
      %v852 = vsel %vm549, %v845, 0
      %854 = vmatprep.subr.mxu0 0.0
      %855 = vmatpush1.xpose.msra.mxu0 %v850
      %856 = vmatprep.subr.mxu0 0.0
      %857 = vmatpush1.xpose.msra.mxu0 %v852
      %858 = vmatprep.subr.mxu0 0.0
      %859 = vmatpush1.xpose.msra.mxu0 0.0
      %860 = vmatprep.subr.mxu0 0.0
      %861 = vmatpush1.xpose.msra.mxu0 0.0
      %862 = vmatprep.subr.mxu0 0.0
      %863 = vmatpush1.xpose.msra.mxu0 0.0
      %864 = vmatprep.subr.mxu0 0.0
      %865 = vmatpush1.xpose.msra.mxu0 0.0
      %866 = vmatprep.subr.mxu0 0.0
      %867 = vmatpush1.xpose.msra.mxu0 0.0
      %868 = vmatprep.subr.mxu0 0.0
      %869 = vmatpush1.xpose.msra.mxu0 0.0
      %870 = vmatprep.subr.mxu0 0.0
      %871 = vmatpush1.xpose.msra.mxu0 0.0
      %872 = vmatprep.subr.mxu0 0.0
      %873 = vmatpush1.xpose.msra.mxu0 0.0
      %874 = vmatprep.subr.mxu0 0.0
      %875 = vmatpush1.xpose.msra.mxu0 0.0
      %876 = vmatprep.subr.mxu0 0.0
      %877 = vmatpush1.xpose.msra.mxu0 0.0
      %878 = vmatprep.subr.mxu0 0.0
      %879 = vmatpush1.xpose.msra.mxu0 0.0
      %880 = vmatprep.subr.mxu0 0.0
      %881 = vmatpush1.xpose.msra.mxu0 0.0
      %882 = vmatprep.subr.mxu0 0.0
      %883 = vmatpush1.xpose.msra.mxu0 0.0
      %884 = vmatprep.subr.mxu0 0.0
      %885 = vmatpush1.xpose.msra.mxu0 0.0
      %886 = vmatprep.subr.mxu0 0.0
      %887 = vmatpush1.xpose.msra.mxu0 0.0
      %888 = vmatprep.subr.mxu0 0.0
      %889 = vmatpush1.xpose.msra.mxu0 0.0
      %890 = vmatprep.subr.mxu0 0.0
      %891 = vmatpush1.xpose.msra.mxu0 0.0
      %892 = vmatprep.subr.mxu0 0.0
      %893 = vmatpush1.xpose.msra.mxu0 0.0
      %894 = vmatprep.subr.mxu0 0.0
      %895 = vmatpush1.xpose.msra.mxu0 0.0
      %896 = vmatprep.subr.mxu0 0.0
      %897 = vmatpush1.xpose.msra.mxu0 0.0
      %898 = vmatprep.subr.mxu0 0.0
      %899 = vmatpush1.xpose.msra.mxu0 0.0
      %900 = vmatprep.subr.mxu0 0.0
      %901 = vmatpush1.xpose.msra.mxu0 0.0
      %902 = vmatprep.subr.mxu0 0.0
      %903 = vmatpush1.xpose.msra.mxu0 0.0
      %904 = vmatprep.subr.mxu0 0.0
      %905 = vmatpush1.xpose.msra.mxu0 0.0
      %906 = vmatprep.subr.mxu0 0.0
      %907 = vmatpush1.xpose.msra.mxu0 0.0
      %908 = vmatprep.subr.mxu0 0.0
      %909 = vmatpush1.xpose.msra.mxu0 0.0
      %910 = vmatprep.subr.mxu0 0.0
      %911 = vmatpush1.xpose.msra.mxu0 0.0
      %912 = vmatprep.subr.mxu0 0.0
      %913 = vmatpush1.xpose.msra.mxu0 0.0
      %914 = vmatprep.subr.mxu0 0.0
      %915 = vmatpush1.xpose.msra.mxu0 0.0
      %916 = vmatprep.subr.mxu0 0.0
      %917 = vmatpush1.xpose.msra.mxu0 0.0
      %918 = vmatprep.mubr.f32.mxu0 0.0
      %919 = vmatmul.mubr.f32.gmra.mrb[0].mxu0 %v846
      %v920 = vpop.f32.mrb[0].mxu0
      %v921 = vadd.f32 0.0, %v920
      %v922 = vpop.f32.mrb[0].mxu0
      %923 = vmatprep.mubr.f32.mxu0 0.0
      %924 = vmatmul.mubr.f32.gmra.mrb[0].mxu0 %v848
      %v925 = vpop.f32.mrb[0].mxu0
      %v926 = vadd.f32 0.0, %v925
      %v927 = vpop.f32.mrb[0].mxu0
      %928 = vdwg.mxu0
      %v929 = vmul.f32 %v921, 0.17677669
      %v930 = vmul.f32 %v926, 0.17677669
      %v931 = vadd.f32 %v929, %v643
      %v932 = vadd.f32 %v930, %v643
      %v933 = vsel %vm647, %v931, -inf
      %934 = vmax.xlane.f32.xlu0 %v933
      %v935 = vpop.xlane.xlu0 %934
      %v936 = vsel %vm647, %v932, -inf
      %937 = vmax.xlane.f32.xlu0 %v936
      %v938 = vpop.xlane.xlu0 %937
      %v939 = vsub.f32 %v931, %v935
      %v940 = vsub.f32 %v932, %v938
      %v941 = vmul.f32 %v939, 1.442695
      %v942 = vpow.pop %v941
      %v943 = vmul.f32 %v940, 1.442695
      %v944 = vpow.pop %v943
      %v945 = vsel %vm647, %v942, 0.0
      %946 = vadd.xlane.f32.xlu0 %v945
      %v947 = vpop.xlane.xlu0 %946
      %v948 = vsel %vm647, %v944, 0.0
      %949 = vadd.xlane.f32.xlu0 %v948
      %v950 = vpop.xlane.xlu0 %949
      %v951 = vrcp.pop %v947
      %v952 = vrcp.pop %v950
      %v953 = vmul.f32 %v942, %v951
      %v954 = vmul.f32 %v944, %v952
      %957 = vrot.lane.b32.xlu0 %v531, 96
      %v958 = vpop.permute.xlu0 %957
      %959 = vrot.lane.b32.xlu0 %v536, 96
      %v960 = vpop.permute.xlu0 %959
      %v964 = vsel %vm647, %v953, 0
      %v967 = vsel %vm647, %v954, 0
      %969 = vmatprep.subr.mxu0 0.0
      %970 = vmatpush1.msra.mxu0 %v958
      %971 = vmatprep.subr.mxu0 0.0
      %972 = vmatpush1.msra.mxu0 %v960
      %973 = vmatprep.subr.mxu0 0.0
      %974 = vmatpush1.msra.mxu0 0.0
      %975 = vmatprep.subr.mxu0 0.0
      %976 = vmatpush1.msra.mxu0 0.0
      %977 = vmatprep.subr.mxu0 0.0
      %978 = vmatpush1.msra.mxu0 0.0
      %979 = vmatprep.subr.mxu0 0.0
      %980 = vmatpush1.msra.mxu0 0.0
      %981 = vmatprep.subr.mxu0 0.0
      %982 = vmatpush1.msra.mxu0 0.0
      %983 = vmatprep.subr.mxu0 0.0
      %984 = vmatpush1.msra.mxu0 0.0
      %985 = vmatprep.subr.mxu0 0.0
      %986 = vmatpush1.msra.mxu0 0.0
      %987 = vmatprep.subr.mxu0 0.0
      %988 = vmatpush1.msra.mxu0 0.0
      %989 = vmatprep.subr.mxu0 0.0
      %990 = vmatpush1.msra.mxu0 0.0
      %991 = vmatprep.subr.mxu0 0.0
      %992 = vmatpush1.msra.mxu0 0.0
      %993 = vmatprep.subr.mxu0 0.0
      %994 = vmatpush1.msra.mxu0 0.0
      %995 = vmatprep.subr.mxu0 0.0
      %996 = vmatpush1.msra.mxu0 0.0
      %997 = vmatprep.subr.mxu0 0.0
      %998 = vmatpush1.msra.mxu0 0.0
      %999 = vmatprep.subr.mxu0 0.0
      %1000 = vmatpush1.msra.mxu0 0.0
      %1001 = vmatprep.subr.mxu0 0.0
      %1002 = vmatpush1.msra.mxu0 0.0
      %1003 = vmatprep.subr.mxu0 0.0
      %1004 = vmatpush1.msra.mxu0 0.0
      %1005 = vmatprep.subr.mxu0 0.0
      %1006 = vmatpush1.msra.mxu0 0.0
      %1007 = vmatprep.subr.mxu0 0.0
      %1008 = vmatpush1.msra.mxu0 0.0
      %1009 = vmatprep.subr.mxu0 0.0
      %1010 = vmatpush1.msra.mxu0 0.0
      %1011 = vmatprep.subr.mxu0 0.0
      %1012 = vmatpush1.msra.mxu0 0.0
      %1013 = vmatprep.subr.mxu0 0.0
      %1014 = vmatpush1.msra.mxu0 0.0
      %1015 = vmatprep.subr.mxu0 0.0
      %1016 = vmatpush1.msra.mxu0 0.0
      %1017 = vmatprep.subr.mxu0 0.0
      %1018 = vmatpush1.msra.mxu0 0.0
      %1019 = vmatprep.subr.mxu0 0.0
      %1020 = vmatpush1.msra.mxu0 0.0
      %1021 = vmatprep.subr.mxu0 0.0
      %1022 = vmatpush1.msra.mxu0 0.0
      %1023 = vmatprep.subr.mxu0 0.0
      %1024 = vmatpush1.msra.mxu0 0.0
      %1025 = vmatprep.subr.mxu0 0.0
      %1026 = vmatpush1.msra.mxu0 0.0
      %1027 = vmatprep.subr.mxu0 0.0
      %1028 = vmatpush1.msra.mxu0 0.0
      %1029 = vmatprep.subr.mxu0 0.0
      %1030 = vmatpush1.msra.mxu0 0.0
      %1031 = vmatprep.subr.mxu0 0.0
      %1032 = vmatpush1.msra.mxu0 0.0
      %1033 = vmatprep.mubr.f32.mxu0 0.0
      %1034 = vmatmul.mubr.f32.gmra.mrb[0].mxu0 %v964
      %v1035 = vpop.f32.mrb[0].mxu0
      %v1036 = vadd.f32 0.0, %v1035
      %v1037 = vpop.f32.mrb[0].mxu0
      %1038 = vmatprep.mubr.f32.mxu0 0.0
      %1039 = vmatmul.mubr.f32.gmra.mrb[0].mxu0 %v967
      %v1040 = vpop.f32.mrb[0].mxu0
      %v1041 = vadd.f32 0.0, %v1040
      %v1042 = vpop.f32.mrb[0].mxu0
      %1043 = vdwg.mxu0
      %v1044 = vld [vmem:[%s4 + $0x20] sm:$0xff]
      %v1045 = vld [vmem:[%s4 + $0x28] sm:$0xff]
      %v1046 = vld [vmem:[%s4 + $0x30] sm:$0xff]
      %v1047 = vld [vmem:[%s4 + $0x38] sm:$0xff]
      %v1049 = vsel %vm549, %v1036, 0
      %v1052 = vsel %vm549, %v1041, 0
      %1054 = vmatprep.subr.mxu0 0.0
      %1055 = vmatpush1.msra.mxu0 %v1044
      %1056 = vmatprep.subr.mxu0 0.0
      %1057 = vmatpush1.msra.mxu0 %v1045
      %1058 = vmatprep.subr.mxu0 0.0
      %1059 = vmatpush1.msra.mxu0 %v1046
      %1060 = vmatprep.subr.mxu0 0.0
      %1061 = vmatpush1.msra.mxu0 %v1047
      %1062 = vmatprep.subr.mxu0 0.0
      %1063 = vmatpush1.msra.mxu0 0.0
      %1064 = vmatprep.subr.mxu0 0.0
      %1065 = vmatpush1.msra.mxu0 0.0
      %1066 = vmatprep.subr.mxu0 0.0
      %1067 = vmatpush1.msra.mxu0 0.0
      %1068 = vmatprep.subr.mxu0 0.0
      %1069 = vmatpush1.msra.mxu0 0.0
      %1070 = vmatprep.subr.mxu0 0.0
      %1071 = vmatpush1.msra.mxu0 0.0
      %1072 = vmatprep.subr.mxu0 0.0
      %1073 = vmatpush1.msra.mxu0 0.0
      %1074 = vmatprep.subr.mxu0 0.0
      %1075 = vmatpush1.msra.mxu0 0.0
      %1076 = vmatprep.subr.mxu0 0.0
      %1077 = vmatpush1.msra.mxu0 0.0
      %1078 = vmatprep.subr.mxu0 0.0
      %1079 = vmatpush1.msra.mxu0 0.0
      %1080 = vmatprep.subr.mxu0 0.0
      %1081 = vmatpush1.msra.mxu0 0.0
      %1082 = vmatprep.subr.mxu0 0.0
      %1083 = vmatpush1.msra.mxu0 0.0
      %1084 = vmatprep.subr.mxu0 0.0
      %1085 = vmatpush1.msra.mxu0 0.0
      %1086 = vmatprep.subr.mxu0 0.0
      %1087 = vmatpush1.msra.mxu0 0.0
      %1088 = vmatprep.subr.mxu0 0.0
      %1089 = vmatpush1.msra.mxu0 0.0
      %1090 = vmatprep.subr.mxu0 0.0
      %1091 = vmatpush1.msra.mxu0 0.0
      %1092 = vmatprep.subr.mxu0 0.0
      %1093 = vmatpush1.msra.mxu0 0.0
      %1094 = vmatprep.subr.mxu0 0.0
      %1095 = vmatpush1.msra.mxu0 0.0
      %1096 = vmatprep.subr.mxu0 0.0
      %1097 = vmatpush1.msra.mxu0 0.0
      %1098 = vmatprep.subr.mxu0 0.0
      %1099 = vmatpush1.msra.mxu0 0.0
      %1100 = vmatprep.subr.mxu0 0.0
      %1101 = vmatpush1.msra.mxu0 0.0
      %1102 = vmatprep.subr.mxu0 0.0
      %1103 = vmatpush1.msra.mxu0 0.0
      %1104 = vmatprep.subr.mxu0 0.0
      %1105 = vmatpush1.msra.mxu0 0.0
      %1106 = vmatprep.subr.mxu0 0.0
      %1107 = vmatpush1.msra.mxu0 0.0
      %1108 = vmatprep.subr.mxu0 0.0
      %1109 = vmatpush1.msra.mxu0 0.0
      %1110 = vmatprep.subr.mxu0 0.0
      %1111 = vmatpush1.msra.mxu0 0.0
      %1112 = vmatprep.subr.mxu0 0.0
      %1113 = vmatpush1.msra.mxu0 0.0
      %1114 = vmatprep.subr.mxu0 0.0
      %1115 = vmatpush1.msra.mxu0 0.0
      %1116 = vmatprep.subr.mxu0 0.0
      %1117 = vmatpush1.msra.mxu0 0.0
      %1118 = vmatprep.mubr.f32.mxu0 0.0
      %1119 = vmatmul.mubr.f32.gmra.mrb[0].mxu0 %v1049
      %v1120 = vpop.f32.mrb[0].mxu0
      %v1121 = vadd.f32 0.0, %v1120
      %v1122 = vpop.f32.mrb[0].mxu0
      %1123 = vmatprep.mubr.f32.mxu0 0.0
      %1124 = vmatmul.mubr.f32.gmra.mrb[0].mxu0 %v1052
      %v1125 = vpop.f32.mrb[0].mxu0
      %v1126 = vadd.f32 0.0, %v1125
      %v1127 = vpop.f32.mrb[0].mxu0
      %1128 = vdwg.mxu0
      %v1129 = vadd.f32 %v836, %v1121
      %v1130 = vadd.f32 %v837, %v1126
      %1131 = vrot.lane.b32.xlu0 %v454, 64
      %v1132 = vpop.permute.xlu0 %1131
      %1133 = vrot.lane.b32.xlu0 %v460, 64
      %v1134 = vpop.permute.xlu0 %1133
      %1135 = vrot.lane.b32.xlu0 %v456, 64
      %v1136 = vpop.permute.xlu0 %1135
      %1137 = vrot.lane.b32.xlu0 %v462, 64
      %v1138 = vpop.permute.xlu0 %1137
      %v1139 = vsel %vm549, %v1132, 0
      %v1141 = vsel %vm549, %v1134, 0
      %v1143 = vsel %vm549, %v1136, 0
      %v1145 = vsel %vm549, %v1138, 0
      %1147 = vmatprep.subr.mxu0 0.0
      %1148 = vmatpush1.xpose.msra.mxu0 %v1143
      %1149 = vmatprep.subr.mxu0 0.0
      %1150 = vmatpush1.xpose.msra.mxu0 %v1145
      %1151 = vmatprep.subr.mxu0 0.0
      %1152 = vmatpush1.xpose.msra.mxu0 0.0
      %1153 = vmatprep.subr.mxu0 0.0
      %1154 = vmatpush1.xpose.msra.mxu0 0.0
      %1155 = vmatprep.subr.mxu0 0.0
      %1156 = vmatpush1.xpose.msra.mxu0 0.0
      %1157 = vmatprep.subr.mxu0 0.0
      %1158 = vmatpush1.xpose.msra.mxu0 0.0
      %1159 = vmatprep.subr.mxu0 0.0
      %1160 = vmatpush1.xpose.msra.mxu0 0.0
      %1161 = vmatprep.subr.mxu0 0.0
      %1162 = vmatpush1.xpose.msra.mxu0 0.0
      %1163 = vmatprep.subr.mxu0 0.0
      %1164 = vmatpush1.xpose.msra.mxu0 0.0
      %1165 = vmatprep.subr.mxu0 0.0
      %1166 = vmatpush1.xpose.msra.mxu0 0.0
      %1167 = vmatprep.subr.mxu0 0.0
      %1168 = vmatpush1.xpose.msra.mxu0 0.0
      %1169 = vmatprep.subr.mxu0 0.0
      %1170 = vmatpush1.xpose.msra.mxu0 0.0
      %1171 = vmatprep.subr.mxu0 0.0
      %1172 = vmatpush1.xpose.msra.mxu0 0.0
      %1173 = vmatprep.subr.mxu0 0.0
      %1174 = vmatpush1.xpose.msra.mxu0 0.0
      %1175 = vmatprep.subr.mxu0 0.0
      %1176 = vmatpush1.xpose.msra.mxu0 0.0
      %1177 = vmatprep.subr.mxu0 0.0
      %1178 = vmatpush1.xpose.msra.mxu0 0.0
      %1179 = vmatprep.subr.mxu0 0.0
      %1180 = vmatpush1.xpose.msra.mxu0 0.0
      %1181 = vmatprep.subr.mxu0 0.0
      %1182 = vmatpush1.xpose.msra.mxu0 0.0
      %1183 = vmatprep.subr.mxu0 0.0
      %1184 = vmatpush1.xpose.msra.mxu0 0.0
      %1185 = vmatprep.subr.mxu0 0.0
      %1186 = vmatpush1.xpose.msra.mxu0 0.0
      %1187 = vmatprep.subr.mxu0 0.0
      %1188 = vmatpush1.xpose.msra.mxu0 0.0
      %1189 = vmatprep.subr.mxu0 0.0
      %1190 = vmatpush1.xpose.msra.mxu0 0.0
      %1191 = vmatprep.subr.mxu0 0.0
      %1192 = vmatpush1.xpose.msra.mxu0 0.0
      %1193 = vmatprep.subr.mxu0 0.0
      %1194 = vmatpush1.xpose.msra.mxu0 0.0
      %1195 = vmatprep.subr.mxu0 0.0
      %1196 = vmatpush1.xpose.msra.mxu0 0.0
      %1197 = vmatprep.subr.mxu0 0.0
      %1198 = vmatpush1.xpose.msra.mxu0 0.0
      %1199 = vmatprep.subr.mxu0 0.0
      %1200 = vmatpush1.xpose.msra.mxu0 0.0
      %1201 = vmatprep.subr.mxu0 0.0
      %1202 = vmatpush1.xpose.msra.mxu0 0.0
      %1203 = vmatprep.subr.mxu0 0.0
      %1204 = vmatpush1.xpose.msra.mxu0 0.0
      %1205 = vmatprep.subr.mxu0 0.0
      %1206 = vmatpush1.xpose.msra.mxu0 0.0
      %1207 = vmatprep.subr.mxu0 0.0
      %1208 = vmatpush1.xpose.msra.mxu0 0.0
      %1209 = vmatprep.subr.mxu0 0.0
      %1210 = vmatpush1.xpose.msra.mxu0 0.0
      %1211 = vmatprep.mubr.f32.mxu0 0.0
      %1212 = vmatmul.mubr.f32.gmra.mrb[0].mxu0 %v1139
      %v1213 = vpop.f32.mrb[0].mxu0
      %v1214 = vadd.f32 0.0, %v1213
      %v1215 = vpop.f32.mrb[0].mxu0
      %1216 = vmatprep.mubr.f32.mxu0 0.0
      %1217 = vmatmul.mubr.f32.gmra.mrb[0].mxu0 %v1141
      %v1218 = vpop.f32.mrb[0].mxu0
      %v1219 = vadd.f32 0.0, %v1218
      %v1220 = vpop.f32.mrb[0].mxu0
      %1221 = vdwg.mxu0
      %v1222 = vmul.f32 %v1214, 0.17677669
      %v1223 = vmul.f32 %v1219, 0.17677669
      %v1224 = vadd.f32 %v1222, %v643
      %v1225 = vadd.f32 %v1223, %v643
      %v1226 = vsel %vm647, %v1224, -inf
      %1227 = vmax.xlane.f32.xlu0 %v1226
      %v1228 = vpop.xlane.xlu0 %1227
      %v1229 = vsel %vm647, %v1225, -inf
      %1230 = vmax.xlane.f32.xlu0 %v1229
      %v1231 = vpop.xlane.xlu0 %1230
      %v1232 = vsub.f32 %v1224, %v1228
      %v1233 = vsub.f32 %v1225, %v1231
      %v1234 = vmul.f32 %v1232, 1.442695
      %v1235 = vpow.pop %v1234
      %v1236 = vmul.f32 %v1233, 1.442695
      %v1237 = vpow.pop %v1236
      %v1238 = vsel %vm647, %v1235, 0.0
      %1239 = vadd.xlane.f32.xlu0 %v1238
      %v1240 = vpop.xlane.xlu0 %1239
      %v1241 = vsel %vm647, %v1237, 0.0
      %1242 = vadd.xlane.f32.xlu0 %v1241
      %v1243 = vpop.xlane.xlu0 %1242
      %v1244 = vrcp.pop %v1240
      %v1245 = vrcp.pop %v1243
      %v1246 = vmul.f32 %v1235, %v1244
      %v1247 = vmul.f32 %v1237, %v1245
      %1248 = vrot.lane.b32.xlu0 %v531, 64
      %v1249 = vpop.permute.xlu0 %1248
      %1250 = vrot.lane.b32.xlu0 %v536, 64
      %v1251 = vpop.permute.xlu0 %1250
      %v1255 = vsel %vm647, %v1246, 0
      %v1258 = vsel %vm647, %v1247, 0
      %1260 = vmatprep.subr.mxu0 0.0
      %1261 = vmatpush1.msra.mxu0 %v1249
      %1262 = vmatprep.subr.mxu0 0.0
      %1263 = vmatpush1.msra.mxu0 %v1251
      %1264 = vmatprep.subr.mxu0 0.0
      %1265 = vmatpush1.msra.mxu0 0.0
      %1266 = vmatprep.subr.mxu0 0.0
      %1267 = vmatpush1.msra.mxu0 0.0
      %1268 = vmatprep.subr.mxu0 0.0
      %1269 = vmatpush1.msra.mxu0 0.0
      %1270 = vmatprep.subr.mxu0 0.0
      %1271 = vmatpush1.msra.mxu0 0.0
      %1272 = vmatprep.subr.mxu0 0.0
      %1273 = vmatpush1.msra.mxu0 0.0
      %1274 = vmatprep.subr.mxu0 0.0
      %1275 = vmatpush1.msra.mxu0 0.0
      %1276 = vmatprep.subr.mxu0 0.0
      %1277 = vmatpush1.msra.mxu0 0.0
      %1278 = vmatprep.subr.mxu0 0.0
      %1279 = vmatpush1.msra.mxu0 0.0
      %1280 = vmatprep.subr.mxu0 0.0
      %1281 = vmatpush1.msra.mxu0 0.0
      %1282 = vmatprep.subr.mxu0 0.0
      %1283 = vmatpush1.msra.mxu0 0.0
      %1284 = vmatprep.subr.mxu0 0.0
      %1285 = vmatpush1.msra.mxu0 0.0
      %1286 = vmatprep.subr.mxu0 0.0
      %1287 = vmatpush1.msra.mxu0 0.0
      %1288 = vmatprep.subr.mxu0 0.0
      %1289 = vmatpush1.msra.mxu0 0.0
      %1290 = vmatprep.subr.mxu0 0.0
      %1291 = vmatpush1.msra.mxu0 0.0
      %1292 = vmatprep.subr.mxu0 0.0
      %1293 = vmatpush1.msra.mxu0 0.0
      %1294 = vmatprep.subr.mxu0 0.0
      %1295 = vmatpush1.msra.mxu0 0.0
      %1296 = vmatprep.subr.mxu0 0.0
      %1297 = vmatpush1.msra.mxu0 0.0
      %1298 = vmatprep.subr.mxu0 0.0
      %1299 = vmatpush1.msra.mxu0 0.0
      %1300 = vmatprep.subr.mxu0 0.0
      %1301 = vmatpush1.msra.mxu0 0.0
      %1302 = vmatprep.subr.mxu0 0.0
      %1303 = vmatpush1.msra.mxu0 0.0
      %1304 = vmatprep.subr.mxu0 0.0
      %1305 = vmatpush1.msra.mxu0 0.0
      %1306 = vmatprep.subr.mxu0 0.0
      %1307 = vmatpush1.msra.mxu0 0.0
      %1308 = vmatprep.subr.mxu0 0.0
      %1309 = vmatpush1.msra.mxu0 0.0
      %1310 = vmatprep.subr.mxu0 0.0
      %1311 = vmatpush1.msra.mxu0 0.0
      %1312 = vmatprep.subr.mxu0 0.0
      %1313 = vmatpush1.msra.mxu0 0.0
      %1314 = vmatprep.subr.mxu0 0.0
      %1315 = vmatpush1.msra.mxu0 0.0
      %1316 = vmatprep.subr.mxu0 0.0
      %1317 = vmatpush1.msra.mxu0 0.0
      %1318 = vmatprep.subr.mxu0 0.0
      %1319 = vmatpush1.msra.mxu0 0.0
      %1320 = vmatprep.subr.mxu0 0.0
      %1321 = vmatpush1.msra.mxu0 0.0
      %1322 = vmatprep.subr.mxu0 0.0
      %1323 = vmatpush1.msra.mxu0 0.0
      %1324 = vmatprep.mubr.f32.mxu0 0.0
      %1325 = vmatmul.mubr.f32.gmra.mrb[0].mxu0 %v1255
      %v1326 = vpop.f32.mrb[0].mxu0
      %v1327 = vadd.f32 0.0, %v1326
      %v1328 = vpop.f32.mrb[0].mxu0
      %1329 = vmatprep.mubr.f32.mxu0 0.0
      %1330 = vmatmul.mubr.f32.gmra.mrb[0].mxu0 %v1258
      %v1331 = vpop.f32.mrb[0].mxu0
      %v1332 = vadd.f32 0.0, %v1331
      %v1333 = vpop.f32.mrb[0].mxu0
      %1334 = vdwg.mxu0
      %v1335 = vld [vmem:[%s4 + $0x40] sm:$0xff]
      %v1336 = vld [vmem:[%s4 + $0x48] sm:$0xff]
      %v1337 = vld [vmem:[%s4 + $0x50] sm:$0xff]
      %v1338 = vld [vmem:[%s4 + $0x58] sm:$0xff]
      %v1340 = vsel %vm549, %v1327, 0
      %v1343 = vsel %vm549, %v1332, 0
      %1345 = vmatprep.subr.mxu0 0.0
      %1346 = vmatpush1.msra.mxu0 %v1335
      %1347 = vmatprep.subr.mxu0 0.0
      %1348 = vmatpush1.msra.mxu0 %v1336
      %1349 = vmatprep.subr.mxu0 0.0
      %1350 = vmatpush1.msra.mxu0 %v1337
      %1351 = vmatprep.subr.mxu0 0.0
      %1352 = vmatpush1.msra.mxu0 %v1338
      %1353 = vmatprep.subr.mxu0 0.0
      %1354 = vmatpush1.msra.mxu0 0.0
      %1355 = vmatprep.subr.mxu0 0.0
      %1356 = vmatpush1.msra.mxu0 0.0
      %1357 = vmatprep.subr.mxu0 0.0
      %1358 = vmatpush1.msra.mxu0 0.0
      %1359 = vmatprep.subr.mxu0 0.0
      %1360 = vmatpush1.msra.mxu0 0.0
      %1361 = vmatprep.subr.mxu0 0.0
      %1362 = vmatpush1.msra.mxu0 0.0
      %1363 = vmatprep.subr.mxu0 0.0
      %1364 = vmatpush1.msra.mxu0 0.0
      %1365 = vmatprep.subr.mxu0 0.0
      %1366 = vmatpush1.msra.mxu0 0.0
      %1367 = vmatprep.subr.mxu0 0.0
      %1368 = vmatpush1.msra.mxu0 0.0
      %1369 = vmatprep.subr.mxu0 0.0
      %1370 = vmatpush1.msra.mxu0 0.0
      %1371 = vmatprep.subr.mxu0 0.0
      %1372 = vmatpush1.msra.mxu0 0.0
      %1373 = vmatprep.subr.mxu0 0.0
      %1374 = vmatpush1.msra.mxu0 0.0
      %1375 = vmatprep.subr.mxu0 0.0
      %1376 = vmatpush1.msra.mxu0 0.0
      %1377 = vmatprep.subr.mxu0 0.0
      %1378 = vmatpush1.msra.mxu0 0.0
      %1379 = vmatprep.subr.mxu0 0.0
      %1380 = vmatpush1.msra.mxu0 0.0
      %1381 = vmatprep.subr.mxu0 0.0
      %1382 = vmatpush1.msra.mxu0 0.0
      %1383 = vmatprep.subr.mxu0 0.0
      %1384 = vmatpush1.msra.mxu0 0.0
      %1385 = vmatprep.subr.mxu0 0.0
      %1386 = vmatpush1.msra.mxu0 0.0
      %1387 = vmatprep.subr.mxu0 0.0
      %1388 = vmatpush1.msra.mxu0 0.0
      %1389 = vmatprep.subr.mxu0 0.0
      %1390 = vmatpush1.msra.mxu0 0.0
      %1391 = vmatprep.subr.mxu0 0.0
      %1392 = vmatpush1.msra.mxu0 0.0
      %1393 = vmatprep.subr.mxu0 0.0
      %1394 = vmatpush1.msra.mxu0 0.0
      %1395 = vmatprep.subr.mxu0 0.0
      %1396 = vmatpush1.msra.mxu0 0.0
      %1397 = vmatprep.subr.mxu0 0.0
      %1398 = vmatpush1.msra.mxu0 0.0
      %1399 = vmatprep.subr.mxu0 0.0
      %1400 = vmatpush1.msra.mxu0 0.0
      %1401 = vmatprep.subr.mxu0 0.0
      %1402 = vmatpush1.msra.mxu0 0.0
      %1403 = vmatprep.subr.mxu0 0.0
      %1404 = vmatpush1.msra.mxu0 0.0
      %1405 = vmatprep.subr.mxu0 0.0
      %1406 = vmatpush1.msra.mxu0 0.0
      %1407 = vmatprep.subr.mxu0 0.0
      %1408 = vmatpush1.msra.mxu0 0.0
      %1409 = vmatprep.mubr.f32.mxu0 0.0
      %1410 = vmatmul.mubr.f32.gmra.mrb[0].mxu0 %v1340
      %v1411 = vpop.f32.mrb[0].mxu0
      %v1412 = vadd.f32 0.0, %v1411
      %v1413 = vpop.f32.mrb[0].mxu0
      %1414 = vmatprep.mubr.f32.mxu0 0.0
      %1415 = vmatmul.mubr.f32.gmra.mrb[0].mxu0 %v1343
      %v1416 = vpop.f32.mrb[0].mxu0
      %v1417 = vadd.f32 0.0, %v1416
      %v1418 = vpop.f32.mrb[0].mxu0
      %1419 = vdwg.mxu0
      %v1420 = vadd.f32 %v1129, %v1412
      %v1421 = vadd.f32 %v1130, %v1417
      %1422 = vrot.lane.b32.xlu0 %v454, 32
      %v1423 = vpop.permute.xlu0 %1422
      %1424 = vrot.lane.b32.xlu0 %v460, 32
      %v1425 = vpop.permute.xlu0 %1424
      %1426 = vrot.lane.b32.xlu0 %v456, 32
      %v1427 = vpop.permute.xlu0 %1426
      %1428 = vrot.lane.b32.xlu0 %v462, 32
      %v1429 = vpop.permute.xlu0 %1428
      %v1430 = vsel %vm549, %v1423, 0
      %v1432 = vsel %vm549, %v1425, 0
      %v1434 = vsel %vm549, %v1427, 0
      %v1436 = vsel %vm549, %v1429, 0
      %1438 = vmatprep.subr.mxu0 0.0
      %1439 = vmatpush1.xpose.msra.mxu0 %v1434
      %1440 = vmatprep.subr.mxu0 0.0
      %1441 = vmatpush1.xpose.msra.mxu0 %v1436
      %1442 = vmatprep.subr.mxu0 0.0
      %1443 = vmatpush1.xpose.msra.mxu0 0.0
      %1444 = vmatprep.subr.mxu0 0.0
      %1445 = vmatpush1.xpose.msra.mxu0 0.0
      %1446 = vmatprep.subr.mxu0 0.0
      %1447 = vmatpush1.xpose.msra.mxu0 0.0
      %1448 = vmatprep.subr.mxu0 0.0
      %1449 = vmatpush1.xpose.msra.mxu0 0.0
      %1450 = vmatprep.subr.mxu0 0.0
      %1451 = vmatpush1.xpose.msra.mxu0 0.0
      %1452 = vmatprep.subr.mxu0 0.0
      %1453 = vmatpush1.xpose.msra.mxu0 0.0
      %1454 = vmatprep.subr.mxu0 0.0
      %1455 = vmatpush1.xpose.msra.mxu0 0.0
      %1456 = vmatprep.subr.mxu0 0.0
      %1457 = vmatpush1.xpose.msra.mxu0 0.0
      %1458 = vmatprep.subr.mxu0 0.0
      %1459 = vmatpush1.xpose.msra.mxu0 0.0
      %1460 = vmatprep.subr.mxu0 0.0
      %1461 = vmatpush1.xpose.msra.mxu0 0.0
      %1462 = vmatprep.subr.mxu0 0.0
      %1463 = vmatpush1.xpose.msra.mxu0 0.0
      %1464 = vmatprep.subr.mxu0 0.0
      %1465 = vmatpush1.xpose.msra.mxu0 0.0
      %1466 = vmatprep.subr.mxu0 0.0
      %1467 = vmatpush1.xpose.msra.mxu0 0.0
      %1468 = vmatprep.subr.mxu0 0.0
      %1469 = vmatpush1.xpose.msra.mxu0 0.0
      %1470 = vmatprep.subr.mxu0 0.0
      %1471 = vmatpush1.xpose.msra.mxu0 0.0
      %1472 = vmatprep.subr.mxu0 0.0
      %1473 = vmatpush1.xpose.msra.mxu0 0.0
      %1474 = vmatprep.subr.mxu0 0.0
      %1475 = vmatpush1.xpose.msra.mxu0 0.0
      %1476 = vmatprep.subr.mxu0 0.0
      %1477 = vmatpush1.xpose.msra.mxu0 0.0
      %1478 = vmatprep.subr.mxu0 0.0
      %1479 = vmatpush1.xpose.msra.mxu0 0.0
      %1480 = vmatprep.subr.mxu0 0.0
      %1481 = vmatpush1.xpose.msra.mxu0 0.0
      %1482 = vmatprep.subr.mxu0 0.0
      %1483 = vmatpush1.xpose.msra.mxu0 0.0
      %1484 = vmatprep.subr.mxu0 0.0
      %1485 = vmatpush1.xpose.msra.mxu0 0.0
      %1486 = vmatprep.subr.mxu0 0.0
      %1487 = vmatpush1.xpose.msra.mxu0 0.0
      %1488 = vmatprep.subr.mxu0 0.0
      %1489 = vmatpush1.xpose.msra.mxu0 0.0
      %1490 = vmatprep.subr.mxu0 0.0
      %1491 = vmatpush1.xpose.msra.mxu0 0.0
      %1492 = vmatprep.subr.mxu0 0.0
      %1493 = vmatpush1.xpose.msra.mxu0 0.0
      %1494 = vmatprep.subr.mxu0 0.0
      %1495 = vmatpush1.xpose.msra.mxu0 0.0
      %1496 = vmatprep.subr.mxu0 0.0
      %1497 = vmatpush1.xpose.msra.mxu0 0.0
      %1498 = vmatprep.subr.mxu0 0.0
      %1499 = vmatpush1.xpose.msra.mxu0 0.0
      %1500 = vmatprep.subr.mxu0 0.0
      %1501 = vmatpush1.xpose.msra.mxu0 0.0
      %1502 = vmatprep.mubr.f32.mxu0 0.0
      %1503 = vmatmul.mubr.f32.gmra.mrb[0].mxu0 %v1430
      %v1504 = vpop.f32.mrb[0].mxu0
      %v1505 = vadd.f32 0.0, %v1504
      %v1506 = vpop.f32.mrb[0].mxu0
      %1507 = vmatprep.mubr.f32.mxu0 0.0
      %1508 = vmatmul.mubr.f32.gmra.mrb[0].mxu0 %v1432
      %v1509 = vpop.f32.mrb[0].mxu0
      %v1510 = vadd.f32 0.0, %v1509
      %v1511 = vpop.f32.mrb[0].mxu0
      %1512 = vdwg.mxu0
      %v1513 = vmul.f32 %v1505, 0.17677669
      %v1514 = vmul.f32 %v1510, 0.17677669
      %v1515 = vadd.f32 %v1513, %v643
      %v1516 = vadd.f32 %v1514, %v643
      %v1517 = vsel %vm647, %v1515, -inf
      %1518 = vmax.xlane.f32.xlu0 %v1517
      %v1519 = vpop.xlane.xlu0 %1518
      %v1520 = vsel %vm647, %v1516, -inf
      %1521 = vmax.xlane.f32.xlu0 %v1520
      %v1522 = vpop.xlane.xlu0 %1521
      %v1523 = vsub.f32 %v1515, %v1519
      %v1524 = vsub.f32 %v1516, %v1522
      %v1525 = vmul.f32 %v1523, 1.442695
      %v1526 = vpow.pop %v1525
      %v1527 = vmul.f32 %v1524, 1.442695
      %v1528 = vpow.pop %v1527
      %v1529 = vsel %vm647, %v1526, 0.0
      %1530 = vadd.xlane.f32.xlu0 %v1529
      %v1531 = vpop.xlane.xlu0 %1530
      %v1532 = vsel %vm647, %v1528, 0.0
      %1533 = vadd.xlane.f32.xlu0 %v1532
      %v1534 = vpop.xlane.xlu0 %1533
      %v1535 = vrcp.pop %v1531
      %v1536 = vrcp.pop %v1534
      %v1537 = vmul.f32 %v1526, %v1535
      %v1538 = vmul.f32 %v1528, %v1536
      %1539 = vrot.lane.b32.xlu0 %v531, 32
      %v1540 = vpop.permute.xlu0 %1539
      %1541 = vrot.lane.b32.xlu0 %v536, 32
      %v1542 = vpop.permute.xlu0 %1541
      %v1546 = vsel %vm647, %v1537, 0
      %v1549 = vsel %vm647, %v1538, 0
      %1551 = vmatprep.subr.mxu0 0.0
      %1552 = vmatpush1.msra.mxu0 %v1540
      %1553 = vmatprep.subr.mxu0 0.0
      %1554 = vmatpush1.msra.mxu0 %v1542
      %1555 = vmatprep.subr.mxu0 0.0
      %1556 = vmatpush1.msra.mxu0 0.0
      %1557 = vmatprep.subr.mxu0 0.0
      %1558 = vmatpush1.msra.mxu0 0.0
      %1559 = vmatprep.subr.mxu0 0.0
      %1560 = vmatpush1.msra.mxu0 0.0
      %1561 = vmatprep.subr.mxu0 0.0
      %1562 = vmatpush1.msra.mxu0 0.0
      %1563 = vmatprep.subr.mxu0 0.0
      %1564 = vmatpush1.msra.mxu0 0.0
      %1565 = vmatprep.subr.mxu0 0.0
      %1566 = vmatpush1.msra.mxu0 0.0
      %1567 = vmatprep.subr.mxu0 0.0
      %1568 = vmatpush1.msra.mxu0 0.0
      %1569 = vmatprep.subr.mxu0 0.0
      %1570 = vmatpush1.msra.mxu0 0.0
      %1571 = vmatprep.subr.mxu0 0.0
      %1572 = vmatpush1.msra.mxu0 0.0
      %1573 = vmatprep.subr.mxu0 0.0
      %1574 = vmatpush1.msra.mxu0 0.0
      %1575 = vmatprep.subr.mxu0 0.0
      %1576 = vmatpush1.msra.mxu0 0.0
      %1577 = vmatprep.subr.mxu0 0.0
      %1578 = vmatpush1.msra.mxu0 0.0
      %1579 = vmatprep.subr.mxu0 0.0
      %1580 = vmatpush1.msra.mxu0 0.0
      %1581 = vmatprep.subr.mxu0 0.0
      %1582 = vmatpush1.msra.mxu0 0.0
      %1583 = vmatprep.subr.mxu0 0.0
      %1584 = vmatpush1.msra.mxu0 0.0
      %1585 = vmatprep.subr.mxu0 0.0
      %1586 = vmatpush1.msra.mxu0 0.0
      %1587 = vmatprep.subr.mxu0 0.0
      %1588 = vmatpush1.msra.mxu0 0.0
      %1589 = vmatprep.subr.mxu0 0.0
      %1590 = vmatpush1.msra.mxu0 0.0
      %1591 = vmatprep.subr.mxu0 0.0
      %1592 = vmatpush1.msra.mxu0 0.0
      %1593 = vmatprep.subr.mxu0 0.0
      %1594 = vmatpush1.msra.mxu0 0.0
      %1595 = vmatprep.subr.mxu0 0.0
      %1596 = vmatpush1.msra.mxu0 0.0
      %1597 = vmatprep.subr.mxu0 0.0
      %1598 = vmatpush1.msra.mxu0 0.0
      %1599 = vmatprep.subr.mxu0 0.0
      %1600 = vmatpush1.msra.mxu0 0.0
      %1601 = vmatprep.subr.mxu0 0.0
      %1602 = vmatpush1.msra.mxu0 0.0
      %1603 = vmatprep.subr.mxu0 0.0
      %1604 = vmatpush1.msra.mxu0 0.0
      %1605 = vmatprep.subr.mxu0 0.0
      %1606 = vmatpush1.msra.mxu0 0.0
      %1607 = vmatprep.subr.mxu0 0.0
      %1608 = vmatpush1.msra.mxu0 0.0
      %1609 = vmatprep.subr.mxu0 0.0
      %1610 = vmatpush1.msra.mxu0 0.0
      %1611 = vmatprep.subr.mxu0 0.0
      %1612 = vmatpush1.msra.mxu0 0.0
      %1613 = vmatprep.subr.mxu0 0.0
      %1614 = vmatpush1.msra.mxu0 0.0
      %1615 = vmatprep.mubr.f32.mxu0 0.0
      %1616 = vmatmul.mubr.f32.gmra.mrb[0].mxu0 %v1546
      %v1617 = vpop.f32.mrb[0].mxu0
      %v1618 = vadd.f32 0.0, %v1617
      %v1619 = vpop.f32.mrb[0].mxu0
      %1620 = vmatprep.mubr.f32.mxu0 0.0
      %1621 = vmatmul.mubr.f32.gmra.mrb[0].mxu0 %v1549
      %v1622 = vpop.f32.mrb[0].mxu0
      %v1623 = vadd.f32 0.0, %v1622
      %v1624 = vpop.f32.mrb[0].mxu0
      %1625 = vdwg.mxu0
      %v1626 = vld [vmem:[%s4 + $0x60] sm:$0xff]
      %v1627 = vld [vmem:[%s4 + $0x68] sm:$0xff]
      %v1628 = vld [vmem:[%s4 + $0x70] sm:$0xff]
      %v1629 = vld [vmem:[%s4 + $0x78] sm:$0xff]
      %v1631 = vsel %vm549, %v1618, 0
      %v1634 = vsel %vm549, %v1623, 0
      %1636 = vmatprep.subr.mxu0 0.0
      %1637 = vmatpush1.msra.mxu0 %v1626
      %1638 = vmatprep.subr.mxu0 0.0
      %1639 = vmatpush1.msra.mxu0 %v1627
      %1640 = vmatprep.subr.mxu0 0.0
      %1641 = vmatpush1.msra.mxu0 %v1628
      %1642 = vmatprep.subr.mxu0 0.0
      %1643 = vmatpush1.msra.mxu0 %v1629
      %1644 = vmatprep.subr.mxu0 0.0
      %1645 = vmatpush1.msra.mxu0 0.0
      %1646 = vmatprep.subr.mxu0 0.0
      %1647 = vmatpush1.msra.mxu0 0.0
      %1648 = vmatprep.subr.mxu0 0.0
      %1649 = vmatpush1.msra.mxu0 0.0
      %1650 = vmatprep.subr.mxu0 0.0
      %1651 = vmatpush1.msra.mxu0 0.0
      %1652 = vmatprep.subr.mxu0 0.0
      %1653 = vmatpush1.msra.mxu0 0.0
      %1654 = vmatprep.subr.mxu0 0.0
      %1655 = vmatpush1.msra.mxu0 0.0
      %1656 = vmatprep.subr.mxu0 0.0
      %1657 = vmatpush1.msra.mxu0 0.0
      %1658 = vmatprep.subr.mxu0 0.0
      %1659 = vmatpush1.msra.mxu0 0.0
      %1660 = vmatprep.subr.mxu0 0.0
      %1661 = vmatpush1.msra.mxu0 0.0
      %1662 = vmatprep.subr.mxu0 0.0
      %1663 = vmatpush1.msra.mxu0 0.0
      %1664 = vmatprep.subr.mxu0 0.0
      %1665 = vmatpush1.msra.mxu0 0.0
      %1666 = vmatprep.subr.mxu0 0.0
      %1667 = vmatpush1.msra.mxu0 0.0
      %1668 = vmatprep.subr.mxu0 0.0
      %1669 = vmatpush1.msra.mxu0 0.0
      %1670 = vmatprep.subr.mxu0 0.0
      %1671 = vmatpush1.msra.mxu0 0.0
      %1672 = vmatprep.subr.mxu0 0.0
      %1673 = vmatpush1.msra.mxu0 0.0
      %1674 = vmatprep.subr.mxu0 0.0
      %1675 = vmatpush1.msra.mxu0 0.0
      %1676 = vmatprep.subr.mxu0 0.0
      %1677 = vmatpush1.msra.mxu0 0.0
      %1678 = vmatprep.subr.mxu0 0.0
      %1679 = vmatpush1.msra.mxu0 0.0
      %1680 = vmatprep.subr.mxu0 0.0
      %1681 = vmatpush1.msra.mxu0 0.0
      %1682 = vmatprep.subr.mxu0 0.0
      %1683 = vmatpush1.msra.mxu0 0.0
      %1684 = vmatprep.subr.mxu0 0.0
      %1685 = vmatpush1.msra.mxu0 0.0
      %1686 = vmatprep.subr.mxu0 0.0
      %1687 = vmatpush1.msra.mxu0 0.0
      %1688 = vmatprep.subr.mxu0 0.0
      %1689 = vmatpush1.msra.mxu0 0.0
      %1690 = vmatprep.subr.mxu0 0.0
      %1691 = vmatpush1.msra.mxu0 0.0
      %1692 = vmatprep.subr.mxu0 0.0
      %1693 = vmatpush1.msra.mxu0 0.0
      %1694 = vmatprep.subr.mxu0 0.0
      %1695 = vmatpush1.msra.mxu0 0.0
      %1696 = vmatprep.subr.mxu0 0.0
      %1697 = vmatpush1.msra.mxu0 0.0
      %1698 = vmatprep.subr.mxu0 0.0
      %1699 = vmatpush1.msra.mxu0 0.0
      %1700 = vmatprep.mubr.f32.mxu0 0.0
      %1701 = vmatmul.mubr.f32.gmra.mrb[0].mxu0 %v1631
      %v1702 = vpop.f32.mrb[0].mxu0
      %v1703 = vadd.f32 0.0, %v1702
      %v1704 = vpop.f32.mrb[0].mxu0
      %1705 = vmatprep.mubr.f32.mxu0 0.0
      %1706 = vmatmul.mubr.f32.gmra.mrb[0].mxu0 %v1634
      %v1707 = vpop.f32.mrb[0].mxu0
      %v1708 = vadd.f32 0.0, %v1707
      %v1709 = vpop.f32.mrb[0].mxu0
      %1710 = vdwg.mxu0
      %v1711 = vadd.f32 %v1420, %v1703
      %v1712 = vadd.f32 %v1421, %v1708
      %v1713 = vld [vmem:[%s6] sm:$0x1]
      %v1714 = vld [vmem:[%s7] sm:$0x1]
      %1715 = vadd.xlane.f32.xlu0 %v1711
      %v1716 = vpop.xlane.xlu0 %1715
      %1717 = vadd.xlane.f32.xlu0 %v1712
      %v1718 = vpop.xlane.xlu0 %1717
      %v1719 = vrcp.pop 128.0
      %v1720 = vmul.f32 %v1716, %v1719
      %v1721 = vmul.f32 %v1718, %v1719
      %v1722 = vsub.f32 %v1711, %v1720
      %v1723 = vsub.f32 %v1712, %v1721
      %v1724 = vmul.f32 %v1722, %v1722
      %v1725 = vmul.f32 %v1723, %v1723
      %1726 = vadd.xlane.f32.xlu0 %v1724
      %v1727 = vpop.xlane.xlu0 %1726
      %1728 = vadd.xlane.f32.xlu0 %v1725
      %v1729 = vpop.xlane.xlu0 %1728
      %v1730 = vmul.f32 %v1727, %v1719
      %v1731 = vmul.f32 %v1729, %v1719
      %v1732 = vadd.f32 %v1730, 1e-12
      %v1733 = vadd.f32 %v1731, 1e-12
      %v1734 = vrsqrt.pop %v1732
      %v1735 = vrsqrt.pop %v1733
      %v1736 = vmul.f32 %v1722, %v1734
      %v1737 = vmul.f32 %v1723, %v1735
      %v1739 = vlaneseq
      %v1740 = vshrl.u32 %v1739, 7
      %v1741 = vsub.s32 0, %v1740
      %v1742 = vrot.slane %v1713, %v1741
      %v1744 = vmul.f32 %v1736, %v1742
      %v1745 = vmul.f32 %v1737, %v1742
      %v1747 = vlaneseq
      %v1748 = vshrl.u32 %v1747, 7
      %v1749 = vsub.s32 0, %v1748
      %v1750 = vrot.slane %v1714, %v1749
      %v1752 = vadd.f32 %v1744, %v1750
      %v1753 = vadd.f32 %v1745, %v1750
      %1754 = vst [vmem:[%s319] sm:$0xff] %v1752
      %1755 = vst [vmem:[%s319 + $0x8] sm:$0xff] %v1753
      %p1756 = scmp.lt.s32.totalorder %s19, 1
      %s1757 = scalar_select %p1756, %s19, 1
      %s1758 = smul.addr %s1757, 2
      %s1759 = smul.addr %s1758, 8
      %s1760 = scalar_lea.vmem %s8, %s1759
      // Predicated region
      $region53: #{bert_forward.9} parent=51 // pred_check
        %p1761 = pneg %p215
      $region54: #{bert_forward.9} parent=51 // pred_check_branch
        %1763 = sbr.rel (%p1761) target = $region56
      $region55: #{bert_forward.9} parent=51 // pred_region
        _
      $region56: #{bert_forward.9} parent=51 // pred_fallthru
        _
    $region52: #{bert_forward.9} parent=5 // pred_fallthru
      _
    %p1764 = scmp.le.s32.totalorder 2, %s14
    // Predicated region
    $region57: #{bert_forward.9} parent=5 // pred_check
      %p1765 = pneg %p1764
    $region58: #{bert_forward.9} parent=5 // pred_check_branch
      %1767 = sbr.rel (%p1765) target = $region60
    $region59: #{bert_forward.9} parent=5 // pred_region
      %s1768 = ssub.s32 %s14, 2
      // Predicated region
      $region61: #{bert_forward.9} parent=59 // pred_check
        %p1769 = pneg %p221
      $region62: #{bert_forward.9} parent=59 // pred_check_branch
        %1771 = sbr.rel (%p1769) target = $region64
      $region63: #{bert_forward.9} parent=59 // pred_region
        %p1772 = scmp.lt.s32.totalorder %s20, 1
        %s1773 = scalar_select %p1772, %s20, 1
        %s1774 = smul.addr %s1773, 2
        %s1775 = smul.addr %s1774, 8
        %s1776 = scalar_lea.vmem %s8, %s1775
      $region64: #{bert_forward.9} parent=59 // pred_fallthru
        _
    $region60: #{bert_forward.9} parent=5 // pred_fallthru
      _
  $region6: #{bert_forward.9} parent=0 // loop_footer
    %s18 = sadd.s32 1, %s14
  $region7: #{bert_forward.9} parent=0 // loop_footer_branch
    %13 = sbr.rel target = $region3
  $region8: #{bert_forward.9} parent=0 // loop_exit
    _

</llo_original>
